<compile_context>
chip_gen: v6e
topology: v6e:2x2x1
jax: 0.10.0
libtpu: 0.0.40
codegen_flags: <defaults>
</compile_context>

<pallas_src>
import functools

import jax
import jax.numpy as jnp
from jax.experimental import pallas as pl
from jax.experimental.pallas import tpu as pltpu


# ---------------------------------------------------------------------------
# In-kernel helpers (traced inline; all math on VMEM-resident values)
# ---------------------------------------------------------------------------
def _layernorm(x, gamma, beta, eps):
    mu = jnp.mean(x, axis=-1, keepdims=True)
    xc = x - mu
    var = jnp.mean(xc * xc, axis=-1, keepdims=True)
    return xc * jax.lax.rsqrt(var + eps) * gamma + beta


def _mha(x_q, x_kv, w_qkv, b_qkv, *, num_heads):
    """Multi-head self-attention.
    x_q: (Sq, D) f32 (Sq == S, or 1 for the last-token-only layer),
    x_kv: (S, D) f32, w_qkv: (D, 3D) bf16, b_qkv: (1, 3D) f32 -> (Sq, D) f32."""
    D = x_kv.shape[-1]
    dh = D // num_heads
    scale = 1.0 / float(dh) ** 0.5

    xq16 = x_q.astype(jnp.bfloat16)
    xkv16 = x_kv.astype(jnp.bfloat16)
    # Q only for the rows we actually need; K/V for all rows.
    q = jnp.dot(xq16, w_qkv[:, :D], preferred_element_type=jnp.float32) + b_qkv[:, :D]
    kv = jnp.dot(xkv16, w_qkv[:, D:], preferred_element_type=jnp.float32) + b_qkv[:, D:]
    q16 = q.astype(jnp.bfloat16)
    k16 = kv[:, :D].astype(jnp.bfloat16)
    v16 = kv[:, D:].astype(jnp.bfloat16)

    heads = []
    for h in range(num_heads):                       # small static head count
        qh = q16[:, h * dh:(h + 1) * dh]             # (Sq, dh)
        kh = k16[:, h * dh:(h + 1) * dh]             # (S,  dh)
        vh = v16[:, h * dh:(h + 1) * dh]             # (S,  dh)
        # scores = q @ k^T without materializing the transpose.
        s = jax.lax.dot_general(qh, kh, (((1,), (1,)), ((), ())),
                                preferred_element_type=jnp.float32) * scale
        m = jnp.max(s, axis=-1, keepdims=True)       # softmax in f32
        p = jnp.exp(s - m)
        # approx reciprocal runs on the EUP slot; switch to approx=False if
        # bit-level parity with PyTorch's exact divide is required.
        p = p * pl.reciprocal(jnp.sum(p, axis=-1, keepdims=True), approx=True)
        heads.append(jnp.dot(p.astype(jnp.bfloat16), vh,
                             preferred_element_type=jnp.float32))
    # Head outputs stay in registers; concatenate along the lane axis.
    return jnp.concatenate(heads, axis=-1)           # (Sq, D) f32


def _encoder_layer(x, w_qkv, b_qkv, w_o, b_o, g1, b1, w1, fb1, w2, fb2, g2, b2,
                   *, num_heads, eps, last_token_only):
    """Post-LN nn.TransformerEncoderLayer (ReLU FFN, dropout = identity).
    x: (S, D) f32.  Returns (S, D), or (1, D) when last_token_only."""
    S = x.shape[0]
    xq = x[S - 1:S, :] if last_token_only else x
    attn = _mha(xq, x, w_qkv, b_qkv, num_heads=num_heads)
    attn = jnp.dot(attn.astype(jnp.bfloat16), w_o,
                   preferred_element_type=jnp.float32) + b_o
    y = _layernorm(xq + attn, g1, b1, eps)
    hid = jnp.dot(y.astype(jnp.bfloat16), w1,
                  preferred_element_type=jnp.float32) + fb1
    hid = jnp.maximum(hid, 0.0)
    ff = jnp.dot(hid.astype(jnp.bfloat16), w2,
                 preferred_element_type=jnp.float32) + fb2
    return _layernorm(y + ff, g2, b2, eps)


# ---------------------------------------------------------------------------
# Fused whole-model kernel: one batch element per grid step
# ---------------------------------------------------------------------------
def _fused_forward_kernel(x_ref, pe_ref, wi_ref, bi_ref,
                          wqkv_ref, bqkv_ref, wo_ref, bo_ref,
                          g1_ref, b1_ref, w1_ref, fb1_ref, w2_ref, fb2_ref,
                          g2_ref, b2_ref, wout_ref, bout_ref, o_ref,
                          *, num_heads, num_layers, eps):
    x = x_ref[0]                                                 # (S, in_dim) f32
    # Input projection fused with the positional-encoding add.
    h = (jnp.dot(x.astype(jnp.bfloat16), wi_ref[...],
                 preferred_element_type=jnp.float32)
         + bi_ref[...] + pe_ref[...])                            # (S, D) f32

    # Static layer loop (num_layers is a small compile-time constant).
    for li in range(num_layers):
        last = li == num_layers - 1
        h = _encoder_layer(
            h, wqkv_ref[li], bqkv_ref[li], wo_ref[li], bo_ref[li],
            g1_ref[li], b1_ref[li], w1_ref[li], fb1_ref[li],
            w2_ref[li], fb2_ref[li], g2_ref[li], b2_ref[li],
            num_heads=num_heads, eps=eps, last_token_only=last)

    # After the last (specialized) layer h is (1, D): fused output head.
    out = jnp.dot(h.astype(jnp.bfloat16), wout_ref[...],
                  preferred_element_type=jnp.float32) + bout_ref[...]
    o_ref[0] = out.astype(o_ref.dtype)                           # (1, out_dim)


def transformer_forward(X, params, num_heads, eps=1e-5):
    """X: (batch, seq, input_dim) -> (batch, output_dim), single pallas_call."""
    B, S, in_dim = X.shape
    D = params["input_proj_wT"].shape[1]
    out_dim = params["output_wT"].shape[1]
    L, _, F = params["ff1_wT"].shape
    assert D % num_heads == 0
    assert S <= params["pos_enc"].shape[0], "sequence longer than positional encoding"
    pe = params["pos_enc"][:S]                                   # (S, D) tiny slice

    kernel = functools.partial(_fused_forward_kernel, num_heads=num_heads,
                               num_layers=L, eps=eps)
    w2d = lambda b: (0, 0)        # constant index maps: weights fetched once
    w3d = lambda b: (0, 0, 0)

    out = pl.pallas_call(
        kernel,
        out_shape=jax.ShapeDtypeStruct((B, 1, out_dim), jnp.float32),
        grid=(B,),
        in_specs=[
            pl.BlockSpec((1, S, in_dim), lambda b: (b, 0, 0)),   # X
            pl.BlockSpec((S, D), w2d),                           # positional enc
            pl.BlockSpec((in_dim, D), w2d),                      # input proj W^T
            pl.BlockSpec((1, D), w2d),                           # input proj b
            pl.BlockSpec((L, D, 3 * D), w3d),                    # attn in_proj W^T
            pl.BlockSpec((L, 1, 3 * D), w3d),                    # attn in_proj b
            pl.BlockSpec((L, D, D), w3d),                        # attn out_proj W^T
            pl.BlockSpec((L, 1, D), w3d),                        # attn out_proj b
            pl.BlockSpec((L, 1, D), w3d),                        # ln1 gamma
            pl.BlockSpec((L, 1, D), w3d),                        # ln1 beta
            pl.BlockSpec((L, D, F), w3d),                        # ff1 W^T
            pl.BlockSpec((L, 1, F), w3d),                        # ff1 b
            pl.BlockSpec((L, F, D), w3d),                        # ff2 W^T
            pl.BlockSpec((L, 1, D), w3d),                        # ff2 b
            pl.BlockSpec((L, 1, D), w3d),                        # ln2 gamma
            pl.BlockSpec((L, 1, D), w3d),                        # ln2 beta
            pl.BlockSpec((D, out_dim), w2d),                     # output head W^T
            pl.BlockSpec((1, out_dim), w2d),                     # output head b
        ],
        out_specs=pl.BlockSpec((1, 1, out_dim), lambda b: (b, 0, 0)),
        compiler_params=pltpu.CompilerParams(
            dimension_semantics=("parallel",)),                  # 2 even steps -> v7x 2 TCs
    )(X, pe, params["input_proj_wT"], params["input_proj_b"],
      params["in_proj_wT"], params["in_proj_b"],
      params["out_proj_wT"], params["out_proj_b"],
      params["ln1_g"], params["ln1_b"],
      params["ff1_wT"], params["ff1_b"],
      params["ff2_wT"], params["ff2_b"],
      params["ln2_g"], params["ln2_b"],
      params["output_wT"], params["output_b"])
    return out[:, 0, :]


# ---------------------------------------------------------------------------
# Deterministic synthetic parameters (shapes from TransformerModel.__init__).
# Matmul weights are stored pre-transposed (in_f, out_f), stacked over layers
# as (L, ...), and cast to bf16 once at init (MXU-native); biases / LayerNorm
# params / positional encoding stay f32.  To load real PyTorch weights,
# transpose + stack + cast once at conversion time.
# ---------------------------------------------------------------------------
def init_params(key, input_dim, model_dim, num_layers, output_dim, ff_dim=512,
                matmul_dtype=jnp.bfloat16):
    def w(k, shape, scale=0.02):
        return (scale * jax.random.normal(k, shape, jnp.float32)).astype(matmul_dtype)

    ks = jax.random.split(key, 8)
    L, D, F = num_layers, model_dim, ff_dim
    zeros = lambda shape: jnp.zeros(shape, jnp.float32)
    return {
        "input_proj_wT": w(ks[0], (input_dim, D)),
        "input_proj_b": zeros((1, D)),
        # nn.Parameter(torch.zeros(1, 96, D)) in the reference; small random
        # values here so the fused PE add is actually exercised.
        "pos_enc": 0.02 * jax.random.normal(ks[1], (96, D), jnp.float32),
        "in_proj_wT": w(ks[2], (L, D, 3 * D)),
        "in_proj_b": zeros((L, 1, 3 * D)),
        "out_proj_wT": w(ks[3], (L, D, D)),
        "out_proj_b": zeros((L, 1, D)),
        "ln1_g": jnp.ones((L, 1, D), jnp.float32),
        "ln1_b": zeros((L, 1, D)),
        "ff1_wT": w(ks[4], (L, D, F)),
        "ff1_b": zeros((L, 1, F)),
        "ff2_wT": w(ks[5], (L, F, D)),
        "ff2_b": zeros((L, 1, D)),
        "ln2_g": jnp.ones((L, 1, D), jnp.float32),
        "ln2_b": zeros((L, 1, D)),
        "output_wT": w(ks[6], (D, output_dim)),
        "output_b": zeros((1, output_dim)),
    }


if __name__ == "__main__":
    B, S, input_dim = 2, 8, 16
    model_dim, num_heads, num_layers, output_dim = 32, 4, 2, 8

    key = jax.random.PRNGKey(0)
    pkey, xkey = jax.random.split(key)
    params = init_params(pkey, input_dim, model_dim, num_layers, output_dim)
    X = jax.random.normal(xkey, (B, S, input_dim), jnp.float32)

    # TODO(synk): dropout is implemented with eval() semantics (identity).
    fwd = jax.jit(functools.partial(transformer_forward, num_heads=num_heads))
    y = fwd(X, params)
    jax.block_until_ready(y)
    assert y.shape == (B, output_dim)
    assert bool(jnp.all(jnp.isfinite(y)))
    print("KERNEL_OK")
</pallas_src>

<mosaic_0001>
module attributes {stable_mosaic.version = 11 : i64} {
  func.func @_fused_forward_kernel(%arg0: i32, %arg1: memref<1x8x16xf32, #tpu.memory_space<vmem>>, %arg2: memref<8x32xf32, #tpu.memory_space<vmem>>, %arg3: memref<16x32xbf16, #tpu.memory_space<vmem>>, %arg4: memref<1x32xf32, #tpu.memory_space<vmem>>, %arg5: memref<2x32x96xbf16, #tpu.memory_space<vmem>>, %arg6: memref<2x1x96xf32, #tpu.memory_space<vmem>>, %arg7: memref<2x32x32xbf16, #tpu.memory_space<vmem>>, %arg8: memref<2x1x32xf32, #tpu.memory_space<vmem>>, %arg9: memref<2x1x32xf32, #tpu.memory_space<vmem>>, %arg10: memref<2x1x32xf32, #tpu.memory_space<vmem>>, %arg11: memref<2x32x512xbf16, #tpu.memory_space<vmem>>, %arg12: memref<2x1x512xf32, #tpu.memory_space<vmem>>, %arg13: memref<2x512x32xbf16, #tpu.memory_space<vmem>>, %arg14: memref<2x1x32xf32, #tpu.memory_space<vmem>>, %arg15: memref<2x1x32xf32, #tpu.memory_space<vmem>>, %arg16: memref<2x1x32xf32, #tpu.memory_space<vmem>>, %arg17: memref<32x8xbf16, #tpu.memory_space<vmem>>, %arg18: memref<1x8xf32, #tpu.memory_space<vmem>>, %arg19: memref<1x1x8xf32, #tpu.memory_space<vmem>>) attributes {dimension_semantics = [#tpu.dimension_semantics<parallel>], iteration_bounds = array<i64: 2>, scalar_prefetch = 0 : i64, scratch_operands = 0 : i64, tpu.core_type = #tpu.core_type<tc>, window_params = [{transform_indices = @transform_0, window_bounds = array<i64: 1, 8, 16>}, {pipeline_mode = #tpu.pipeline_mode<synchronous>, transform_indices = @transform_1, window_bounds = array<i64: 8, 32>}, {pipeline_mode = #tpu.pipeline_mode<synchronous>, transform_indices = @transform_2, window_bounds = array<i64: 16, 32>}, {pipeline_mode = #tpu.pipeline_mode<synchronous>, transform_indices = @transform_3, window_bounds = array<i64: 1, 32>}, {pipeline_mode = #tpu.pipeline_mode<synchronous>, transform_indices = @transform_4, window_bounds = array<i64: 2, 32, 96>}, {pipeline_mode = #tpu.pipeline_mode<synchronous>, transform_indices = @transform_5, window_bounds = array<i64: 2, 1, 96>}, {pipeline_mode = #tpu.pipeline_mode<synchronous>, transform_indices = @transform_6, window_bounds = array<i64: 2, 32, 32>}, {pipeline_mode = #tpu.pipeline_mode<synchronous>, transform_indices = @transform_7, window_bounds = array<i64: 2, 1, 32>}, {pipeline_mode = #tpu.pipeline_mode<synchronous>, transform_indices = @transform_8, window_bounds = array<i64: 2, 1, 32>}, {pipeline_mode = #tpu.pipeline_mode<synchronous>, transform_indices = @transform_9, window_bounds = array<i64: 2, 1, 32>}, {pipeline_mode = #tpu.pipeline_mode<synchronous>, transform_indices = @transform_10, window_bounds = array<i64: 2, 32, 512>}, {pipeline_mode = #tpu.pipeline_mode<synchronous>, transform_indices = @transform_11, window_bounds = array<i64: 2, 1, 512>}, {pipeline_mode = #tpu.pipeline_mode<synchronous>, transform_indices = @transform_12, window_bounds = array<i64: 2, 512, 32>}, {pipeline_mode = #tpu.pipeline_mode<synchronous>, transform_indices = @transform_13, window_bounds = array<i64: 2, 1, 32>}, {pipeline_mode = #tpu.pipeline_mode<synchronous>, transform_indices = @transform_14, window_bounds = array<i64: 2, 1, 32>}, {pipeline_mode = #tpu.pipeline_mode<synchronous>, transform_indices = @transform_15, window_bounds = array<i64: 2, 1, 32>}, {pipeline_mode = #tpu.pipeline_mode<synchronous>, transform_indices = @transform_16, window_bounds = array<i64: 32, 8>}, {pipeline_mode = #tpu.pipeline_mode<synchronous>, transform_indices = @transform_17, window_bounds = array<i64: 1, 8>}, {transform_indices = @transform_18, window_bounds = array<i64: 1, 1, 8>}]} {
    %c0 = arith.constant 0 : index
    %c0_0 = arith.constant 0 : index
    %c0_1 = arith.constant 0 : index
    %0 = vector.load %arg1[%c0, %c0_0, %c0_1] : memref<1x8x16xf32, #tpu.memory_space<vmem>>, vector<1x8x16xf32>
    %1 = vector.shape_cast %0 : vector<1x8x16xf32> to vector<8x16xf32>
    %2 = arith.truncf %1 : vector<8x16xf32> to vector<8x16xbf16>
    %c0_2 = arith.constant 0 : index
    %c0_3 = arith.constant 0 : index
    %3 = vector.load %arg3[%c0_2, %c0_3] : memref<16x32xbf16, #tpu.memory_space<vmem>>, vector<16x32xbf16>
    %cst = arith.constant dense<0.000000e+00> : vector<8x32xf32>
    %4 = tpu.matmul %2, %3, %cst {dimension_numbers = #tpu.dot_dimension_numbers<[1], [0], [0], [1], [0, 0, 1, 1], [], []>} : vector<8x16xbf16>, vector<16x32xbf16>, vector<8x32xf32> -> vector<8x32xf32>
    %c0_4 = arith.constant 0 : index
    %c0_5 = arith.constant 0 : index
    %5 = vector.load %arg4[%c0_4, %c0_5] : memref<1x32xf32, #tpu.memory_space<vmem>>, vector<1x32xf32>
    %6 = vector.broadcast %5 : vector<1x32xf32> to vector<8x32xf32>
    %7 = arith.addf %4, %6 : vector<8x32xf32>
    %c0_6 = arith.constant 0 : index
    %c0_7 = arith.constant 0 : index
    %8 = vector.load %arg2[%c0_6, %c0_7] : memref<8x32xf32, #tpu.memory_space<vmem>>, vector<8x32xf32>
    %9 = arith.addf %7, %8 : vector<8x32xf32>
    %c0_8 = arith.constant 0 : index
    %c0_9 = arith.constant 0 : index
    %c0_10 = arith.constant 0 : index
    %10 = vector.load %arg5[%c0_8, %c0_9, %c0_10] : memref<2x32x96xbf16, #tpu.memory_space<vmem>>, vector<1x32x96xbf16>
    %11 = vector.shape_cast %10 : vector<1x32x96xbf16> to vector<32x96xbf16>
    %c0_11 = arith.constant 0 : index
    %c0_12 = arith.constant 0 : index
    %c0_13 = arith.constant 0 : index
    %12 = vector.load %arg6[%c0_11, %c0_12, %c0_13] : memref<2x1x96xf32, #tpu.memory_space<vmem>>, vector<1x1x96xf32>
    %13 = vector.shape_cast %12 : vector<1x1x96xf32> to vector<1x96xf32>
    %c0_14 = arith.constant 0 : index
    %c0_15 = arith.constant 0 : index
    %c0_16 = arith.constant 0 : index
    %14 = vector.load %arg7[%c0_14, %c0_15, %c0_16] : memref<2x32x32xbf16, #tpu.memory_space<vmem>>, vector<1x32x32xbf16>
    %15 = vector.shape_cast %14 : vector<1x32x32xbf16> to vector<32x32xbf16>
    %c0_17 = arith.constant 0 : index
    %c0_18 = arith.constant 0 : index
    %c0_19 = arith.constant 0 : index
    %16 = vector.load %arg8[%c0_17, %c0_18, %c0_19] : memref<2x1x32xf32, #tpu.memory_space<vmem>>, vector<1x1x32xf32>
    %17 = vector.shape_cast %16 : vector<1x1x32xf32> to vector<1x32xf32>
    %c0_20 = arith.constant 0 : index
    %c0_21 = arith.constant 0 : index
    %c0_22 = arith.constant 0 : index
    %18 = vector.load %arg9[%c0_20, %c0_21, %c0_22] : memref<2x1x32xf32, #tpu.memory_space<vmem>>, vector<1x1x32xf32>
    %19 = vector.shape_cast %18 : vector<1x1x32xf32> to vector<1x32xf32>
    %c0_23 = arith.constant 0 : index
    %c0_24 = arith.constant 0 : index
    %c0_25 = arith.constant 0 : index
    %20 = vector.load %arg10[%c0_23, %c0_24, %c0_25] : memref<2x1x32xf32, #tpu.memory_space<vmem>>, vector<1x1x32xf32>
    %21 = vector.shape_cast %20 : vector<1x1x32xf32> to vector<1x32xf32>
    %c0_26 = arith.constant 0 : index
    %c0_27 = arith.constant 0 : index
    %c0_28 = arith.constant 0 : index
    %22 = vector.load %arg11[%c0_26, %c0_27, %c0_28] : memref<2x32x512xbf16, #tpu.memory_space<vmem>>, vector<1x32x512xbf16>
    %23 = vector.shape_cast %22 : vector<1x32x512xbf16> to vector<32x512xbf16>
    %c0_29 = arith.constant 0 : index
    %c0_30 = arith.constant 0 : index
    %c0_31 = arith.constant 0 : index
    %24 = vector.load %arg12[%c0_29, %c0_30, %c0_31] : memref<2x1x512xf32, #tpu.memory_space<vmem>>, vector<1x1x512xf32>
    %25 = vector.shape_cast %24 : vector<1x1x512xf32> to vector<1x512xf32>
    %c0_32 = arith.constant 0 : index
    %c0_33 = arith.constant 0 : index
    %c0_34 = arith.constant 0 : index
    %26 = vector.load %arg13[%c0_32, %c0_33, %c0_34] : memref<2x512x32xbf16, #tpu.memory_space<vmem>>, vector<1x512x32xbf16>
    %27 = vector.shape_cast %26 : vector<1x512x32xbf16> to vector<512x32xbf16>
    %c0_35 = arith.constant 0 : index
    %c0_36 = arith.constant 0 : index
    %c0_37 = arith.constant 0 : index
    %28 = vector.load %arg14[%c0_35, %c0_36, %c0_37] : memref<2x1x32xf32, #tpu.memory_space<vmem>>, vector<1x1x32xf32>
    %29 = vector.shape_cast %28 : vector<1x1x32xf32> to vector<1x32xf32>
    %c0_38 = arith.constant 0 : index
    %c0_39 = arith.constant 0 : index
    %c0_40 = arith.constant 0 : index
    %30 = vector.load %arg15[%c0_38, %c0_39, %c0_40] : memref<2x1x32xf32, #tpu.memory_space<vmem>>, vector<1x1x32xf32>
    %31 = vector.shape_cast %30 : vector<1x1x32xf32> to vector<1x32xf32>
    %c0_41 = arith.constant 0 : index
    %c0_42 = arith.constant 0 : index
    %c0_43 = arith.constant 0 : index
    %32 = vector.load %arg16[%c0_41, %c0_42, %c0_43] : memref<2x1x32xf32, #tpu.memory_space<vmem>>, vector<1x1x32xf32>
    %33 = vector.shape_cast %32 : vector<1x1x32xf32> to vector<1x32xf32>
    %34 = arith.truncf %9 : vector<8x32xf32> to vector<8x32xbf16>
    %35 = arith.truncf %9 : vector<8x32xf32> to vector<8x32xbf16>
    %36 = vector.extract_strided_slice %11 {offsets = [0, 0], sizes = [32, 32], strides = [1, 1]} : vector<32x96xbf16> to vector<32x32xbf16>
    %cst_44 = arith.constant dense<0.000000e+00> : vector<8x32xf32>
    %37 = tpu.matmul %34, %36, %cst_44 {dimension_numbers = #tpu.dot_dimension_numbers<[1], [0], [0], [1], [0, 0, 1, 1], [], []>} : vector<8x32xbf16>, vector<32x32xbf16>, vector<8x32xf32> -> vector<8x32xf32>
    %38 = vector.extract_strided_slice %13 {offsets = [0, 0], sizes = [1, 32], strides = [1, 1]} : vector<1x96xf32> to vector<1x32xf32>
    %39 = vector.broadcast %38 : vector<1x32xf32> to vector<8x32xf32>
    %40 = arith.addf %37, %39 : vector<8x32xf32>
    %41 = vector.extract_strided_slice %11 {offsets = [0, 32], sizes = [32, 64], strides = [1, 1]} : vector<32x96xbf16> to vector<32x64xbf16>
    %cst_45 = arith.constant dense<0.000000e+00> : vector<8x64xf32>
    %42 = tpu.matmul %35, %41, %cst_45 {dimension_numbers = #tpu.dot_dimension_numbers<[1], [0], [0], [1], [0, 0, 1, 1], [], []>} : vector<8x32xbf16>, vector<32x64xbf16>, vector<8x64xf32> -> vector<8x64xf32>
    %43 = vector.extract_strided_slice %13 {offsets = [0, 32], sizes = [1, 64], strides = [1, 1]} : vector<1x96xf32> to vector<1x64xf32>
    %44 = vector.broadcast %43 : vector<1x64xf32> to vector<8x64xf32>
    %45 = arith.addf %42, %44 : vector<8x64xf32>
    %46 = arith.truncf %40 : vector<8x32xf32> to vector<8x32xbf16>
    %47 = vector.extract_strided_slice %45 {offsets = [0, 0], sizes = [8, 32], strides = [1, 1]} : vector<8x64xf32> to vector<8x32xf32>
    %48 = arith.truncf %47 : vector<8x32xf32> to vector<8x32xbf16>
    %49 = vector.extract_strided_slice %45 {offsets = [0, 32], sizes = [8, 32], strides = [1, 1]} : vector<8x64xf32> to vector<8x32xf32>
    %50 = arith.truncf %49 : vector<8x32xf32> to vector<8x32xbf16>
    %51 = vector.extract_strided_slice %46 {offsets = [0, 0], sizes = [8, 8], strides = [1, 1]} : vector<8x32xbf16> to vector<8x8xbf16>
    %52 = vector.extract_strided_slice %48 {offsets = [0, 0], sizes = [8, 8], strides = [1, 1]} : vector<8x32xbf16> to vector<8x8xbf16>
    %53 = vector.extract_strided_slice %50 {offsets = [0, 0], sizes = [8, 8], strides = [1, 1]} : vector<8x32xbf16> to vector<8x8xbf16>
    %cst_46 = arith.constant dense<0.000000e+00> : vector<8x8xf32>
    %54 = tpu.matmul %51, %52, %cst_46 {dimension_numbers = #tpu.dot_dimension_numbers<[1], [1], [0], [0], [0, 0, 1, 0], [], []>} : vector<8x8xbf16>, vector<8x8xbf16>, vector<8x8xf32> -> vector<8x8xf32>
    %cst_47 = arith.constant 0.353553385 : f32
    %55 = vector.broadcast %cst_47 : f32 to vector<8x8xf32>
    %56 = arith.mulf %54, %55 : vector<8x8xf32>
    %cst_48 = arith.constant dense<0xFF800000> : vector<8xf32>
    %57 = vector.multi_reduction <maximumf>, %56, %cst_48 [1] : vector<8x8xf32> to vector<8xf32>
    %58 = vector.shape_cast %57 : vector<8xf32> to vector<8x1xf32>
    %59 = vector.broadcast %58 : vector<8x1xf32> to vector<8x8xf32>
    %60 = arith.subf %56, %59 : vector<8x8xf32>
    %61 = math.exp %60 : vector<8x8xf32>
    %cst_49 = arith.constant dense<0.000000e+00> : vector<8xf32>
    %62 = vector.multi_reduction <add>, %61, %cst_49 [1] : vector<8x8xf32> to vector<8xf32>
    %63 = vector.shape_cast %62 : vector<8xf32> to vector<8x1xf32>
    %64 = tpu.reciprocal %63 {approx = true} : vector<8x1xf32> -> vector<8x1xf32>
    %65 = vector.broadcast %64 : vector<8x1xf32> to vector<8x8xf32>
    %66 = arith.mulf %61, %65 : vector<8x8xf32>
    %67 = arith.truncf %66 : vector<8x8xf32> to vector<8x8xbf16>
    %cst_50 = arith.constant dense<0.000000e+00> : vector<8x8xf32>
    %68 = tpu.matmul %67, %53, %cst_50 {dimension_numbers = #tpu.dot_dimension_numbers<[1], [0], [0], [1], [0, 0, 1, 1], [], []>} : vector<8x8xbf16>, vector<8x8xbf16>, vector<8x8xf32> -> vector<8x8xf32>
    %69 = vector.extract_strided_slice %46 {offsets = [0, 8], sizes = [8, 8], strides = [1, 1]} : vector<8x32xbf16> to vector<8x8xbf16>
    %70 = vector.extract_strided_slice %48 {offsets = [0, 8], sizes = [8, 8], strides = [1, 1]} : vector<8x32xbf16> to vector<8x8xbf16>
    %71 = vector.extract_strided_slice %50 {offsets = [0, 8], sizes = [8, 8], strides = [1, 1]} : vector<8x32xbf16> to vector<8x8xbf16>
    %cst_51 = arith.constant dense<0.000000e+00> : vector<8x8xf32>
    %72 = tpu.matmul %69, %70, %cst_51 {dimension_numbers = #tpu.dot_dimension_numbers<[1], [1], [0], [0], [0, 0, 1, 0], [], []>} : vector<8x8xbf16>, vector<8x8xbf16>, vector<8x8xf32> -> vector<8x8xf32>
    %cst_52 = arith.constant 0.353553385 : f32
    %73 = vector.broadcast %cst_52 : f32 to vector<8x8xf32>
    %74 = arith.mulf %72, %73 : vector<8x8xf32>
    %cst_53 = arith.constant dense<0xFF800000> : vector<8xf32>
    %75 = vector.multi_reduction <maximumf>, %74, %cst_53 [1] : vector<8x8xf32> to vector<8xf32>
    %76 = vector.shape_cast %75 : vector<8xf32> to vector<8x1xf32>
    %77 = vector.broadcast %76 : vector<8x1xf32> to vector<8x8xf32>
    %78 = arith.subf %74, %77 : vector<8x8xf32>
    %79 = math.exp %78 : vector<8x8xf32>
    %cst_54 = arith.constant dense<0.000000e+00> : vector<8xf32>
    %80 = vector.multi_reduction <add>, %79, %cst_54 [1] : vector<8x8xf32> to vector<8xf32>
    %81 = vector.shape_cast %80 : vector<8xf32> to vector<8x1xf32>
    %82 = tpu.reciprocal %81 {approx = true} : vector<8x1xf32> -> vector<8x1xf32>
    %83 = vector.broadcast %82 : vector<8x1xf32> to vector<8x8xf32>
    %84 = arith.mulf %79, %83 : vector<8x8xf32>
    %85 = arith.truncf %84 : vector<8x8xf32> to vector<8x8xbf16>
    %cst_55 = arith.constant dense<0.000000e+00> : vector<8x8xf32>
    %86 = tpu.matmul %85, %71, %cst_55 {dimension_numbers = #tpu.dot_dimension_numbers<[1], [0], [0], [1], [0, 0, 1, 1], [], []>} : vector<8x8xbf16>, vector<8x8xbf16>, vector<8x8xf32> -> vector<8x8xf32>
    %87 = vector.extract_strided_slice %46 {offsets = [0, 16], sizes = [8, 8], strides = [1, 1]} : vector<8x32xbf16> to vector<8x8xbf16>
    %88 = vector.extract_strided_slice %48 {offsets = [0, 16], sizes = [8, 8], strides = [1, 1]} : vector<8x32xbf16> to vector<8x8xbf16>
    %89 = vector.extract_strided_slice %50 {offsets = [0, 16], sizes = [8, 8], strides = [1, 1]} : vector<8x32xbf16> to vector<8x8xbf16>
    %cst_56 = arith.constant dense<0.000000e+00> : vector<8x8xf32>
    %90 = tpu.matmul %87, %88, %cst_56 {dimension_numbers = #tpu.dot_dimension_numbers<[1], [1], [0], [0], [0, 0, 1, 0], [], []>} : vector<8x8xbf16>, vector<8x8xbf16>, vector<8x8xf32> -> vector<8x8xf32>
    %cst_57 = arith.constant 0.353553385 : f32
    %91 = vector.broadcast %cst_57 : f32 to vector<8x8xf32>
    %92 = arith.mulf %90, %91 : vector<8x8xf32>
    %cst_58 = arith.constant dense<0xFF800000> : vector<8xf32>
    %93 = vector.multi_reduction <maximumf>, %92, %cst_58 [1] : vector<8x8xf32> to vector<8xf32>
    %94 = vector.shape_cast %93 : vector<8xf32> to vector<8x1xf32>
    %95 = vector.broadcast %94 : vector<8x1xf32> to vector<8x8xf32>
    %96 = arith.subf %92, %95 : vector<8x8xf32>
    %97 = math.exp %96 : vector<8x8xf32>
    %cst_59 = arith.constant dense<0.000000e+00> : vector<8xf32>
    %98 = vector.multi_reduction <add>, %97, %cst_59 [1] : vector<8x8xf32> to vector<8xf32>
    %99 = vector.shape_cast %98 : vector<8xf32> to vector<8x1xf32>
    %100 = tpu.reciprocal %99 {approx = true} : vector<8x1xf32> -> vector<8x1xf32>
    %101 = vector.broadcast %100 : vector<8x1xf32> to vector<8x8xf32>
    %102 = arith.mulf %97, %101 : vector<8x8xf32>
    %103 = arith.truncf %102 : vector<8x8xf32> to vector<8x8xbf16>
    %cst_60 = arith.constant dense<0.000000e+00> : vector<8x8xf32>
    %104 = tpu.matmul %103, %89, %cst_60 {dimension_numbers = #tpu.dot_dimension_numbers<[1], [0], [0], [1], [0, 0, 1, 1], [], []>} : vector<8x8xbf16>, vector<8x8xbf16>, vector<8x8xf32> -> vector<8x8xf32>
    %105 = vector.extract_strided_slice %46 {offsets = [0, 24], sizes = [8, 8], strides = [1, 1]} : vector<8x32xbf16> to vector<8x8xbf16>
    %106 = vector.extract_strided_slice %48 {offsets = [0, 24], sizes = [8, 8], strides = [1, 1]} : vector<8x32xbf16> to vector<8x8xbf16>
    %107 = vector.extract_strided_slice %50 {offsets = [0, 24], sizes = [8, 8], strides = [1, 1]} : vector<8x32xbf16> to vector<8x8xbf16>
    %cst_61 = arith.constant dense<0.000000e+00> : vector<8x8xf32>
    %108 = tpu.matmul %105, %106, %cst_61 {dimension_numbers = #tpu.dot_dimension_numbers<[1], [1], [0], [0], [0, 0, 1, 0], [], []>} : vector<8x8xbf16>, vector<8x8xbf16>, vector<8x8xf32> -> vector<8x8xf32>
    %cst_62 = arith.constant 0.353553385 : f32
    %109 = vector.broadcast %cst_62 : f32 to vector<8x8xf32>
    %110 = arith.mulf %108, %109 : vector<8x8xf32>
    %cst_63 = arith.constant dense<0xFF800000> : vector<8xf32>
    %111 = vector.multi_reduction <maximumf>, %110, %cst_63 [1] : vector<8x8xf32> to vector<8xf32>
    %112 = vector.shape_cast %111 : vector<8xf32> to vector<8x1xf32>
    %113 = vector.broadcast %112 : vector<8x1xf32> to vector<8x8xf32>
    %114 = arith.subf %110, %113 : vector<8x8xf32>
    %115 = math.exp %114 : vector<8x8xf32>
    %cst_64 = arith.constant dense<0.000000e+00> : vector<8xf32>
    %116 = vector.multi_reduction <add>, %115, %cst_64 [1] : vector<8x8xf32> to vector<8xf32>
    %117 = vector.shape_cast %116 : vector<8xf32> to vector<8x1xf32>
    %118 = tpu.reciprocal %117 {approx = true} : vector<8x1xf32> -> vector<8x1xf32>
    %119 = vector.broadcast %118 : vector<8x1xf32> to vector<8x8xf32>
    %120 = arith.mulf %115, %119 : vector<8x8xf32>
    %121 = arith.truncf %120 : vector<8x8xf32> to vector<8x8xbf16>
    %cst_65 = arith.constant dense<0.000000e+00> : vector<8x8xf32>
    %122 = tpu.matmul %121, %107, %cst_65 {dimension_numbers = #tpu.dot_dimension_numbers<[1], [0], [0], [1], [0, 0, 1, 1], [], []>} : vector<8x8xbf16>, vector<8x8xbf16>, vector<8x8xf32> -> vector<8x8xf32>
    %123 = tpu.concatenate %68, %86, %104, %122 in 1 : vector<8x8xf32>, vector<8x8xf32>, vector<8x8xf32>, vector<8x8xf32> -> vector<8x32xf32>
    %124 = arith.truncf %123 : vector<8x32xf32> to vector<8x32xbf16>
    %cst_66 = arith.constant dense<0.000000e+00> : vector<8x32xf32>
    %125 = tpu.matmul %124, %15, %cst_66 {dimension_numbers = #tpu.dot_dimension_numbers<[1], [0], [0], [1], [0, 0, 1, 1], [], []>} : vector<8x32xbf16>, vector<32x32xbf16>, vector<8x32xf32> -> vector<8x32xf32>
    %126 = vector.broadcast %17 : vector<1x32xf32> to vector<8x32xf32>
    %127 = arith.addf %125, %126 : vector<8x32xf32>
    %128 = arith.addf %9, %127 : vector<8x32xf32>
    %cst_67 = arith.constant dense<0.000000e+00> : vector<8xf32>
    %129 = vector.multi_reduction <add>, %128, %cst_67 [1] : vector<8x32xf32> to vector<8xf32>
    %130 = vector.shape_cast %129 : vector<8xf32> to vector<8x1xf32>
    %cst_68 = arith.constant 3.200000e+01 : f32
    %131 = vector.broadcast %cst_68 : f32 to vector<8x1xf32>
    %132 = arith.divf %130, %131 : vector<8x1xf32>
    %133 = vector.broadcast %132 : vector<8x1xf32> to vector<8x32xf32>
    %134 = arith.subf %128, %133 : vector<8x32xf32>
    %135 = arith.mulf %134, %134 : vector<8x32xf32>
    %cst_69 = arith.constant dense<0.000000e+00> : vector<8xf32>
    %136 = vector.multi_reduction <add>, %135, %cst_69 [1] : vector<8x32xf32> to vector<8xf32>
    %137 = vector.shape_cast %136 : vector<8xf32> to vector<8x1xf32>
    %cst_70 = arith.constant 3.200000e+01 : f32
    %138 = vector.broadcast %cst_70 : f32 to vector<8x1xf32>
    %139 = arith.divf %137, %138 : vector<8x1xf32>
    %cst_71 = arith.constant 9.99999974E-6 : f32
    %140 = vector.broadcast %cst_71 : f32 to vector<8x1xf32>
    %141 = arith.addf %139, %140 : vector<8x1xf32>
    %142 = math.rsqrt %141 : vector<8x1xf32>
    %143 = vector.broadcast %142 : vector<8x1xf32> to vector<8x32xf32>
    %144 = arith.mulf %134, %143 : vector<8x32xf32>
    %145 = vector.broadcast %19 : vector<1x32xf32> to vector<8x32xf32>
    %146 = arith.mulf %144, %145 : vector<8x32xf32>
    %147 = vector.broadcast %21 : vector<1x32xf32> to vector<8x32xf32>
    %148 = arith.addf %146, %147 : vector<8x32xf32>
    %149 = arith.truncf %148 : vector<8x32xf32> to vector<8x32xbf16>
    %cst_72 = arith.constant dense<0.000000e+00> : vector<8x512xf32>
    %150 = tpu.matmul %149, %23, %cst_72 {dimension_numbers = #tpu.dot_dimension_numbers<[1], [0], [0], [1], [0, 0, 1, 1], [], []>} : vector<8x32xbf16>, vector<32x512xbf16>, vector<8x512xf32> -> vector<8x512xf32>
    %151 = vector.broadcast %25 : vector<1x512xf32> to vector<8x512xf32>
    %152 = arith.addf %150, %151 : vector<8x512xf32>
    %cst_73 = arith.constant 0.000000e+00 : f32
    %153 = vector.broadcast %cst_73 : f32 to vector<8x512xf32>
    %154 = arith.maximumf %152, %153 : vector<8x512xf32>
    %155 = arith.truncf %154 : vector<8x512xf32> to vector<8x512xbf16>
    %cst_74 = arith.constant dense<0.000000e+00> : vector<8x32xf32>
    %156 = tpu.matmul %155, %27, %cst_74 {dimension_numbers = #tpu.dot_dimension_numbers<[1], [0], [0], [1], [0, 0, 1, 1], [], []>} : vector<8x512xbf16>, vector<512x32xbf16>, vector<8x32xf32> -> vector<8x32xf32>
    %157 = vector.broadcast %29 : vector<1x32xf32> to vector<8x32xf32>
    %158 = arith.addf %156, %157 : vector<8x32xf32>
    %159 = arith.addf %148, %158 : vector<8x32xf32>
    %cst_75 = arith.constant dense<0.000000e+00> : vector<8xf32>
    %160 = vector.multi_reduction <add>, %159, %cst_75 [1] : vector<8x32xf32> to vector<8xf32>
    %161 = vector.shape_cast %160 : vector<8xf32> to vector<8x1xf32>
    %cst_76 = arith.constant 3.200000e+01 : f32
    %162 = vector.broadcast %cst_76 : f32 to vector<8x1xf32>
    %163 = arith.divf %161, %162 : vector<8x1xf32>
    %164 = vector.broadcast %163 : vector<8x1xf32> to vector<8x32xf32>
    %165 = arith.subf %159, %164 : vector<8x32xf32>
    %166 = arith.mulf %165, %165 : vector<8x32xf32>
    %cst_77 = arith.constant dense<0.000000e+00> : vector<8xf32>
    %167 = vector.multi_reduction <add>, %166, %cst_77 [1] : vector<8x32xf32> to vector<8xf32>
    %168 = vector.shape_cast %167 : vector<8xf32> to vector<8x1xf32>
    %cst_78 = arith.constant 3.200000e+01 : f32
    %169 = vector.broadcast %cst_78 : f32 to vector<8x1xf32>
    %170 = arith.divf %168, %169 : vector<8x1xf32>
    %cst_79 = arith.constant 9.99999974E-6 : f32
    %171 = vector.broadcast %cst_79 : f32 to vector<8x1xf32>
    %172 = arith.addf %170, %171 : vector<8x1xf32>
    %173 = math.rsqrt %172 : vector<8x1xf32>
    %174 = vector.broadcast %173 : vector<8x1xf32> to vector<8x32xf32>
    %175 = arith.mulf %165, %174 : vector<8x32xf32>
    %176 = vector.broadcast %31 : vector<1x32xf32> to vector<8x32xf32>
    %177 = arith.mulf %175, %176 : vector<8x32xf32>
    %178 = vector.broadcast %33 : vector<1x32xf32> to vector<8x32xf32>
    %179 = arith.addf %177, %178 : vector<8x32xf32>
    %c1 = arith.constant 1 : index
    %c0_80 = arith.constant 0 : index
    %c0_81 = arith.constant 0 : index
    %180 = vector.load %arg5[%c1, %c0_80, %c0_81] : memref<2x32x96xbf16, #tpu.memory_space<vmem>>, vector<1x32x96xbf16>
    %181 = vector.shape_cast %180 : vector<1x32x96xbf16> to vector<32x96xbf16>
    %c1_82 = arith.constant 1 : index
    %c0_83 = arith.constant 0 : index
    %c0_84 = arith.constant 0 : index
    %182 = vector.load %arg6[%c1_82, %c0_83, %c0_84] : memref<2x1x96xf32, #tpu.memory_space<vmem>>, vector<1x1x96xf32>
    %183 = vector.shape_cast %182 : vector<1x1x96xf32> to vector<1x96xf32>
    %c1_85 = arith.constant 1 : index
    %c0_86 = arith.constant 0 : index
    %c0_87 = arith.constant 0 : index
    %184 = vector.load %arg7[%c1_85, %c0_86, %c0_87] : memref<2x32x32xbf16, #tpu.memory_space<vmem>>, vector<1x32x32xbf16>
    %185 = vector.shape_cast %184 : vector<1x32x32xbf16> to vector<32x32xbf16>
    %c1_88 = arith.constant 1 : index
    %c0_89 = arith.constant 0 : index
    %c0_90 = arith.constant 0 : index
    %186 = vector.load %arg8[%c1_88, %c0_89, %c0_90] : memref<2x1x32xf32, #tpu.memory_space<vmem>>, vector<1x1x32xf32>
    %187 = vector.shape_cast %186 : vector<1x1x32xf32> to vector<1x32xf32>
    %c1_91 = arith.constant 1 : index
    %c0_92 = arith.constant 0 : index
    %c0_93 = arith.constant 0 : index
    %188 = vector.load %arg9[%c1_91, %c0_92, %c0_93] : memref<2x1x32xf32, #tpu.memory_space<vmem>>, vector<1x1x32xf32>
    %189 = vector.shape_cast %188 : vector<1x1x32xf32> to vector<1x32xf32>
    %c1_94 = arith.constant 1 : index
    %c0_95 = arith.constant 0 : index
    %c0_96 = arith.constant 0 : index
    %190 = vector.load %arg10[%c1_94, %c0_95, %c0_96] : memref<2x1x32xf32, #tpu.memory_space<vmem>>, vector<1x1x32xf32>
    %191 = vector.shape_cast %190 : vector<1x1x32xf32> to vector<1x32xf32>
    %c1_97 = arith.constant 1 : index
    %c0_98 = arith.constant 0 : index
    %c0_99 = arith.constant 0 : index
    %192 = vector.load %arg11[%c1_97, %c0_98, %c0_99] : memref<2x32x512xbf16, #tpu.memory_space<vmem>>, vector<1x32x512xbf16>
    %193 = vector.shape_cast %192 : vector<1x32x512xbf16> to vector<32x512xbf16>
    %c1_100 = arith.constant 1 : index
    %c0_101 = arith.constant 0 : index
    %c0_102 = arith.constant 0 : index
    %194 = vector.load %arg12[%c1_100, %c0_101, %c0_102] : memref<2x1x512xf32, #tpu.memory_space<vmem>>, vector<1x1x512xf32>
    %195 = vector.shape_cast %194 : vector<1x1x512xf32> to vector<1x512xf32>
    %c1_103 = arith.constant 1 : index
    %c0_104 = arith.constant 0 : index
    %c0_105 = arith.constant 0 : index
    %196 = vector.load %arg13[%c1_103, %c0_104, %c0_105] : memref<2x512x32xbf16, #tpu.memory_space<vmem>>, vector<1x512x32xbf16>
    %197 = vector.shape_cast %196 : vector<1x512x32xbf16> to vector<512x32xbf16>
    %c1_106 = arith.constant 1 : index
    %c0_107 = arith.constant 0 : index
    %c0_108 = arith.constant 0 : index
    %198 = vector.load %arg14[%c1_106, %c0_107, %c0_108] : memref<2x1x32xf32, #tpu.memory_space<vmem>>, vector<1x1x32xf32>
    %199 = vector.shape_cast %198 : vector<1x1x32xf32> to vector<1x32xf32>
    %c1_109 = arith.constant 1 : index
    %c0_110 = arith.constant 0 : index
    %c0_111 = arith.constant 0 : index
    %200 = vector.load %arg15[%c1_109, %c0_110, %c0_111] : memref<2x1x32xf32, #tpu.memory_space<vmem>>, vector<1x1x32xf32>
    %201 = vector.shape_cast %200 : vector<1x1x32xf32> to vector<1x32xf32>
    %c1_112 = arith.constant 1 : index
    %c0_113 = arith.constant 0 : index
    %c0_114 = arith.constant 0 : index
    %202 = vector.load %arg16[%c1_112, %c0_113, %c0_114] : memref<2x1x32xf32, #tpu.memory_space<vmem>>, vector<1x1x32xf32>
    %203 = vector.shape_cast %202 : vector<1x1x32xf32> to vector<1x32xf32>
    %204 = vector.extract_strided_slice %179 {offsets = [7, 0], sizes = [1, 32], strides = [1, 1]} : vector<8x32xf32> to vector<1x32xf32>
    %205 = arith.truncf %204 : vector<1x32xf32> to vector<1x32xbf16>
    %206 = arith.truncf %179 : vector<8x32xf32> to vector<8x32xbf16>
    %207 = vector.extract_strided_slice %181 {offsets = [0, 0], sizes = [32, 32], strides = [1, 1]} : vector<32x96xbf16> to vector<32x32xbf16>
    %cst_115 = arith.constant dense<0.000000e+00> : vector<1x32xf32>
    %208 = tpu.matmul %205, %207, %cst_115 {dimension_numbers = #tpu.dot_dimension_numbers<[1], [0], [0], [1], [0, 0, 1, 1], [], []>} : vector<1x32xbf16>, vector<32x32xbf16>, vector<1x32xf32> -> vector<1x32xf32>
    %209 = vector.extract_strided_slice %183 {offsets = [0, 0], sizes = [1, 32], strides = [1, 1]} : vector<1x96xf32> to vector<1x32xf32>
    %210 = arith.addf %208, %209 : vector<1x32xf32>
    %211 = vector.extract_strided_slice %181 {offsets = [0, 32], sizes = [32, 64], strides = [1, 1]} : vector<32x96xbf16> to vector<32x64xbf16>
    %cst_116 = arith.constant dense<0.000000e+00> : vector<8x64xf32>
    %212 = tpu.matmul %206, %211, %cst_116 {dimension_numbers = #tpu.dot_dimension_numbers<[1], [0], [0], [1], [0, 0, 1, 1], [], []>} : vector<8x32xbf16>, vector<32x64xbf16>, vector<8x64xf32> -> vector<8x64xf32>
    %213 = vector.extract_strided_slice %183 {offsets = [0, 32], sizes = [1, 64], strides = [1, 1]} : vector<1x96xf32> to vector<1x64xf32>
    %214 = vector.broadcast %213 : vector<1x64xf32> to vector<8x64xf32>
    %215 = arith.addf %212, %214 : vector<8x64xf32>
    %216 = arith.truncf %210 : vector<1x32xf32> to vector<1x32xbf16>
    %217 = vector.extract_strided_slice %215 {offsets = [0, 0], sizes = [8, 32], strides = [1, 1]} : vector<8x64xf32> to vector<8x32xf32>
    %218 = arith.truncf %217 : vector<8x32xf32> to vector<8x32xbf16>
    %219 = vector.extract_strided_slice %215 {offsets = [0, 32], sizes = [8, 32], strides = [1, 1]} : vector<8x64xf32> to vector<8x32xf32>
    %220 = arith.truncf %219 : vector<8x32xf32> to vector<8x32xbf16>
    %221 = vector.extract_strided_slice %216 {offsets = [0, 0], sizes = [1, 8], strides = [1, 1]} : vector<1x32xbf16> to vector<1x8xbf16>
    %222 = vector.extract_strided_slice %218 {offsets = [0, 0], sizes = [8, 8], strides = [1, 1]} : vector<8x32xbf16> to vector<8x8xbf16>
    %223 = vector.extract_strided_slice %220 {offsets = [0, 0], sizes = [8, 8], strides = [1, 1]} : vector<8x32xbf16> to vector<8x8xbf16>
    %cst_117 = arith.constant dense<0.000000e+00> : vector<1x8xf32>
    %224 = tpu.matmul %221, %222, %cst_117 {dimension_numbers = #tpu.dot_dimension_numbers<[1], [1], [0], [0], [0, 0, 1, 0], [], []>} : vector<1x8xbf16>, vector<8x8xbf16>, vector<1x8xf32> -> vector<1x8xf32>
    %cst_118 = arith.constant 0.353553385 : f32
    %225 = vector.broadcast %cst_118 : f32 to vector<1x8xf32>
    %226 = arith.mulf %224, %225 : vector<1x8xf32>
    %cst_119 = arith.constant dense<0xFF800000> : vector<1xf32>
    %227 = vector.multi_reduction <maximumf>, %226, %cst_119 [1] : vector<1x8xf32> to vector<1xf32>
    %228 = vector.shape_cast %227 : vector<1xf32> to vector<1x1xf32>
    %229 = vector.broadcast %228 : vector<1x1xf32> to vector<1x8xf32>
    %230 = arith.subf %226, %229 : vector<1x8xf32>
    %231 = math.exp %230 : vector<1x8xf32>
    %cst_120 = arith.constant dense<0.000000e+00> : vector<1xf32>
    %232 = vector.multi_reduction <add>, %231, %cst_120 [1] : vector<1x8xf32> to vector<1xf32>
    %233 = vector.shape_cast %232 : vector<1xf32> to vector<1x1xf32>
    %234 = tpu.reciprocal %233 {approx = true} : vector<1x1xf32> -> vector<1x1xf32>
    %235 = vector.broadcast %234 : vector<1x1xf32> to vector<1x8xf32>
    %236 = arith.mulf %231, %235 : vector<1x8xf32>
    %237 = arith.truncf %236 : vector<1x8xf32> to vector<1x8xbf16>
    %cst_121 = arith.constant dense<0.000000e+00> : vector<1x8xf32>
    %238 = tpu.matmul %237, %223, %cst_121 {dimension_numbers = #tpu.dot_dimension_numbers<[1], [0], [0], [1], [0, 0, 1, 1], [], []>} : vector<1x8xbf16>, vector<8x8xbf16>, vector<1x8xf32> -> vector<1x8xf32>
    %239 = vector.extract_strided_slice %216 {offsets = [0, 8], sizes = [1, 8], strides = [1, 1]} : vector<1x32xbf16> to vector<1x8xbf16>
    %240 = vector.extract_strided_slice %218 {offsets = [0, 8], sizes = [8, 8], strides = [1, 1]} : vector<8x32xbf16> to vector<8x8xbf16>
    %241 = vector.extract_strided_slice %220 {offsets = [0, 8], sizes = [8, 8], strides = [1, 1]} : vector<8x32xbf16> to vector<8x8xbf16>
    %cst_122 = arith.constant dense<0.000000e+00> : vector<1x8xf32>
    %242 = tpu.matmul %239, %240, %cst_122 {dimension_numbers = #tpu.dot_dimension_numbers<[1], [1], [0], [0], [0, 0, 1, 0], [], []>} : vector<1x8xbf16>, vector<8x8xbf16>, vector<1x8xf32> -> vector<1x8xf32>
    %cst_123 = arith.constant 0.353553385 : f32
    %243 = vector.broadcast %cst_123 : f32 to vector<1x8xf32>
    %244 = arith.mulf %242, %243 : vector<1x8xf32>
    %cst_124 = arith.constant dense<0xFF800000> : vector<1xf32>
    %245 = vector.multi_reduction <maximumf>, %244, %cst_124 [1] : vector<1x8xf32> to vector<1xf32>
    %246 = vector.shape_cast %245 : vector<1xf32> to vector<1x1xf32>
    %247 = vector.broadcast %246 : vector<1x1xf32> to vector<1x8xf32>
    %248 = arith.subf %244, %247 : vector<1x8xf32>
    %249 = math.exp %248 : vector<1x8xf32>
    %cst_125 = arith.constant dense<0.000000e+00> : vector<1xf32>
    %250 = vector.multi_reduction <add>, %249, %cst_125 [1] : vector<1x8xf32> to vector<1xf32>
    %251 = vector.shape_cast %250 : vector<1xf32> to vector<1x1xf32>
    %252 = tpu.reciprocal %251 {approx = true} : vector<1x1xf32> -> vector<1x1xf32>
    %253 = vector.broadcast %252 : vector<1x1xf32> to vector<1x8xf32>
    %254 = arith.mulf %249, %253 : vector<1x8xf32>
    %255 = arith.truncf %254 : vector<1x8xf32> to vector<1x8xbf16>
    %cst_126 = arith.constant dense<0.000000e+00> : vector<1x8xf32>
    %256 = tpu.matmul %255, %241, %cst_126 {dimension_numbers = #tpu.dot_dimension_numbers<[1], [0], [0], [1], [0, 0, 1, 1], [], []>} : vector<1x8xbf16>, vector<8x8xbf16>, vector<1x8xf32> -> vector<1x8xf32>
    %257 = vector.extract_strided_slice %216 {offsets = [0, 16], sizes = [1, 8], strides = [1, 1]} : vector<1x32xbf16> to vector<1x8xbf16>
    %258 = vector.extract_strided_slice %218 {offsets = [0, 16], sizes = [8, 8], strides = [1, 1]} : vector<8x32xbf16> to vector<8x8xbf16>
    %259 = vector.extract_strided_slice %220 {offsets = [0, 16], sizes = [8, 8], strides = [1, 1]} : vector<8x32xbf16> to vector<8x8xbf16>
    %cst_127 = arith.constant dense<0.000000e+00> : vector<1x8xf32>
    %260 = tpu.matmul %257, %258, %cst_127 {dimension_numbers = #tpu.dot_dimension_numbers<[1], [1], [0], [0], [0, 0, 1, 0], [], []>} : vector<1x8xbf16>, vector<8x8xbf16>, vector<1x8xf32> -> vector<1x8xf32>
    %cst_128 = arith.constant 0.353553385 : f32
    %261 = vector.broadcast %cst_128 : f32 to vector<1x8xf32>
    %262 = arith.mulf %260, %261 : vector<1x8xf32>
    %cst_129 = arith.constant dense<0xFF800000> : vector<1xf32>
    %263 = vector.multi_reduction <maximumf>, %262, %cst_129 [1] : vector<1x8xf32> to vector<1xf32>
    %264 = vector.shape_cast %263 : vector<1xf32> to vector<1x1xf32>
    %265 = vector.broadcast %264 : vector<1x1xf32> to vector<1x8xf32>
    %266 = arith.subf %262, %265 : vector<1x8xf32>
    %267 = math.exp %266 : vector<1x8xf32>
    %cst_130 = arith.constant dense<0.000000e+00> : vector<1xf32>
    %268 = vector.multi_reduction <add>, %267, %cst_130 [1] : vector<1x8xf32> to vector<1xf32>
    %269 = vector.shape_cast %268 : vector<1xf32> to vector<1x1xf32>
    %270 = tpu.reciprocal %269 {approx = true} : vector<1x1xf32> -> vector<1x1xf32>
    %271 = vector.broadcast %270 : vector<1x1xf32> to vector<1x8xf32>
    %272 = arith.mulf %267, %271 : vector<1x8xf32>
    %273 = arith.truncf %272 : vector<1x8xf32> to vector<1x8xbf16>
    %cst_131 = arith.constant dense<0.000000e+00> : vector<1x8xf32>
    %274 = tpu.matmul %273, %259, %cst_131 {dimension_numbers = #tpu.dot_dimension_numbers<[1], [0], [0], [1], [0, 0, 1, 1], [], []>} : vector<1x8xbf16>, vector<8x8xbf16>, vector<1x8xf32> -> vector<1x8xf32>
    %275 = vector.extract_strided_slice %216 {offsets = [0, 24], sizes = [1, 8], strides = [1, 1]} : vector<1x32xbf16> to vector<1x8xbf16>
    %276 = vector.extract_strided_slice %218 {offsets = [0, 24], sizes = [8, 8], strides = [1, 1]} : vector<8x32xbf16> to vector<8x8xbf16>
    %277 = vector.extract_strided_slice %220 {offsets = [0, 24], sizes = [8, 8], strides = [1, 1]} : vector<8x32xbf16> to vector<8x8xbf16>
    %cst_132 = arith.constant dense<0.000000e+00> : vector<1x8xf32>
    %278 = tpu.matmul %275, %276, %cst_132 {dimension_numbers = #tpu.dot_dimension_numbers<[1], [1], [0], [0], [0, 0, 1, 0], [], []>} : vector<1x8xbf16>, vector<8x8xbf16>, vector<1x8xf32> -> vector<1x8xf32>
    %cst_133 = arith.constant 0.353553385 : f32
    %279 = vector.broadcast %cst_133 : f32 to vector<1x8xf32>
    %280 = arith.mulf %278, %279 : vector<1x8xf32>
    %cst_134 = arith.constant dense<0xFF800000> : vector<1xf32>
    %281 = vector.multi_reduction <maximumf>, %280, %cst_134 [1] : vector<1x8xf32> to vector<1xf32>
    %282 = vector.shape_cast %281 : vector<1xf32> to vector<1x1xf32>
    %283 = vector.broadcast %282 : vector<1x1xf32> to vector<1x8xf32>
    %284 = arith.subf %280, %283 : vector<1x8xf32>
    %285 = math.exp %284 : vector<1x8xf32>
    %cst_135 = arith.constant dense<0.000000e+00> : vector<1xf32>
    %286 = vector.multi_reduction <add>, %285, %cst_135 [1] : vector<1x8xf32> to vector<1xf32>
    %287 = vector.shape_cast %286 : vector<1xf32> to vector<1x1xf32>
    %288 = tpu.reciprocal %287 {approx = true} : vector<1x1xf32> -> vector<1x1xf32>
    %289 = vector.broadcast %288 : vector<1x1xf32> to vector<1x8xf32>
    %290 = arith.mulf %285, %289 : vector<1x8xf32>
    %291 = arith.truncf %290 : vector<1x8xf32> to vector<1x8xbf16>
    %cst_136 = arith.constant dense<0.000000e+00> : vector<1x8xf32>
    %292 = tpu.matmul %291, %277, %cst_136 {dimension_numbers = #tpu.dot_dimension_numbers<[1], [0], [0], [1], [0, 0, 1, 1], [], []>} : vector<1x8xbf16>, vector<8x8xbf16>, vector<1x8xf32> -> vector<1x8xf32>
    %293 = tpu.concatenate %238, %256, %274, %292 in 1 : vector<1x8xf32>, vector<1x8xf32>, vector<1x8xf32>, vector<1x8xf32> -> vector<1x32xf32>
    %294 = arith.truncf %293 : vector<1x32xf32> to vector<1x32xbf16>
    %cst_137 = arith.constant dense<0.000000e+00> : vector<1x32xf32>
    %295 = tpu.matmul %294, %185, %cst_137 {dimension_numbers = #tpu.dot_dimension_numbers<[1], [0], [0], [1], [0, 0, 1, 1], [], []>} : vector<1x32xbf16>, vector<32x32xbf16>, vector<1x32xf32> -> vector<1x32xf32>
    %296 = arith.addf %295, %187 : vector<1x32xf32>
    %297 = arith.addf %204, %296 : vector<1x32xf32>
    %cst_138 = arith.constant dense<0.000000e+00> : vector<1xf32>
    %298 = vector.multi_reduction <add>, %297, %cst_138 [1] : vector<1x32xf32> to vector<1xf32>
    %299 = vector.shape_cast %298 : vector<1xf32> to vector<1x1xf32>
    %cst_139 = arith.constant 3.200000e+01 : f32
    %300 = vector.broadcast %cst_139 : f32 to vector<1x1xf32>
    %301 = arith.divf %299, %300 : vector<1x1xf32>
    %302 = vector.broadcast %301 : vector<1x1xf32> to vector<1x32xf32>
    %303 = arith.subf %297, %302 : vector<1x32xf32>
    %304 = arith.mulf %303, %303 : vector<1x32xf32>
    %cst_140 = arith.constant dense<0.000000e+00> : vector<1xf32>
    %305 = vector.multi_reduction <add>, %304, %cst_140 [1] : vector<1x32xf32> to vector<1xf32>
    %306 = vector.shape_cast %305 : vector<1xf32> to vector<1x1xf32>
    %cst_141 = arith.constant 3.200000e+01 : f32
    %307 = vector.broadcast %cst_141 : f32 to vector<1x1xf32>
    %308 = arith.divf %306, %307 : vector<1x1xf32>
    %cst_142 = arith.constant 9.99999974E-6 : f32
    %309 = vector.broadcast %cst_142 : f32 to vector<1x1xf32>
    %310 = arith.addf %308, %309 : vector<1x1xf32>
    %311 = math.rsqrt %310 : vector<1x1xf32>
    %312 = vector.broadcast %311 : vector<1x1xf32> to vector<1x32xf32>
    %313 = arith.mulf %303, %312 : vector<1x32xf32>
    %314 = arith.mulf %313, %189 : vector<1x32xf32>
    %315 = arith.addf %314, %191 : vector<1x32xf32>
    %316 = arith.truncf %315 : vector<1x32xf32> to vector<1x32xbf16>
    %cst_143 = arith.constant dense<0.000000e+00> : vector<1x512xf32>
    %317 = tpu.matmul %316, %193, %cst_143 {dimension_numbers = #tpu.dot_dimension_numbers<[1], [0], [0], [1], [0, 0, 1, 1], [], []>} : vector<1x32xbf16>, vector<32x512xbf16>, vector<1x512xf32> -> vector<1x512xf32>
    %318 = arith.addf %317, %195 : vector<1x512xf32>
    %cst_144 = arith.constant 0.000000e+00 : f32
    %319 = vector.broadcast %cst_144 : f32 to vector<1x512xf32>
    %320 = arith.maximumf %318, %319 : vector<1x512xf32>
    %321 = arith.truncf %320 : vector<1x512xf32> to vector<1x512xbf16>
    %cst_145 = arith.constant dense<0.000000e+00> : vector<1x32xf32>
    %322 = tpu.matmul %321, %197, %cst_145 {dimension_numbers = #tpu.dot_dimension_numbers<[1], [0], [0], [1], [0, 0, 1, 1], [], []>} : vector<1x512xbf16>, vector<512x32xbf16>, vector<1x32xf32> -> vector<1x32xf32>
    %323 = arith.addf %322, %199 : vector<1x32xf32>
    %324 = arith.addf %315, %323 : vector<1x32xf32>
    %cst_146 = arith.constant dense<0.000000e+00> : vector<1xf32>
    %325 = vector.multi_reduction <add>, %324, %cst_146 [1] : vector<1x32xf32> to vector<1xf32>
    %326 = vector.shape_cast %325 : vector<1xf32> to vector<1x1xf32>
    %cst_147 = arith.constant 3.200000e+01 : f32
    %327 = vector.broadcast %cst_147 : f32 to vector<1x1xf32>
    %328 = arith.divf %326, %327 : vector<1x1xf32>
    %329 = vector.broadcast %328 : vector<1x1xf32> to vector<1x32xf32>
    %330 = arith.subf %324, %329 : vector<1x32xf32>
    %331 = arith.mulf %330, %330 : vector<1x32xf32>
    %cst_148 = arith.constant dense<0.000000e+00> : vector<1xf32>
    %332 = vector.multi_reduction <add>, %331, %cst_148 [1] : vector<1x32xf32> to vector<1xf32>
    %333 = vector.shape_cast %332 : vector<1xf32> to vector<1x1xf32>
    %cst_149 = arith.constant 3.200000e+01 : f32
    %334 = vector.broadcast %cst_149 : f32 to vector<1x1xf32>
    %335 = arith.divf %333, %334 : vector<1x1xf32>
    %cst_150 = arith.constant 9.99999974E-6 : f32
    %336 = vector.broadcast %cst_150 : f32 to vector<1x1xf32>
    %337 = arith.addf %335, %336 : vector<1x1xf32>
    %338 = math.rsqrt %337 : vector<1x1xf32>
    %339 = vector.broadcast %338 : vector<1x1xf32> to vector<1x32xf32>
    %340 = arith.mulf %330, %339 : vector<1x32xf32>
    %341 = arith.mulf %340, %201 : vector<1x32xf32>
    %342 = arith.addf %341, %203 : vector<1x32xf32>
    %343 = arith.truncf %342 : vector<1x32xf32> to vector<1x32xbf16>
    %c0_151 = arith.constant 0 : index
    %c0_152 = arith.constant 0 : index
    %344 = vector.load %arg17[%c0_151, %c0_152] : memref<32x8xbf16, #tpu.memory_space<vmem>>, vector<32x8xbf16>
    %cst_153 = arith.constant dense<0.000000e+00> : vector<1x8xf32>
    %345 = tpu.matmul %343, %344, %cst_153 {dimension_numbers = #tpu.dot_dimension_numbers<[1], [0], [0], [1], [0, 0, 1, 1], [], []>} : vector<1x32xbf16>, vector<32x8xbf16>, vector<1x8xf32> -> vector<1x8xf32>
    %c0_154 = arith.constant 0 : index
    %c0_155 = arith.constant 0 : index
    %346 = vector.load %arg18[%c0_154, %c0_155] : memref<1x8xf32, #tpu.memory_space<vmem>>, vector<1x8xf32>
    %347 = arith.addf %345, %346 : vector<1x8xf32>
    %c0_156 = arith.constant 0 : index
    %c0_157 = arith.constant 0 : index
    %c0_158 = arith.constant 0 : index
    %348 = vector.load %arg19[%c0_156, %c0_157, %c0_158] : memref<1x1x8xf32, #tpu.memory_space<vmem>>, vector<1x1x8xf32>
    %349 = vector.shape_cast %348 : vector<1x1x8xf32> to vector<1x8xf32>
    %350 = vector.shape_cast %347 : vector<1x8xf32> to vector<1x1x8xf32>
    tpu.vector_store %arg19[%c0_156, %c0_157, %c0_158], %350 {strides = array<i32>} : memref<1x1x8xf32, #tpu.memory_space<vmem>>, vector<1x1x8xf32>,
    return
  }
  func.func @transform_0(%arg0: i32) -> (i32, i32, i32) {
    %c0_i32 = arith.constant 0 : i32
    %c0_i32_0 = arith.constant 0 : i32
    %c0_i32_1 = arith.constant 0 : i32
    return %arg0, %c0_i32, %c0_i32_0 : i32, i32, i32
  }
  func.func @transform_1(%arg0: i32) -> (i32, i32) {
    %c0_i32 = arith.constant 0 : i32
    %c0_i32_0 = arith.constant 0 : i32
    %c0_i32_1 = arith.constant 0 : i32
    return %c0_i32, %c0_i32_0 : i32, i32
  }
  func.func @transform_2(%arg0: i32) -> (i32, i32) {
    %c0_i32 = arith.constant 0 : i32
    %c0_i32_0 = arith.constant 0 : i32
    %c0_i32_1 = arith.constant 0 : i32
    return %c0_i32, %c0_i32_0 : i32, i32
  }
  func.func @transform_3(%arg0: i32) -> (i32, i32) {
    %c0_i32 = arith.constant 0 : i32
    %c0_i32_0 = arith.constant 0 : i32
    %c0_i32_1 = arith.constant 0 : i32
    return %c0_i32, %c0_i32_0 : i32, i32
  }
  func.func @transform_4(%arg0: i32) -> (i32, i32, i32) {
    %c0_i32 = arith.constant 0 : i32
    %c0_i32_0 = arith.constant 0 : i32
    %c0_i32_1 = arith.constant 0 : i32
    %c0_i32_2 = arith.constant 0 : i32
    return %c0_i32, %c0_i32_0, %c0_i32_1 : i32, i32, i32
  }
  func.func @transform_5(%arg0: i32) -> (i32, i32, i32) {
    %c0_i32 = arith.constant 0 : i32
    %c0_i32_0 = arith.constant 0 : i32
    %c0_i32_1 = arith.constant 0 : i32
    %c0_i32_2 = arith.constant 0 : i32
    return %c0_i32, %c0_i32_0, %c0_i32_1 : i32, i32, i32
  }
  func.func @transform_6(%arg0: i32) -> (i32, i32, i32) {
    %c0_i32 = arith.constant 0 : i32
    %c0_i32_0 = arith.constant 0 : i32
    %c0_i32_1 = arith.constant 0 : i32
    %c0_i32_2 = arith.constant 0 : i32
    return %c0_i32, %c0_i32_0, %c0_i32_1 : i32, i32, i32
  }
  func.func @transform_7(%arg0: i32) -> (i32, i32, i32) {
    %c0_i32 = arith.constant 0 : i32
    %c0_i32_0 = arith.constant 0 : i32
    %c0_i32_1 = arith.constant 0 : i32
    %c0_i32_2 = arith.constant 0 : i32
    return %c0_i32, %c0_i32_0, %c0_i32_1 : i32, i32, i32
  }
  func.func @transform_8(%arg0: i32) -> (i32, i32, i32) {
    %c0_i32 = arith.constant 0 : i32
    %c0_i32_0 = arith.constant 0 : i32
    %c0_i32_1 = arith.constant 0 : i32
    %c0_i32_2 = arith.constant 0 : i32
    return %c0_i32, %c0_i32_0, %c0_i32_1 : i32, i32, i32
  }
  func.func @transform_9(%arg0: i32) -> (i32, i32, i32) {
    %c0_i32 = arith.constant 0 : i32
    %c0_i32_0 = arith.constant 0 : i32
    %c0_i32_1 = arith.constant 0 : i32
    %c0_i32_2 = arith.constant 0 : i32
    return %c0_i32, %c0_i32_0, %c0_i32_1 : i32, i32, i32
  }
  func.func @transform_10(%arg0: i32) -> (i32, i32, i32) {
    %c0_i32 = arith.constant 0 : i32
    %c0_i32_0 = arith.constant 0 : i32
    %c0_i32_1 = arith.constant 0 : i32
    %c0_i32_2 = arith.constant 0 : i32
    return %c0_i32, %c0_i32_0, %c0_i32_1 : i32, i32, i32
  }
  func.func @transform_11(%arg0: i32) -> (i32, i32, i32) {
    %c0_i32 = arith.constant 0 : i32
    %c0_i32_0 = arith.constant 0 : i32
    %c0_i32_1 = arith.constant 0 : i32
    %c0_i32_2 = arith.constant 0 : i32
    return %c0_i32, %c0_i32_0, %c0_i32_1 : i32, i32, i32
  }
  func.func @transform_12(%arg0: i32) -> (i32, i32, i32) {
    %c0_i32 = arith.constant 0 : i32
    %c0_i32_0 = arith.constant 0 : i32
    %c0_i32_1 = arith.constant 0 : i32
    %c0_i32_2 = arith.constant 0 : i32
    return %c0_i32, %c0_i32_0, %c0_i32_1 : i32, i32, i32
  }
  func.func @transform_13(%arg0: i32) -> (i32, i32, i32) {
    %c0_i32 = arith.constant 0 : i32
    %c0_i32_0 = arith.constant 0 : i32
    %c0_i32_1 = arith.constant 0 : i32
    %c0_i32_2 = arith.constant 0 : i32
    return %c0_i32, %c0_i32_0, %c0_i32_1 : i32, i32, i32
  }
  func.func @transform_14(%arg0: i32) -> (i32, i32, i32) {
    %c0_i32 = arith.constant 0 : i32
    %c0_i32_0 = arith.constant 0 : i32
    %c0_i32_1 = arith.constant 0 : i32
    %c0_i32_2 = arith.constant 0 : i32
    return %c0_i32, %c0_i32_0, %c0_i32_1 : i32, i32, i32
  }
  func.func @transform_15(%arg0: i32) -> (i32, i32, i32) {
    %c0_i32 = arith.constant 0 : i32
    %c0_i32_0 = arith.constant 0 : i32
    %c0_i32_1 = arith.constant 0 : i32
    %c0_i32_2 = arith.constant 0 : i32
    return %c0_i32, %c0_i32_0, %c0_i32_1 : i32, i32, i32
  }
  func.func @transform_16(%arg0: i32) -> (i32, i32) {
    %c0_i32 = arith.constant 0 : i32
    %c0_i32_0 = arith.constant 0 : i32
    %c0_i32_1 = arith.constant 0 : i32
    return %c0_i32, %c0_i32_0 : i32, i32
  }
  func.func @transform_17(%arg0: i32) -> (i32, i32) {
    %c0_i32 = arith.constant 0 : i32
    %c0_i32_0 = arith.constant 0 : i32
    %c0_i32_1 = arith.constant 0 : i32
    return %c0_i32, %c0_i32_0 : i32, i32
  }
  func.func @transform_18(%arg0: i32) -> (i32, i32, i32) {
    %c0_i32 = arith.constant 0 : i32
    %c0_i32_0 = arith.constant 0 : i32
    %c0_i32_1 = arith.constant 0 : i32
    return %arg0, %c0_i32, %c0_i32_0 : i32, i32, i32
  }
}

</mosaic_0001>

<llo_original>
// kernel: transformer_forward.1
$region0: #{transformer_forward.1}
  #allocation0 [shape = 'u32[]', space=smem, size = 0x4, offset = 0x4, fixed_abs, tag = 'smem constant byte address 0x4 - core index']
  #allocation1 [shape = 'u32[144,128]{1,0:T(1,128)}', space=vmem, size = 0x12000, scoped, tag = 'internal scratch']
  %s0 = inlined_call_operand.vmem [shape: f32[2,8,16], index: 0, kind: input, shape index: {}]
  %s1 = inlined_call_operand.vmem [shape: f32[8,32], index: 1, kind: input, shape index: {}]
  %s2 = inlined_call_operand.vmem [shape: bf16[16,32], index: 2, kind: input, shape index: {}]
  %s3 = inlined_call_operand.vmem [shape: f32[1,32], index: 3, kind: input, shape index: {}]
  %s4 = inlined_call_operand.vmem [shape: bf16[2,32,96], index: 4, kind: input, shape index: {}]
  %s5 = inlined_call_operand.vmem [shape: f32[2,1,96], index: 5, kind: input, shape index: {}]
  %s6 = inlined_call_operand.vmem [shape: bf16[2,32,32], index: 6, kind: input, shape index: {}]
  %s7 = inlined_call_operand.vmem [shape: f32[2,1,32], index: 7, kind: input, shape index: {}]
  %s8 = inlined_call_operand.vmem [shape: f32[2,1,32], index: 8, kind: input, shape index: {}]
  %s9 = inlined_call_operand.vmem [shape: f32[2,1,32], index: 9, kind: input, shape index: {}]
  %s10 = inlined_call_operand.vmem [shape: bf16[2,32,512], index: 10, kind: input, shape index: {}]
  %s11 = inlined_call_operand.vmem [shape: f32[2,1,512], index: 11, kind: input, shape index: {}]
  %s12 = inlined_call_operand.vmem [shape: bf16[2,512,32], index: 12, kind: input, shape index: {}]
  %s13 = inlined_call_operand.vmem [shape: f32[2,1,32], index: 13, kind: input, shape index: {}]
  %s14 = inlined_call_operand.vmem [shape: f32[2,1,32], index: 14, kind: input, shape index: {}]
  %s15 = inlined_call_operand.vmem [shape: f32[2,1,32], index: 15, kind: input, shape index: {}]
  %s16 = inlined_call_operand.vmem [shape: bf16[32,8], index: 16, kind: input, shape index: {}]
  %s17 = inlined_call_operand.vmem [shape: f32[1,8], index: 17, kind: input, shape index: {}]
  %s18 = inlined_call_operand.hbm [shape: f32[2,1,8], index: 18, kind: output, shape index: {}]
  %s19 = sld [smem:[#allocation0]]
  $region105: #{transformer_forward.1} parent=0
    _
  %s21 = ssub.s32 1, %s19
  %s22 = scalar_select 0, %s21, %s19
  $region1: #{transformer_forward.1} parent=0
    #allocation2 [shape = 'u8[1024]{0}', space=vmem, size = 0x400, scoped, tag = 'output window, operand 0']
    #allocation3 [shape = 's32[2]{0}', space=sflag, size = 0x8, scoped, tag = 'scoped memory for transformer_forward.1']
    %23 = vsyncpa [#allocation3], 0
    %s24 = scalar_lea.sflag [#allocation3], 1
    %25 = vsyncpa %s24, 0
    loop: start=0, step=1, limit=4
    $region2: #{transformer_forward.1} parent=1 // loop_pre_header
      _
    $region3: #{transformer_forward.1} parent=1 // loop_header
      %s27 = sphi 0, %s31
      %p28 = scmp.ge.s32.totalorder %s27, 4
      %s37 = sphi 0, %s39
      %s40 = sphi 0, %s37
      %s41 = sphi 0, %s40
      %s57 = sphi 0, %s41
      %s61 = sphi 0, %s61
      %s63 = sphi 0, %s61
      %s64 = sphi 0, %s63
      %s78 = sphi 0, %s64
      %s82 = sphi 0, %s82
      %s84 = sphi 0, %s82
      %s85 = sphi 0, %s84
      %s99 = sphi 0, %s85
      %s103 = sphi 0, %s103
      %s105 = sphi 0, %s103
      %s106 = sphi 0, %s105
      %s120 = sphi 0, %s106
      %s124 = sphi 0, %s124
      %s126 = sphi 0, %s124
      %s127 = sphi 0, %s126
      %s141 = sphi 0, %s127
      %s145 = sphi 0, %s145
      %s147 = sphi 0, %s145
      %s148 = sphi 0, %s147
      %s162 = sphi 0, %s148
      %s166 = sphi 0, %s166
      %s168 = sphi 0, %s166
      %s169 = sphi 0, %s168
      %s183 = sphi 0, %s169
      %s187 = sphi 0, %s187
      %s189 = sphi 0, %s187
      %s190 = sphi 0, %s189
      %s204 = sphi 0, %s190
      %s208 = sphi 0, %s208
      %s210 = sphi 0, %s208
      %s211 = sphi 0, %s210
      %s225 = sphi 0, %s211
      %s229 = sphi 0, %s229
      %s231 = sphi 0, %s229
      %s232 = sphi 0, %s231
      %s246 = sphi 0, %s232
      %s250 = sphi 0, %s250
      %s252 = sphi 0, %s250
      %s253 = sphi 0, %s252
      %s267 = sphi 0, %s253
      %s271 = sphi 0, %s271
      %s273 = sphi 0, %s271
      %s274 = sphi 0, %s273
      %s288 = sphi 0, %s274
      %s292 = sphi 0, %s292
      %s294 = sphi 0, %s292
      %s295 = sphi 0, %s294
      %s309 = sphi 0, %s295
      %s313 = sphi 0, %s313
      %s315 = sphi 0, %s313
      %s316 = sphi 0, %s315
      %s330 = sphi 0, %s316
      %s334 = sphi 0, %s334
      %s336 = sphi 0, %s334
      %s337 = sphi 0, %s336
      %s351 = sphi 0, %s337
      %s355 = sphi 0, %s355
      %s357 = sphi 0, %s355
      %s358 = sphi 0, %s357
      %s372 = sphi 0, %s358
      %s376 = sphi 0, %s376
      %s378 = sphi 0, %s376
      %s379 = sphi 0, %s378
      %s393 = sphi 0, %s379
      %s397 = sphi 0, %s397
      %s399 = sphi 0, %s397
      %s400 = sphi 0, %s399
      %s414 = sphi 0, %s400
      %s420 = sphi 0, %s422
      %s423 = sphi 0, %s420
      %s424 = sphi 0, %s423
      %s440 = sphi 0, %s424
    $region4: #{transformer_forward.1} parent=1 // loop_header_branch
      %30 = sbr.rel (%p28) target = $region8
    $region5: #{transformer_forward.1} parent=1 // loop_body
      %s32 = ssub.s32 %s27, 1
      %s33 = ssub.s32 %s27, 2
      %s34 = sadd.s32 %s27, 1
      %s35 = ssub.s32 %s27, %s34
      %p36 = scmp.eq.s32.totalorder %s35, 0
      %s38 = sadd.s32 %s37, 1
      %s39 = scalar_select %p36, %s37, %s38
      %p42 = pneg %p36
      %p43 = scmp.eq.s32.totalorder %s27, 1
      %p44 = por %p42, %p43
      %p45 = scmp.ne.s32.totalorder %s37, %s40
      %p46 = scmp.eq.s32.totalorder %s27, 0
      %p47 = por %p45, %p46
      %p48 = scmp.ne.s32.totalorder %s37, %s40
      %p49 = scmp.eq.s32.totalorder %s32, 1
      %p50 = por %p48, %p49
      %p51 = scmp.ne.s32.totalorder %s40, %s41
      %p52 = scmp.eq.s32.totalorder %s32, 0
      %p53 = por %p51, %p52
      %p54 = scmp.ne.s32.totalorder %s40, %s41
      %p55 = scmp.eq.s32.totalorder %s33, 1
      %p56 = por %p54, %p55
      %p58 = scmp.ne.s32.totalorder %s41, %s57
      %p59 = scmp.eq.s32.totalorder %s33, 0
      %p60 = por %p58, %p59
      %s62 = sadd.s32 %s61, 1
      %p65 = scmp.eq.s32.totalorder %s27, 1
      %p66 = scmp.ne.s32.totalorder %s61, %s63
      %p67 = scmp.eq.s32.totalorder %s27, 0
      %p68 = por %p66, %p67
      %p69 = scmp.ne.s32.totalorder %s61, %s63
      %p70 = scmp.eq.s32.totalorder %s32, 1
      %p71 = por %p69, %p70
      %p72 = scmp.ne.s32.totalorder %s63, %s64
      %p73 = scmp.eq.s32.totalorder %s32, 0
      %p74 = por %p72, %p73
      %p75 = scmp.ne.s32.totalorder %s63, %s64
      %p76 = scmp.eq.s32.totalorder %s33, 1
      %p77 = por %p75, %p76
      %p79 = scmp.ne.s32.totalorder %s64, %s78
      %p80 = scmp.eq.s32.totalorder %s33, 0
      %p81 = por %p79, %p80
      %s83 = sadd.s32 %s82, 1
      %p86 = scmp.eq.s32.totalorder %s27, 1
      %p87 = scmp.ne.s32.totalorder %s82, %s84
      %p88 = scmp.eq.s32.totalorder %s27, 0
      %p89 = por %p87, %p88
      %p90 = scmp.ne.s32.totalorder %s82, %s84
      %p91 = scmp.eq.s32.totalorder %s32, 1
      %p92 = por %p90, %p91
      %p93 = scmp.ne.s32.totalorder %s84, %s85
      %p94 = scmp.eq.s32.totalorder %s32, 0
      %p95 = por %p93, %p94
      %p96 = scmp.ne.s32.totalorder %s84, %s85
      %p97 = scmp.eq.s32.totalorder %s33, 1
      %p98 = por %p96, %p97
      %p100 = scmp.ne.s32.totalorder %s85, %s99
      %p101 = scmp.eq.s32.totalorder %s33, 0
      %p102 = por %p100, %p101
      %s104 = sadd.s32 %s103, 1
      %p107 = scmp.eq.s32.totalorder %s27, 1
      %p108 = scmp.ne.s32.totalorder %s103, %s105
      %p109 = scmp.eq.s32.totalorder %s27, 0
      %p110 = por %p108, %p109
      %p111 = scmp.ne.s32.totalorder %s103, %s105
      %p112 = scmp.eq.s32.totalorder %s32, 1
      %p113 = por %p111, %p112
      %p114 = scmp.ne.s32.totalorder %s105, %s106
      %p115 = scmp.eq.s32.totalorder %s32, 0
      %p116 = por %p114, %p115
      %p117 = scmp.ne.s32.totalorder %s105, %s106
      %p118 = scmp.eq.s32.totalorder %s33, 1
      %p119 = por %p117, %p118
      %p121 = scmp.ne.s32.totalorder %s106, %s120
      %p122 = scmp.eq.s32.totalorder %s33, 0
      %p123 = por %p121, %p122
      %s125 = sadd.s32 %s124, 1
      %p128 = scmp.eq.s32.totalorder %s27, 1
      %p129 = scmp.ne.s32.totalorder %s124, %s126
      %p130 = scmp.eq.s32.totalorder %s27, 0
      %p131 = por %p129, %p130
      %p132 = scmp.ne.s32.totalorder %s124, %s126
      %p133 = scmp.eq.s32.totalorder %s32, 1
      %p134 = por %p132, %p133
      %p135 = scmp.ne.s32.totalorder %s126, %s127
      %p136 = scmp.eq.s32.totalorder %s32, 0
      %p137 = por %p135, %p136
      %p138 = scmp.ne.s32.totalorder %s126, %s127
      %p139 = scmp.eq.s32.totalorder %s33, 1
      %p140 = por %p138, %p139
      %p142 = scmp.ne.s32.totalorder %s127, %s141
      %p143 = scmp.eq.s32.totalorder %s33, 0
      %p144 = por %p142, %p143
      %s146 = sadd.s32 %s145, 1
      %p149 = scmp.eq.s32.totalorder %s27, 1
      %p150 = scmp.ne.s32.totalorder %s145, %s147
      %p151 = scmp.eq.s32.totalorder %s27, 0
      %p152 = por %p150, %p151
      %p153 = scmp.ne.s32.totalorder %s145, %s147
      %p154 = scmp.eq.s32.totalorder %s32, 1
      %p155 = por %p153, %p154
      %p156 = scmp.ne.s32.totalorder %s147, %s148
      %p157 = scmp.eq.s32.totalorder %s32, 0
      %p158 = por %p156, %p157
      %p159 = scmp.ne.s32.totalorder %s147, %s148
      %p160 = scmp.eq.s32.totalorder %s33, 1
      %p161 = por %p159, %p160
      %p163 = scmp.ne.s32.totalorder %s148, %s162
      %p164 = scmp.eq.s32.totalorder %s33, 0
      %p165 = por %p163, %p164
      %s167 = sadd.s32 %s166, 1
      %p170 = scmp.eq.s32.totalorder %s27, 1
      %p171 = scmp.ne.s32.totalorder %s166, %s168
      %p172 = scmp.eq.s32.totalorder %s27, 0
      %p173 = por %p171, %p172
      %p174 = scmp.ne.s32.totalorder %s166, %s168
      %p175 = scmp.eq.s32.totalorder %s32, 1
      %p176 = por %p174, %p175
      %p177 = scmp.ne.s32.totalorder %s168, %s169
      %p178 = scmp.eq.s32.totalorder %s32, 0
      %p179 = por %p177, %p178
      %p180 = scmp.ne.s32.totalorder %s168, %s169
      %p181 = scmp.eq.s32.totalorder %s33, 1
      %p182 = por %p180, %p181
      %p184 = scmp.ne.s32.totalorder %s169, %s183
      %p185 = scmp.eq.s32.totalorder %s33, 0
      %p186 = por %p184, %p185
      %s188 = sadd.s32 %s187, 1
      %p191 = scmp.eq.s32.totalorder %s27, 1
      %p192 = scmp.ne.s32.totalorder %s187, %s189
      %p193 = scmp.eq.s32.totalorder %s27, 0
      %p194 = por %p192, %p193
      %p195 = scmp.ne.s32.totalorder %s187, %s189
      %p196 = scmp.eq.s32.totalorder %s32, 1
      %p197 = por %p195, %p196
      %p198 = scmp.ne.s32.totalorder %s189, %s190
      %p199 = scmp.eq.s32.totalorder %s32, 0
      %p200 = por %p198, %p199
      %p201 = scmp.ne.s32.totalorder %s189, %s190
      %p202 = scmp.eq.s32.totalorder %s33, 1
      %p203 = por %p201, %p202
      %p205 = scmp.ne.s32.totalorder %s190, %s204
      %p206 = scmp.eq.s32.totalorder %s33, 0
      %p207 = por %p205, %p206
      %s209 = sadd.s32 %s208, 1
      %p212 = scmp.eq.s32.totalorder %s27, 1
      %p213 = scmp.ne.s32.totalorder %s208, %s210
      %p214 = scmp.eq.s32.totalorder %s27, 0
      %p215 = por %p213, %p214
      %p216 = scmp.ne.s32.totalorder %s208, %s210
      %p217 = scmp.eq.s32.totalorder %s32, 1
      %p218 = por %p216, %p217
      %p219 = scmp.ne.s32.totalorder %s210, %s211
      %p220 = scmp.eq.s32.totalorder %s32, 0
      %p221 = por %p219, %p220
      %p222 = scmp.ne.s32.totalorder %s210, %s211
      %p223 = scmp.eq.s32.totalorder %s33, 1
      %p224 = por %p222, %p223
      %p226 = scmp.ne.s32.totalorder %s211, %s225
      %p227 = scmp.eq.s32.totalorder %s33, 0
      %p228 = por %p226, %p227
      %s230 = sadd.s32 %s229, 1
      %p233 = scmp.eq.s32.totalorder %s27, 1
      %p234 = scmp.ne.s32.totalorder %s229, %s231
      %p235 = scmp.eq.s32.totalorder %s27, 0
      %p236 = por %p234, %p235
      %p237 = scmp.ne.s32.totalorder %s229, %s231
      %p238 = scmp.eq.s32.totalorder %s32, 1
      %p239 = por %p237, %p238
      %p240 = scmp.ne.s32.totalorder %s231, %s232
      %p241 = scmp.eq.s32.totalorder %s32, 0
      %p242 = por %p240, %p241
      %p243 = scmp.ne.s32.totalorder %s231, %s232
      %p244 = scmp.eq.s32.totalorder %s33, 1
      %p245 = por %p243, %p244
      %p247 = scmp.ne.s32.totalorder %s232, %s246
      %p248 = scmp.eq.s32.totalorder %s33, 0
      %p249 = por %p247, %p248
      %s251 = sadd.s32 %s250, 1
      %p254 = scmp.eq.s32.totalorder %s27, 1
      %p255 = scmp.ne.s32.totalorder %s250, %s252
      %p256 = scmp.eq.s32.totalorder %s27, 0
      %p257 = por %p255, %p256
      %p258 = scmp.ne.s32.totalorder %s250, %s252
      %p259 = scmp.eq.s32.totalorder %s32, 1
      %p260 = por %p258, %p259
      %p261 = scmp.ne.s32.totalorder %s252, %s253
      %p262 = scmp.eq.s32.totalorder %s32, 0
      %p263 = por %p261, %p262
      %p264 = scmp.ne.s32.totalorder %s252, %s253
      %p265 = scmp.eq.s32.totalorder %s33, 1
      %p266 = por %p264, %p265
      %p268 = scmp.ne.s32.totalorder %s253, %s267
      %p269 = scmp.eq.s32.totalorder %s33, 0
      %p270 = por %p268, %p269
      %s272 = sadd.s32 %s271, 1
      %p275 = scmp.eq.s32.totalorder %s27, 1
      %p276 = scmp.ne.s32.totalorder %s271, %s273
      %p277 = scmp.eq.s32.totalorder %s27, 0
      %p278 = por %p276, %p277
      %p279 = scmp.ne.s32.totalorder %s271, %s273
      %p280 = scmp.eq.s32.totalorder %s32, 1
      %p281 = por %p279, %p280
      %p282 = scmp.ne.s32.totalorder %s273, %s274
      %p283 = scmp.eq.s32.totalorder %s32, 0
      %p284 = por %p282, %p283
      %p285 = scmp.ne.s32.totalorder %s273, %s274
      %p286 = scmp.eq.s32.totalorder %s33, 1
      %p287 = por %p285, %p286
      %p289 = scmp.ne.s32.totalorder %s274, %s288
      %p290 = scmp.eq.s32.totalorder %s33, 0
      %p291 = por %p289, %p290
      %s293 = sadd.s32 %s292, 1
      %p296 = scmp.eq.s32.totalorder %s27, 1
      %p297 = scmp.ne.s32.totalorder %s292, %s294
      %p298 = scmp.eq.s32.totalorder %s27, 0
      %p299 = por %p297, %p298
      %p300 = scmp.ne.s32.totalorder %s292, %s294
      %p301 = scmp.eq.s32.totalorder %s32, 1
      %p302 = por %p300, %p301
      %p303 = scmp.ne.s32.totalorder %s294, %s295
      %p304 = scmp.eq.s32.totalorder %s32, 0
      %p305 = por %p303, %p304
      %p306 = scmp.ne.s32.totalorder %s294, %s295
      %p307 = scmp.eq.s32.totalorder %s33, 1
      %p308 = por %p306, %p307
      %p310 = scmp.ne.s32.totalorder %s295, %s309
      %p311 = scmp.eq.s32.totalorder %s33, 0
      %p312 = por %p310, %p311
      %s314 = sadd.s32 %s313, 1
      %p317 = scmp.eq.s32.totalorder %s27, 1
      %p318 = scmp.ne.s32.totalorder %s313, %s315
      %p319 = scmp.eq.s32.totalorder %s27, 0
      %p320 = por %p318, %p319
      %p321 = scmp.ne.s32.totalorder %s313, %s315
      %p322 = scmp.eq.s32.totalorder %s32, 1
      %p323 = por %p321, %p322
      %p324 = scmp.ne.s32.totalorder %s315, %s316
      %p325 = scmp.eq.s32.totalorder %s32, 0
      %p326 = por %p324, %p325
      %p327 = scmp.ne.s32.totalorder %s315, %s316
      %p328 = scmp.eq.s32.totalorder %s33, 1
      %p329 = por %p327, %p328
      %p331 = scmp.ne.s32.totalorder %s316, %s330
      %p332 = scmp.eq.s32.totalorder %s33, 0
      %p333 = por %p331, %p332
      %s335 = sadd.s32 %s334, 1
      %p338 = scmp.eq.s32.totalorder %s27, 1
      %p339 = scmp.ne.s32.totalorder %s334, %s336
      %p340 = scmp.eq.s32.totalorder %s27, 0
      %p341 = por %p339, %p340
      %p342 = scmp.ne.s32.totalorder %s334, %s336
      %p343 = scmp.eq.s32.totalorder %s32, 1
      %p344 = por %p342, %p343
      %p345 = scmp.ne.s32.totalorder %s336, %s337
      %p346 = scmp.eq.s32.totalorder %s32, 0
      %p347 = por %p345, %p346
      %p348 = scmp.ne.s32.totalorder %s336, %s337
      %p349 = scmp.eq.s32.totalorder %s33, 1
      %p350 = por %p348, %p349
      %p352 = scmp.ne.s32.totalorder %s337, %s351
      %p353 = scmp.eq.s32.totalorder %s33, 0
      %p354 = por %p352, %p353
      %s356 = sadd.s32 %s355, 1
      %p359 = scmp.eq.s32.totalorder %s27, 1
      %p360 = scmp.ne.s32.totalorder %s355, %s357
      %p361 = scmp.eq.s32.totalorder %s27, 0
      %p362 = por %p360, %p361
      %p363 = scmp.ne.s32.totalorder %s355, %s357
      %p364 = scmp.eq.s32.totalorder %s32, 1
      %p365 = por %p363, %p364
      %p366 = scmp.ne.s32.totalorder %s357, %s358
      %p367 = scmp.eq.s32.totalorder %s32, 0
      %p368 = por %p366, %p367
      %p369 = scmp.ne.s32.totalorder %s357, %s358
      %p370 = scmp.eq.s32.totalorder %s33, 1
      %p371 = por %p369, %p370
      %p373 = scmp.ne.s32.totalorder %s358, %s372
      %p374 = scmp.eq.s32.totalorder %s33, 0
      %p375 = por %p373, %p374
      %s377 = sadd.s32 %s376, 1
      %p380 = scmp.eq.s32.totalorder %s27, 1
      %p381 = scmp.ne.s32.totalorder %s376, %s378
      %p382 = scmp.eq.s32.totalorder %s27, 0
      %p383 = por %p381, %p382
      %p384 = scmp.ne.s32.totalorder %s376, %s378
      %p385 = scmp.eq.s32.totalorder %s32, 1
      %p386 = por %p384, %p385
      %p387 = scmp.ne.s32.totalorder %s378, %s379
      %p388 = scmp.eq.s32.totalorder %s32, 0
      %p389 = por %p387, %p388
      %p390 = scmp.ne.s32.totalorder %s378, %s379
      %p391 = scmp.eq.s32.totalorder %s33, 1
      %p392 = por %p390, %p391
      %p394 = scmp.ne.s32.totalorder %s379, %s393
      %p395 = scmp.eq.s32.totalorder %s33, 0
      %p396 = por %p394, %p395
      %s398 = sadd.s32 %s397, 1
      %p401 = scmp.eq.s32.totalorder %s27, 1
      %p402 = scmp.ne.s32.totalorder %s397, %s399
      %p403 = scmp.eq.s32.totalorder %s27, 0
      %p404 = por %p402, %p403
      %p405 = scmp.ne.s32.totalorder %s397, %s399
      %p406 = scmp.eq.s32.totalorder %s32, 1
      %p407 = por %p405, %p406
      %p408 = scmp.ne.s32.totalorder %s399, %s400
      %p409 = scmp.eq.s32.totalorder %s32, 0
      %p410 = por %p408, %p409
      %p411 = scmp.ne.s32.totalorder %s399, %s400
      %p412 = scmp.eq.s32.totalorder %s33, 1
      %p413 = por %p411, %p412
      %p415 = scmp.ne.s32.totalorder %s400, %s414
      %p416 = scmp.eq.s32.totalorder %s33, 0
      %p417 = por %p415, %p416
      %s418 = ssub.s32 %s27, %s34
      %p419 = scmp.eq.s32.totalorder %s418, 0
      %s421 = sadd.s32 %s420, 1
      %s422 = scalar_select %p419, %s420, %s421
      %p425 = pneg %p419
      %p426 = scmp.eq.s32.totalorder %s27, 1
      %p427 = por %p425, %p426
      %p428 = scmp.ne.s32.totalorder %s420, %s423
      %p429 = scmp.eq.s32.totalorder %s27, 0
      %p430 = por %p428, %p429
      %p431 = scmp.ne.s32.totalorder %s420, %s423
      %p432 = scmp.eq.s32.totalorder %s32, 1
      %p433 = por %p431, %p432
      %p434 = scmp.ne.s32.totalorder %s423, %s424
      %p435 = scmp.eq.s32.totalorder %s32, 0
      %p436 = por %p434, %p435
      %p437 = scmp.ne.s32.totalorder %s423, %s424
      %p438 = scmp.eq.s32.totalorder %s33, 1
      %p439 = por %p437, %p438
      %p441 = scmp.ne.s32.totalorder %s424, %s440
      %p442 = scmp.eq.s32.totalorder %s33, 0
      %p443 = por %p441, %p442
      %p444 = scmp.le.s32.totalorder 1, %s27
      %p445 = scmp.lt.s32.totalorder %s27, 3
      %p446 = pnand %p444, %p445
      %p447 = pneg %p446
      // Predicated region
      $region9: #{transformer_forward.1} parent=5 // pred_check
        _
      $region10: #{transformer_forward.1} parent=5 // pred_check_branch
        %449 = sbr.rel (%p446) target = $region12
      $region11: #{transformer_forward.1} parent=5 // pred_region
        %s450 = ssub.s32 %s27, 1
        // Predicated region
        $region13: #{transformer_forward.1} parent=11 // pred_check
          %p451 = pneg %p74
        $region14: #{transformer_forward.1} parent=11 // pred_check_branch
          %453 = sbr.rel (%p451) target = $region16
        $region15: #{transformer_forward.1} parent=11 // pred_region
          _
        $region16: #{transformer_forward.1} parent=11 // pred_fallthru
          _
        // Predicated region
        $region17: #{transformer_forward.1} parent=11 // pred_check
          %p454 = pneg %p95
        $region18: #{transformer_forward.1} parent=11 // pred_check_branch
          %456 = sbr.rel (%p454) target = $region20
        $region19: #{transformer_forward.1} parent=11 // pred_region
          _
        $region20: #{transformer_forward.1} parent=11 // pred_fallthru
          _
        // Predicated region
        $region21: #{transformer_forward.1} parent=11 // pred_check
          %p457 = pneg %p116
        $region22: #{transformer_forward.1} parent=11 // pred_check_branch
          %459 = sbr.rel (%p457) target = $region24
        $region23: #{transformer_forward.1} parent=11 // pred_region
          _
        $region24: #{transformer_forward.1} parent=11 // pred_fallthru
          _
        // Predicated region
        $region25: #{transformer_forward.1} parent=11 // pred_check
          %p460 = pneg %p137
        $region26: #{transformer_forward.1} parent=11 // pred_check_branch
          %462 = sbr.rel (%p460) target = $region28
        $region27: #{transformer_forward.1} parent=11 // pred_region
          _
        $region28: #{transformer_forward.1} parent=11 // pred_fallthru
          _
        // Predicated region
        $region29: #{transformer_forward.1} parent=11 // pred_check
          %p463 = pneg %p158
        $region30: #{transformer_forward.1} parent=11 // pred_check_branch
          %465 = sbr.rel (%p463) target = $region32
        $region31: #{transformer_forward.1} parent=11 // pred_region
          _
        $region32: #{transformer_forward.1} parent=11 // pred_fallthru
          _
        // Predicated region
        $region33: #{transformer_forward.1} parent=11 // pred_check
          %p466 = pneg %p179
        $region34: #{transformer_forward.1} parent=11 // pred_check_branch
          %468 = sbr.rel (%p466) target = $region36
        $region35: #{transformer_forward.1} parent=11 // pred_region
          _
        $region36: #{transformer_forward.1} parent=11 // pred_fallthru
          _
        // Predicated region
        $region37: #{transformer_forward.1} parent=11 // pred_check
          %p469 = pneg %p200
        $region38: #{transformer_forward.1} parent=11 // pred_check_branch
          %471 = sbr.rel (%p469) target = $region40
        $region39: #{transformer_forward.1} parent=11 // pred_region
          _
        $region40: #{transformer_forward.1} parent=11 // pred_fallthru
          _
        // Predicated region
        $region41: #{transformer_forward.1} parent=11 // pred_check
          %p472 = pneg %p221
        $region42: #{transformer_forward.1} parent=11 // pred_check_branch
          %474 = sbr.rel (%p472) target = $region44
        $region43: #{transformer_forward.1} parent=11 // pred_region
          _
        $region44: #{transformer_forward.1} parent=11 // pred_fallthru
          _
        // Predicated region
        $region45: #{transformer_forward.1} parent=11 // pred_check
          %p475 = pneg %p242
        $region46: #{transformer_forward.1} parent=11 // pred_check_branch
          %477 = sbr.rel (%p475) target = $region48
        $region47: #{transformer_forward.1} parent=11 // pred_region
          _
        $region48: #{transformer_forward.1} parent=11 // pred_fallthru
          _
        // Predicated region
        $region49: #{transformer_forward.1} parent=11 // pred_check
          %p478 = pneg %p263
        $region50: #{transformer_forward.1} parent=11 // pred_check_branch
          %480 = sbr.rel (%p478) target = $region52
        $region51: #{transformer_forward.1} parent=11 // pred_region
          _
        $region52: #{transformer_forward.1} parent=11 // pred_fallthru
          _
        // Predicated region
        $region53: #{transformer_forward.1} parent=11 // pred_check
          %p481 = pneg %p284
        $region54: #{transformer_forward.1} parent=11 // pred_check_branch
          %483 = sbr.rel (%p481) target = $region56
        $region55: #{transformer_forward.1} parent=11 // pred_region
          _
        $region56: #{transformer_forward.1} parent=11 // pred_fallthru
          _
        // Predicated region
        $region57: #{transformer_forward.1} parent=11 // pred_check
          %p484 = pneg %p305
        $region58: #{transformer_forward.1} parent=11 // pred_check_branch
          %486 = sbr.rel (%p484) target = $region60
        $region59: #{transformer_forward.1} parent=11 // pred_region
          _
        $region60: #{transformer_forward.1} parent=11 // pred_fallthru
          _
        // Predicated region
        $region61: #{transformer_forward.1} parent=11 // pred_check
          %p487 = pneg %p326
        $region62: #{transformer_forward.1} parent=11 // pred_check_branch
          %489 = sbr.rel (%p487) target = $region64
        $region63: #{transformer_forward.1} parent=11 // pred_region
          _
        $region64: #{transformer_forward.1} parent=11 // pred_fallthru
          _
        // Predicated region
        $region65: #{transformer_forward.1} parent=11 // pred_check
          %p490 = pneg %p347
        $region66: #{transformer_forward.1} parent=11 // pred_check_branch
          %492 = sbr.rel (%p490) target = $region68
        $region67: #{transformer_forward.1} parent=11 // pred_region
          _
        $region68: #{transformer_forward.1} parent=11 // pred_fallthru
          _
        // Predicated region
        $region69: #{transformer_forward.1} parent=11 // pred_check
          %p493 = pneg %p368
        $region70: #{transformer_forward.1} parent=11 // pred_check_branch
          %495 = sbr.rel (%p493) target = $region72
        $region71: #{transformer_forward.1} parent=11 // pred_region
          _
        $region72: #{transformer_forward.1} parent=11 // pred_fallthru
          _
        // Predicated region
        $region73: #{transformer_forward.1} parent=11 // pred_check
          %p496 = pneg %p389
        $region74: #{transformer_forward.1} parent=11 // pred_check_branch
          %498 = sbr.rel (%p496) target = $region76
        $region75: #{transformer_forward.1} parent=11 // pred_region
          _
        $region76: #{transformer_forward.1} parent=11 // pred_fallthru
          _
        // Predicated region
        $region77: #{transformer_forward.1} parent=11 // pred_check
          %p499 = pneg %p410
        $region78: #{transformer_forward.1} parent=11 // pred_check_branch
          %501 = sbr.rel (%p499) target = $region80
        $region79: #{transformer_forward.1} parent=11 // pred_region
          _
        $region80: #{transformer_forward.1} parent=11 // pred_fallthru
          _
      $region12: #{transformer_forward.1} parent=5 // pred_fallthru
        _
      %p502 = scmp.lt.s32.totalorder %s27, 2
      // Predicated region
      $region81: #{transformer_forward.1} parent=5 // pred_check
        %p503 = pneg %p502
      $region82: #{transformer_forward.1} parent=5 // pred_check_branch
        %505 = sbr.rel (%p503) target = $region84
      $region83: #{transformer_forward.1} parent=5 // pred_region
        // Predicated region
        $region85: #{transformer_forward.1} parent=83 // pred_check
          %p506 = pneg %p47
        $region86: #{transformer_forward.1} parent=83 // pred_check_branch
          %508 = sbr.rel (%p506) target = $region88
        $region87: #{transformer_forward.1} parent=83 // pred_region
          %p509 = scmp.lt.s32.totalorder %s27, 1
          %s510 = scalar_select %p509, %s27, 1
          %s511 = smul.addr %s510, 8
          %s512 = scalar_lea.vmem %s0, %s511
        $region88: #{transformer_forward.1} parent=83 // pred_fallthru
          _
      $region84: #{transformer_forward.1} parent=5 // pred_fallthru
        _
      %p513 = scmp.le.s32.totalorder 1, %s27
      %p514 = scmp.lt.s32.totalorder %s27, 3
      %p515 = pnand %p513, %p514
      %p516 = pneg %p515
      // Predicated region
      $region89: #{transformer_forward.1} parent=5 // pred_check
        _
      $region90: #{transformer_forward.1} parent=5 // pred_check_branch
        %518 = sbr.rel (%p515) target = $region92
      $region91: #{transformer_forward.1} parent=5 // pred_region
        %s519 = ssub.s32 %s27, 1
        %p520 = scmp.lt.s32.totalorder %s32, 1
        %s521 = scalar_select %p520, %s32, 1
        %s522 = smul.addr %s521, 8
        %s523 = scalar_lea.vmem %s0, %s522
        %p524 = pneg %p53
        %p525 = pneg %p50
        %p526 = pneg %p74
        %p527 = pneg %p71
        %p528 = pneg %p95
        %p529 = pneg %p92
        %p530 = pneg %p116
        %p531 = pneg %p113
        %p532 = pneg %p137
        %p533 = pneg %p134
        %p534 = pneg %p158
        %p535 = pneg %p155
        %p536 = pneg %p179
        %p537 = pneg %p176
        %p538 = pneg %p200
        %p539 = pneg %p197
        %p540 = pneg %p221
        %p541 = pneg %p218
        %p542 = pneg %p242
        %p543 = pneg %p239
        %p544 = pneg %p263
        %p545 = pneg %p260
        %p546 = pneg %p284
        %p547 = pneg %p281
        %p548 = pneg %p305
        %p549 = pneg %p302
        %p550 = pneg %p326
        %p551 = pneg %p323
        %p552 = pneg %p347
        %p553 = pneg %p344
        %p554 = pneg %p368
        %p555 = pneg %p365
        %p556 = pneg %p389
        %p557 = pneg %p386
        %p558 = pneg %p410
        %p559 = pneg %p407
        %p560 = pneg %p436
        %p561 = pneg %p433
        %s562 = sand.u32 %s423, 1
        %s563 = scalar_lea.sflag [#allocation3], %s562
        %s564 = sand.u32 %s423, 1
        %s565 = scalar_lea.vmem [#allocation2], %s564
        %p566 = scmp.lt.s32.totalorder %s32, 1
        %s567 = scalar_select %p566, %s32, 1
        %s568 = smul.addr %s567, 8
        %s569 = scalar_lea.vmem %s0, %s568
        %v571 = vld [vmem:[%s569] sm:$0xff]
        %v572 = vpack.c.bf16 %v571, %v571
        %v573 = vld [vmem:[%s2] sm:$0xf]
        %v574 = vld [vmem:[%s2 + $0x4] sm:$0xf]
        %v575 = vld [vmem:[%s3] sm:$0x1]
        %v577 = vlaneseq
        %v578 = vshrl.u32 %v577, 7
        %v579 = vsub.s32 0, %v578
        %v580 = vrot.slane %v575, %v579
        %v584 = vunpack.c.l.b16 %v573
        %v585 = vunpack.c.l.b16 %v574
        %v586 = vpack.c.b16 %v585, %v584
        %vm588 = vcmask 130048
        %v590 = vsel %vm588, %v572, 0
        %592 = vmatprep.subr.bf16.mxu0 0
        %593 = vmatpush1.bf16.msra.mxu0 0
        %594 = vmatprep.subr.bf16.mxu0 0
        %595 = vmatpush1.bf16.msra.mxu0 0
        %596 = vmatprep.subr.bf16.mxu0 0
        %597 = vmatpush1.bf16.msra.mxu0 0
        %598 = vmatprep.subr.bf16.mxu0 0
        %599 = vmatpush1.bf16.msra.mxu0 0
        %600 = vmatprep.subr.bf16.mxu0 0
        %601 = vmatpush1.bf16.msra.mxu0 0
        %602 = vmatprep.subr.bf16.mxu0 0
        %603 = vmatpush1.bf16.msra.mxu0 0
        %604 = vmatprep.subr.bf16.mxu0 0
        %605 = vmatpush1.bf16.msra.mxu0 0
        %606 = vmatprep.subr.bf16.mxu0 0
        %607 = vmatpush1.bf16.msra.mxu0 %v586
        %608 = vmatprep.subr.bf16.mxu0 0
        %609 = vmatpush2.bf16.msra.mxu0 0
        %610 = vmatprep.subr.bf16.mxu0 0
        %611 = vmatpush2.bf16.msra.mxu0 0
        %612 = vmatprep.subr.bf16.mxu0 0
        %613 = vmatpush2.bf16.msra.mxu0 0
        %614 = vmatprep.subr.bf16.mxu0 0
        %615 = vmatpush2.bf16.msra.mxu0 0
        %616 = vmatprep.subr.bf16.mxu0 0
        %617 = vmatpush2.bf16.msra.mxu0 0
        %618 = vmatprep.subr.bf16.mxu0 0
        %619 = vmatpush2.bf16.msra.mxu0 0
        %620 = vmatprep.subr.bf16.mxu0 0
        %621 = vmatpush2.bf16.msra.mxu0 0
        %622 = vmatprep.subr.bf16.mxu0 0
        %623 = vmatpush2.bf16.msra.mxu0 0
        %624 = vmatprep.mubr.bf16.mxu0 0
        %625 = vmatmul.mubr.bf16.gmra.mxu0 %v590
        %v626 = vpop.f32.mrf.mxu0
        %v627 = vadd.f32 %v580, %v626
        %v628 = vpop.f32.mrf.mxu0
        %v629 = vpop.f32.mrf.mxu0
        %v630 = vpop.f32.mrf.mxu0
        %631 = vdwg.mxu0
        %v632 = vld [vmem:[%s1] sm:$0xff]
        %v633 = vadd.f32 %v627, %v632
        %v634 = vld [vmem:[%s4] sm:$0xf]
        %v635 = vld [vmem:[%s4 + $0x4] sm:$0xf]
        %v636 = vld [vmem:[%s4 + $0x8] sm:$0xf]
        %v637 = vld [vmem:[%s4 + $0xc] sm:$0xf]
        %v638 = vld [vmem:[%s5] sm:$0x1]
        %v639 = vld [vmem:[%s6] sm:$0xf]
        %v640 = vld [vmem:[%s6 + $0x4] sm:$0xf]
        %v641 = vld [vmem:[%s6 + $0x8] sm:$0xf]
        %v642 = vld [vmem:[%s6 + $0xc] sm:$0xf]
        %v643 = vld [vmem:[%s7] sm:$0x1]
        %v644 = vld [vmem:[%s8] sm:$0x1]
        %v645 = vld [vmem:[%s9] sm:$0x1]
        %v646 = vld [vmem:[%s10] sm:$0xff]
        %v647 = vld [vmem:[%s10 + $0x8] sm:$0xff]
        %v648 = vld [vmem:[%s10 + $0x10] sm:$0xff]
        %v649 = vld [vmem:[%s10 + $0x18] sm:$0xff]
        %v650 = vld [vmem:[%s10 + $0x20] sm:$0xff]
        %v651 = vld [vmem:[%s10 + $0x28] sm:$0xff]
        %v652 = vld [vmem:[%s10 + $0x30] sm:$0xff]
        %v653 = vld [vmem:[%s10 + $0x38] sm:$0xff]
        %v654 = vld [vmem:[%s11] sm:$0xf]
        %v655 = vld [vmem:[%s12] sm:$0xf]
        %v656 = vld [vmem:[%s12 + $0x4] sm:$0xf]
        %v657 = vld [vmem:[%s12 + $0x8] sm:$0xf]
        %v658 = vld [vmem:[%s12 + $0xc] sm:$0xf]
        %v659 = vld [vmem:[%s12 + $0x10] sm:$0xf]
        %v660 = vld [vmem:[%s12 + $0x14] sm:$0xf]
        %v661 = vld [vmem:[%s12 + $0x18] sm:$0xf]
        %v662 = vld [vmem:[%s12 + $0x1c] sm:$0xf]
        %v663 = vld [vmem:[%s12 + $0x20] sm:$0xf]
        %v664 = vld [vmem:[%s12 + $0x24] sm:$0xf]
        %v665 = vld [vmem:[%s12 + $0x28] sm:$0xf]
        %v666 = vld [vmem:[%s12 + $0x2c] sm:$0xf]
        %v667 = vld [vmem:[%s12 + $0x30] sm:$0xf]
        %v668 = vld [vmem:[%s12 + $0x34] sm:$0xf]
        %v669 = vld [vmem:[%s12 + $0x38] sm:$0xf]
        %v670 = vld [vmem:[%s12 + $0x3c] sm:$0xf]
        %v671 = vld [vmem:[%s12 + $0x40] sm:$0xf]
        %v672 = vld [vmem:[%s12 + $0x44] sm:$0xf]
        %v673 = vld [vmem:[%s12 + $0x48] sm:$0xf]
        %v674 = vld [vmem:[%s12 + $0x4c] sm:$0xf]
        %v675 = vld [vmem:[%s12 + $0x50] sm:$0xf]
        %v676 = vld [vmem:[%s12 + $0x54] sm:$0xf]
        %v677 = vld [vmem:[%s12 + $0x58] sm:$0xf]
        %v678 = vld [vmem:[%s12 + $0x5c] sm:$0xf]
        %v679 = vld [vmem:[%s12 + $0x60] sm:$0xf]
        %v680 = vld [vmem:[%s12 + $0x64] sm:$0xf]
        %v681 = vld [vmem:[%s12 + $0x68] sm:$0xf]
        %v682 = vld [vmem:[%s12 + $0x6c] sm:$0xf]
        %v683 = vld [vmem:[%s12 + $0x70] sm:$0xf]
        %v684 = vld [vmem:[%s12 + $0x74] sm:$0xf]
        %v685 = vld [vmem:[%s12 + $0x78] sm:$0xf]
        %v686 = vld [vmem:[%s12 + $0x7c] sm:$0xf]
        %v687 = vld [vmem:[%s12 + $0x80] sm:$0xf]
        %v688 = vld [vmem:[%s12 + $0x84] sm:$0xf]
        %v689 = vld [vmem:[%s12 + $0x88] sm:$0xf]
        %v690 = vld [vmem:[%s12 + $0x8c] sm:$0xf]
        %v691 = vld [vmem:[%s12 + $0x90] sm:$0xf]
        %v692 = vld [vmem:[%s12 + $0x94] sm:$0xf]
        %v693 = vld [vmem:[%s12 + $0x98] sm:$0xf]
        %v694 = vld [vmem:[%s12 + $0x9c] sm:$0xf]
        %v695 = vld [vmem:[%s12 + $0xa0] sm:$0xf]
        %v696 = vld [vmem:[%s12 + $0xa4] sm:$0xf]
        %v697 = vld [vmem:[%s12 + $0xa8] sm:$0xf]
        %v698 = vld [vmem:[%s12 + $0xac] sm:$0xf]
        %v699 = vld [vmem:[%s12 + $0xb0] sm:$0xf]
        %v700 = vld [vmem:[%s12 + $0xb4] sm:$0xf]
        %v701 = vld [vmem:[%s12 + $0xb8] sm:$0xf]
        %v702 = vld [vmem:[%s12 + $0xbc] sm:$0xf]
        %v703 = vld [vmem:[%s12 + $0xc0] sm:$0xf]
        %v704 = vld [vmem:[%s12 + $0xc4] sm:$0xf]
        %v705 = vld [vmem:[%s12 + $0xc8] sm:$0xf]
        %v706 = vld [vmem:[%s12 + $0xcc] sm:$0xf]
        %v707 = vld [vmem:[%s12 + $0xd0] sm:$0xf]
        %v708 = vld [vmem:[%s12 + $0xd4] sm:$0xf]
        %v709 = vld [vmem:[%s12 + $0xd8] sm:$0xf]
        %v710 = vld [vmem:[%s12 + $0xdc] sm:$0xf]
        %v711 = vld [vmem:[%s12 + $0xe0] sm:$0xf]
        %v712 = vld [vmem:[%s12 + $0xe4] sm:$0xf]
        %v713 = vld [vmem:[%s12 + $0xe8] sm:$0xf]
        %v714 = vld [vmem:[%s12 + $0xec] sm:$0xf]
        %v715 = vld [vmem:[%s12 + $0xf0] sm:$0xf]
        %v716 = vld [vmem:[%s12 + $0xf4] sm:$0xf]
        %v717 = vld [vmem:[%s12 + $0xf8] sm:$0xf]
        %v718 = vld [vmem:[%s12 + $0xfc] sm:$0xf]
        %v719 = vld [vmem:[%s13] sm:$0x1]
        %v720 = vld [vmem:[%s14] sm:$0x1]
        %v721 = vld [vmem:[%s15] sm:$0x1]
        %v722 = vpack.c.bf16 %v633, %v633
        %v724 = vlaneseq
        %v725 = vshrl.u32 %v724, 7
        %v726 = vsub.s32 0, %v725
        %v727 = vrot.slane %v638, %v726
        %v733 = vunpack.c.l.b16 %v634
        %v734 = vunpack.c.l.b16 %v635
        %v735 = vunpack.c.l.b16 %v636
        %v736 = vunpack.c.l.b16 %v637
        %v737 = vpack.c.b16 %v734, %v733
        %v738 = vpack.c.b16 %v736, %v735
        %vm741 = vcmask 261120
        %v743 = vsel %vm741, %v722, 0
        %745 = vmatprep.subr.bf16.mxu0 0
        %746 = vmatpush1.bf16.msra.mxu0 0
        %747 = vmatprep.subr.bf16.mxu0 0
        %748 = vmatpush1.bf16.msra.mxu0 0
        %749 = vmatprep.subr.bf16.mxu0 0
        %750 = vmatpush1.bf16.msra.mxu0 0
        %751 = vmatprep.subr.bf16.mxu0 0
        %752 = vmatpush1.bf16.msra.mxu0 0
        %753 = vmatprep.subr.bf16.mxu0 0
        %754 = vmatpush1.bf16.msra.mxu0 0
        %755 = vmatprep.subr.bf16.mxu0 0
        %756 = vmatpush1.bf16.msra.mxu0 0
        %757 = vmatprep.subr.bf16.mxu0 0
        %758 = vmatpush1.bf16.msra.mxu0 %v738
        %759 = vmatprep.subr.bf16.mxu0 0
        %760 = vmatpush1.bf16.msra.mxu0 %v737
        %761 = vmatprep.subr.bf16.mxu0 0
        %762 = vmatpush2.bf16.msra.mxu0 0
        %763 = vmatprep.subr.bf16.mxu0 0
        %764 = vmatpush2.bf16.msra.mxu0 0
        %765 = vmatprep.subr.bf16.mxu0 0
        %766 = vmatpush2.bf16.msra.mxu0 0
        %767 = vmatprep.subr.bf16.mxu0 0
        %768 = vmatpush2.bf16.msra.mxu0 0
        %769 = vmatprep.subr.bf16.mxu0 0
        %770 = vmatpush2.bf16.msra.mxu0 0
        %771 = vmatprep.subr.bf16.mxu0 0
        %772 = vmatpush2.bf16.msra.mxu0 0
        %773 = vmatprep.subr.bf16.mxu0 0
        %774 = vmatpush2.bf16.msra.mxu0 0
        %775 = vmatprep.subr.bf16.mxu0 0
        %776 = vmatpush2.bf16.msra.mxu0 0
        %777 = vmatprep.mubr.bf16.mxu0 0
        %778 = vmatmul.mubr.bf16.gmra.mxu0 %v743
        %v779 = vpop.f32.mrf.mxu0
        %v780 = vadd.f32 %v727, %v779
        %v781 = vpop.f32.mrf.mxu0
        %v782 = vpop.f32.mrf.mxu0
        %v783 = vpop.f32.mrf.mxu0
        %784 = vdwg.mxu0
        %785 = vrot.lane.b32.xlu0 %v737, 96
        %v786 = vpop.permute.xlu0 %785
        %787 = vrot.lane.b32.xlu0 %v738, 96
        %v788 = vpop.permute.xlu0 %787
        %791 = vrot.lane.b32.xlu0 %v727, 96
        %v792 = vpop.permute.xlu0 %791
        %794 = vmatprep.subr.bf16.mxu0 0
        %795 = vmatpush1.bf16.msra.mxu0 0
        %796 = vmatprep.subr.bf16.mxu0 0
        %797 = vmatpush1.bf16.msra.mxu0 0
        %798 = vmatprep.subr.bf16.mxu0 0
        %799 = vmatpush1.bf16.msra.mxu0 0
        %800 = vmatprep.subr.bf16.mxu0 0
        %801 = vmatpush1.bf16.msra.mxu0 0
        %802 = vmatprep.subr.bf16.mxu0 0
        %803 = vmatpush1.bf16.msra.mxu0 0
        %804 = vmatprep.subr.bf16.mxu0 0
        %805 = vmatpush1.bf16.msra.mxu0 0
        %806 = vmatprep.subr.bf16.mxu0 0
        %807 = vmatpush1.bf16.msra.mxu0 %v788
        %808 = vmatprep.subr.bf16.mxu0 0
        %809 = vmatpush1.bf16.msra.mxu0 %v786
        %810 = vmatprep.subr.bf16.mxu0 0
        %811 = vmatpush2.bf16.msra.mxu0 0
        %812 = vmatprep.subr.bf16.mxu0 0
        %813 = vmatpush2.bf16.msra.mxu0 0
        %814 = vmatprep.subr.bf16.mxu0 0
        %815 = vmatpush2.bf16.msra.mxu0 0
        %816 = vmatprep.subr.bf16.mxu0 0
        %817 = vmatpush2.bf16.msra.mxu0 0
        %818 = vmatprep.subr.bf16.mxu0 0
        %819 = vmatpush2.bf16.msra.mxu0 0
        %820 = vmatprep.subr.bf16.mxu0 0
        %821 = vmatpush2.bf16.msra.mxu0 0
        %822 = vmatprep.subr.bf16.mxu0 0
        %823 = vmatpush2.bf16.msra.mxu0 0
        %824 = vmatprep.subr.bf16.mxu0 0
        %825 = vmatpush2.bf16.msra.mxu0 0
        %826 = vmatprep.mubr.bf16.mxu0 0
        %827 = vmatmul.mubr.bf16.gmra.mxu0 %v743
        %v828 = vpop.f32.mrf.mxu0
        %v829 = vadd.f32 %v792, %v828
        %v830 = vpop.f32.mrf.mxu0
        %v831 = vpop.f32.mrf.mxu0
        %v832 = vpop.f32.mrf.mxu0
        %833 = vdwg.mxu0
        %v834 = vpack.c.bf16 %v780, %v780
        %v835 = vpack.c.bf16 %v829, %v829
        %vm836 = vcmask 64512
        %v838 = vsel %vm836, %v834, 0
        %v841 = vsel %vm836, %v835, 0
        %843 = vmatprep.subr.bf16.mxu0 0
        %844 = vmatpush1.bf16.xpose.msra.mxu0 0
        %845 = vmatprep.subr.bf16.mxu0 0
        %846 = vmatpush1.bf16.xpose.msra.mxu0 0
        %847 = vmatprep.subr.bf16.mxu0 0
        %848 = vmatpush1.bf16.xpose.msra.mxu0 0
        %849 = vmatprep.subr.bf16.mxu0 0
        %850 = vmatpush1.bf16.xpose.msra.mxu0 0
        %851 = vmatprep.subr.bf16.mxu0 0
        %852 = vmatpush1.bf16.xpose.msra.mxu0 0
        %853 = vmatprep.subr.bf16.mxu0 0
        %854 = vmatpush1.bf16.xpose.msra.mxu0 0
        %855 = vmatprep.subr.bf16.mxu0 0
        %856 = vmatpush1.bf16.xpose.msra.mxu0 0
        %857 = vmatprep.subr.bf16.mxu0 0
        %858 = vmatpush1.bf16.xpose.msra.mxu0 %v841
        %859 = vmatprep.subr.bf16.mxu0 0
        %860 = vmatpush2.bf16.xpose.msra.mxu0 0
        %861 = vmatprep.subr.bf16.mxu0 0
        %862 = vmatpush2.bf16.xpose.msra.mxu0 0
        %863 = vmatprep.subr.bf16.mxu0 0
        %864 = vmatpush2.bf16.xpose.msra.mxu0 0
        %865 = vmatprep.subr.bf16.mxu0 0
        %866 = vmatpush2.bf16.xpose.msra.mxu0 0
        %867 = vmatprep.subr.bf16.mxu0 0
        %868 = vmatpush2.bf16.xpose.msra.mxu0 0
        %869 = vmatprep.subr.bf16.mxu0 0
        %870 = vmatpush2.bf16.xpose.msra.mxu0 0
        %871 = vmatprep.subr.bf16.mxu0 0
        %872 = vmatpush2.bf16.xpose.msra.mxu0 0
        %873 = vmatprep.subr.bf16.mxu0 0
        %874 = vmatpush2.bf16.xpose.msra.mxu0 0
        %875 = vmatprep.mubr.bf16.mxu0 0
        %876 = vmatmul.mubr.bf16.gmra.mxu0 %v838
        %v877 = vpop.f32.mrf.mxu0
        %v878 = vadd.f32 0.0, %v877
        %v879 = vpop.f32.mrf.mxu0
        %v880 = vpop.f32.mrf.mxu0
        %v881 = vpop.f32.mrf.mxu0
        %882 = vdwg.mxu0
        %v883 = vmul.f32 %v878, 0.35355338
        %v884 = vsel %vm836, %v883, -inf
        %885 = vmax.xlane.f32.xlu0 %v884
        %v886 = vpop.xlane.xlu0 %885
        %v887 = vsub.f32 %v883, %v886
        %v888 = vmul.f32 %v887, 1.442695
        %v889 = vpow.pop %v888
        %v890 = vsel %vm836, %v889, 0.0
        %891 = vadd.xlane.f32.xlu0 %v890
        %v892 = vpop.xlane.xlu0 %891
        %v893 = vrcp.pop %v892
        %v894 = vmul.f32 %v889, %v893
        %v895 = vpack.c.bf16 %v894, %v894
        %897 = vrot.lane.b32.xlu0 %v835, 96
        %v898 = vpop.permute.xlu0 %897
        %v900 = vsel %vm836, %v895, 0
        %vm902 = vcmask 1043456
        %v904 = vsel %vm902, %v898, 0
        %906 = vmatprep.subr.bf16.mxu0 0
        %907 = vmatpush1.bf16.msra.mxu0 0
        %908 = vmatprep.subr.bf16.mxu0 0
        %909 = vmatpush1.bf16.msra.mxu0 0
        %910 = vmatprep.subr.bf16.mxu0 0
        %911 = vmatpush1.bf16.msra.mxu0 0
        %912 = vmatprep.subr.bf16.mxu0 0
        %913 = vmatpush1.bf16.msra.mxu0 0
        %914 = vmatprep.subr.bf16.mxu0 0
        %915 = vmatpush1.bf16.msra.mxu0 0
        %916 = vmatprep.subr.bf16.mxu0 0
        %917 = vmatpush1.bf16.msra.mxu0 0
        %918 = vmatprep.subr.bf16.mxu0 0
        %919 = vmatpush1.bf16.msra.mxu0 0
        %920 = vmatprep.subr.bf16.mxu0 0
        %921 = vmatpush1.bf16.msra.mxu0 %v904
        %922 = vmatprep.subr.bf16.mxu0 0
        %923 = vmatpush2.bf16.msra.mxu0 0
        %924 = vmatprep.subr.bf16.mxu0 0
        %925 = vmatpush2.bf16.msra.mxu0 0
        %926 = vmatprep.subr.bf16.mxu0 0
        %927 = vmatpush2.bf16.msra.mxu0 0
        %928 = vmatprep.subr.bf16.mxu0 0
        %929 = vmatpush2.bf16.msra.mxu0 0
        %930 = vmatprep.subr.bf16.mxu0 0
        %931 = vmatpush2.bf16.msra.mxu0 0
        %932 = vmatprep.subr.bf16.mxu0 0
        %933 = vmatpush2.bf16.msra.mxu0 0
        %934 = vmatprep.subr.bf16.mxu0 0
        %935 = vmatpush2.bf16.msra.mxu0 0
        %936 = vmatprep.subr.bf16.mxu0 0
        %937 = vmatpush2.bf16.msra.mxu0 0
        %938 = vmatprep.mubr.bf16.mxu0 0
        %939 = vmatmul.mubr.bf16.gmra.mxu0 %v900
        %v940 = vpop.f32.mrf.mxu0
        %v941 = vadd.f32 0.0, %v940
        %v942 = vpop.f32.mrf.mxu0
        %v943 = vpop.f32.mrf.mxu0
        %v944 = vpop.f32.mrf.mxu0
        %945 = vdwg.mxu0
        %947 = vrot.lane.b32.xlu0 %v834, 120
        %v948 = vpop.permute.xlu0 %947
        %949 = vrot.lane.b32.xlu0 %v835, 120
        %v950 = vpop.permute.xlu0 %949
        %v952 = vsel %vm836, %v948, 0
        %v955 = vsel %vm836, %v950, 0
        %957 = vmatprep.subr.bf16.mxu0 0
        %958 = vmatpush1.bf16.xpose.msra.mxu0 0
        %959 = vmatprep.subr.bf16.mxu0 0
        %960 = vmatpush1.bf16.xpose.msra.mxu0 0
        %961 = vmatprep.subr.bf16.mxu0 0
        %962 = vmatpush1.bf16.xpose.msra.mxu0 0
        %963 = vmatprep.subr.bf16.mxu0 0
        %964 = vmatpush1.bf16.xpose.msra.mxu0 0
        %965 = vmatprep.subr.bf16.mxu0 0
        %966 = vmatpush1.bf16.xpose.msra.mxu0 0
        %967 = vmatprep.subr.bf16.mxu0 0
        %968 = vmatpush1.bf16.xpose.msra.mxu0 0
        %969 = vmatprep.subr.bf16.mxu0 0
        %970 = vmatpush1.bf16.xpose.msra.mxu0 0
        %971 = vmatprep.subr.bf16.mxu0 0
        %972 = vmatpush1.bf16.xpose.msra.mxu0 %v955
        %973 = vmatprep.subr.bf16.mxu0 0
        %974 = vmatpush2.bf16.xpose.msra.mxu0 0
        %975 = vmatprep.subr.bf16.mxu0 0
        %976 = vmatpush2.bf16.xpose.msra.mxu0 0
        %977 = vmatprep.subr.bf16.mxu0 0
        %978 = vmatpush2.bf16.xpose.msra.mxu0 0
        %979 = vmatprep.subr.bf16.mxu0 0
        %980 = vmatpush2.bf16.xpose.msra.mxu0 0
        %981 = vmatprep.subr.bf16.mxu0 0
        %982 = vmatpush2.bf16.xpose.msra.mxu0 0
        %983 = vmatprep.subr.bf16.mxu0 0
        %984 = vmatpush2.bf16.xpose.msra.mxu0 0
        %985 = vmatprep.subr.bf16.mxu0 0
        %986 = vmatpush2.bf16.xpose.msra.mxu0 0
        %987 = vmatprep.subr.bf16.mxu0 0
        %988 = vmatpush2.bf16.xpose.msra.mxu0 0
        %989 = vmatprep.mubr.bf16.mxu0 0
        %990 = vmatmul.mubr.bf16.gmra.mxu0 %v952
        %v991 = vpop.f32.mrf.mxu0
        %v992 = vadd.f32 0.0, %v991
        %v993 = vpop.f32.mrf.mxu0
        %v994 = vpop.f32.mrf.mxu0
        %v995 = vpop.f32.mrf.mxu0
        %996 = vdwg.mxu0
        %v997 = vmul.f32 %v992, 0.35355338
        %v998 = vsel %vm836, %v997, -inf
        %999 = vmax.xlane.f32.xlu0 %v998
        %v1000 = vpop.xlane.xlu0 %999
        %v1001 = vsub.f32 %v997, %v1000
        %v1002 = vmul.f32 %v1001, 1.442695
        %v1003 = vpow.pop %v1002
        %v1004 = vsel %vm836, %v1003, 0.0
        %1005 = vadd.xlane.f32.xlu0 %v1004
        %v1006 = vpop.xlane.xlu0 %1005
        %v1007 = vrcp.pop %v1006
        %v1008 = vmul.f32 %v1003, %v1007
        %v1009 = vpack.c.bf16 %v1008, %v1008
        %1010 = vrot.lane.b32.xlu0 %v835, 88
        %v1011 = vpop.permute.xlu0 %1010
        %v1013 = vsel %vm836, %v1009, 0
        %v1016 = vsel %vm902, %v1011, 0
        %1018 = vmatprep.subr.bf16.mxu0 0
        %1019 = vmatpush1.bf16.msra.mxu0 0
        %1020 = vmatprep.subr.bf16.mxu0 0
        %1021 = vmatpush1.bf16.msra.mxu0 0
        %1022 = vmatprep.subr.bf16.mxu0 0
        %1023 = vmatpush1.bf16.msra.mxu0 0
        %1024 = vmatprep.subr.bf16.mxu0 0
        %1025 = vmatpush1.bf16.msra.mxu0 0
        %1026 = vmatprep.subr.bf16.mxu0 0
        %1027 = vmatpush1.bf16.msra.mxu0 0
        %1028 = vmatprep.subr.bf16.mxu0 0
        %1029 = vmatpush1.bf16.msra.mxu0 0
        %1030 = vmatprep.subr.bf16.mxu0 0
        %1031 = vmatpush1.bf16.msra.mxu0 0
        %1032 = vmatprep.subr.bf16.mxu0 0
        %1033 = vmatpush1.bf16.msra.mxu0 %v1016
        %1034 = vmatprep.subr.bf16.mxu0 0
        %1035 = vmatpush2.bf16.msra.mxu0 0
        %1036 = vmatprep.subr.bf16.mxu0 0
        %1037 = vmatpush2.bf16.msra.mxu0 0
        %1038 = vmatprep.subr.bf16.mxu0 0
        %1039 = vmatpush2.bf16.msra.mxu0 0
        %1040 = vmatprep.subr.bf16.mxu0 0
        %1041 = vmatpush2.bf16.msra.mxu0 0
        %1042 = vmatprep.subr.bf16.mxu0 0
        %1043 = vmatpush2.bf16.msra.mxu0 0
        %1044 = vmatprep.subr.bf16.mxu0 0
        %1045 = vmatpush2.bf16.msra.mxu0 0
        %1046 = vmatprep.subr.bf16.mxu0 0
        %1047 = vmatpush2.bf16.msra.mxu0 0
        %1048 = vmatprep.subr.bf16.mxu0 0
        %1049 = vmatpush2.bf16.msra.mxu0 0
        %1050 = vmatprep.mubr.bf16.mxu0 0
        %1051 = vmatmul.mubr.bf16.gmra.mxu0 %v1013
        %v1052 = vpop.f32.mrf.mxu0
        %v1053 = vadd.f32 0.0, %v1052
        %v1054 = vpop.f32.mrf.mxu0
        %v1055 = vpop.f32.mrf.mxu0
        %v1056 = vpop.f32.mrf.mxu0
        %1057 = vdwg.mxu0
        %1058 = vrot.lane.b32.xlu0 %v834, 112
        %v1059 = vpop.permute.xlu0 %1058
        %1060 = vrot.lane.b32.xlu0 %v835, 112
        %v1061 = vpop.permute.xlu0 %1060
        %v1063 = vsel %vm836, %v1059, 0
        %v1066 = vsel %vm836, %v1061, 0
        %1068 = vmatprep.subr.bf16.mxu0 0
        %1069 = vmatpush1.bf16.xpose.msra.mxu0 0
        %1070 = vmatprep.subr.bf16.mxu0 0
        %1071 = vmatpush1.bf16.xpose.msra.mxu0 0
        %1072 = vmatprep.subr.bf16.mxu0 0
        %1073 = vmatpush1.bf16.xpose.msra.mxu0 0
        %1074 = vmatprep.subr.bf16.mxu0 0
        %1075 = vmatpush1.bf16.xpose.msra.mxu0 0
        %1076 = vmatprep.subr.bf16.mxu0 0
        %1077 = vmatpush1.bf16.xpose.msra.mxu0 0
        %1078 = vmatprep.subr.bf16.mxu0 0
        %1079 = vmatpush1.bf16.xpose.msra.mxu0 0
        %1080 = vmatprep.subr.bf16.mxu0 0
        %1081 = vmatpush1.bf16.xpose.msra.mxu0 0
        %1082 = vmatprep.subr.bf16.mxu0 0
        %1083 = vmatpush1.bf16.xpose.msra.mxu0 %v1066
        %1084 = vmatprep.subr.bf16.mxu0 0
        %1085 = vmatpush2.bf16.xpose.msra.mxu0 0
        %1086 = vmatprep.subr.bf16.mxu0 0
        %1087 = vmatpush2.bf16.xpose.msra.mxu0 0
        %1088 = vmatprep.subr.bf16.mxu0 0
        %1089 = vmatpush2.bf16.xpose.msra.mxu0 0
        %1090 = vmatprep.subr.bf16.mxu0 0
        %1091 = vmatpush2.bf16.xpose.msra.mxu0 0
        %1092 = vmatprep.subr.bf16.mxu0 0
        %1093 = vmatpush2.bf16.xpose.msra.mxu0 0
        %1094 = vmatprep.subr.bf16.mxu0 0
        %1095 = vmatpush2.bf16.xpose.msra.mxu0 0
        %1096 = vmatprep.subr.bf16.mxu0 0
        %1097 = vmatpush2.bf16.xpose.msra.mxu0 0
        %1098 = vmatprep.subr.bf16.mxu0 0
        %1099 = vmatpush2.bf16.xpose.msra.mxu0 0
        %1100 = vmatprep.mubr.bf16.mxu0 0
        %1101 = vmatmul.mubr.bf16.gmra.mxu0 %v1063
        %v1102 = vpop.f32.mrf.mxu0
        %v1103 = vadd.f32 0.0, %v1102
        %v1104 = vpop.f32.mrf.mxu0
        %v1105 = vpop.f32.mrf.mxu0
        %v1106 = vpop.f32.mrf.mxu0
        %1107 = vdwg.mxu0
        %v1108 = vmul.f32 %v1103, 0.35355338
        %v1109 = vsel %vm836, %v1108, -inf
        %1110 = vmax.xlane.f32.xlu0 %v1109
        %v1111 = vpop.xlane.xlu0 %1110
        %v1112 = vsub.f32 %v1108, %v1111
        %v1113 = vmul.f32 %v1112, 1.442695
        %v1114 = vpow.pop %v1113
        %v1115 = vsel %vm836, %v1114, 0.0
        %1116 = vadd.xlane.f32.xlu0 %v1115
        %v1117 = vpop.xlane.xlu0 %1116
        %v1118 = vrcp.pop %v1117
        %v1119 = vmul.f32 %v1114, %v1118
        %v1120 = vpack.c.bf16 %v1119, %v1119
        %1121 = vrot.lane.b32.xlu0 %v835, 80
        %v1122 = vpop.permute.xlu0 %1121
        %v1124 = vsel %vm836, %v1120, 0
        %v1127 = vsel %vm902, %v1122, 0
        %1129 = vmatprep.subr.bf16.mxu0 0
        %1130 = vmatpush1.bf16.msra.mxu0 0
        %1131 = vmatprep.subr.bf16.mxu0 0
        %1132 = vmatpush1.bf16.msra.mxu0 0
        %1133 = vmatprep.subr.bf16.mxu0 0
        %1134 = vmatpush1.bf16.msra.mxu0 0
        %1135 = vmatprep.subr.bf16.mxu0 0
        %1136 = vmatpush1.bf16.msra.mxu0 0
        %1137 = vmatprep.subr.bf16.mxu0 0
        %1138 = vmatpush1.bf16.msra.mxu0 0
        %1139 = vmatprep.subr.bf16.mxu0 0
        %1140 = vmatpush1.bf16.msra.mxu0 0
        %1141 = vmatprep.subr.bf16.mxu0 0
        %1142 = vmatpush1.bf16.msra.mxu0 0
        %1143 = vmatprep.subr.bf16.mxu0 0
        %1144 = vmatpush1.bf16.msra.mxu0 %v1127
        %1145 = vmatprep.subr.bf16.mxu0 0
        %1146 = vmatpush2.bf16.msra.mxu0 0
        %1147 = vmatprep.subr.bf16.mxu0 0
        %1148 = vmatpush2.bf16.msra.mxu0 0
        %1149 = vmatprep.subr.bf16.mxu0 0
        %1150 = vmatpush2.bf16.msra.mxu0 0
        %1151 = vmatprep.subr.bf16.mxu0 0
        %1152 = vmatpush2.bf16.msra.mxu0 0
        %1153 = vmatprep.subr.bf16.mxu0 0
        %1154 = vmatpush2.bf16.msra.mxu0 0
        %1155 = vmatprep.subr.bf16.mxu0 0
        %1156 = vmatpush2.bf16.msra.mxu0 0
        %1157 = vmatprep.subr.bf16.mxu0 0
        %1158 = vmatpush2.bf16.msra.mxu0 0
        %1159 = vmatprep.subr.bf16.mxu0 0
        %1160 = vmatpush2.bf16.msra.mxu0 0
        %1161 = vmatprep.mubr.bf16.mxu0 0
        %1162 = vmatmul.mubr.bf16.gmra.mxu0 %v1124
        %v1163 = vpop.f32.mrf.mxu0
        %v1164 = vadd.f32 0.0, %v1163
        %v1165 = vpop.f32.mrf.mxu0
        %v1166 = vpop.f32.mrf.mxu0
        %v1167 = vpop.f32.mrf.mxu0
        %1168 = vdwg.mxu0
        %1169 = vrot.lane.b32.xlu0 %v834, 104
        %v1170 = vpop.permute.xlu0 %1169
        %1171 = vrot.lane.b32.xlu0 %v835, 104
        %v1172 = vpop.permute.xlu0 %1171
        %v1174 = vsel %vm836, %v1170, 0
        %v1177 = vsel %vm836, %v1172, 0
        %1179 = vmatprep.subr.bf16.mxu0 0
        %1180 = vmatpush1.bf16.xpose.msra.mxu0 0
        %1181 = vmatprep.subr.bf16.mxu0 0
        %1182 = vmatpush1.bf16.xpose.msra.mxu0 0
        %1183 = vmatprep.subr.bf16.mxu0 0
        %1184 = vmatpush1.bf16.xpose.msra.mxu0 0
        %1185 = vmatprep.subr.bf16.mxu0 0
        %1186 = vmatpush1.bf16.xpose.msra.mxu0 0
        %1187 = vmatprep.subr.bf16.mxu0 0
        %1188 = vmatpush1.bf16.xpose.msra.mxu0 0
        %1189 = vmatprep.subr.bf16.mxu0 0
        %1190 = vmatpush1.bf16.xpose.msra.mxu0 0
        %1191 = vmatprep.subr.bf16.mxu0 0
        %1192 = vmatpush1.bf16.xpose.msra.mxu0 0
        %1193 = vmatprep.subr.bf16.mxu0 0
        %1194 = vmatpush1.bf16.xpose.msra.mxu0 %v1177
        %1195 = vmatprep.subr.bf16.mxu0 0
        %1196 = vmatpush2.bf16.xpose.msra.mxu0 0
        %1197 = vmatprep.subr.bf16.mxu0 0
        %1198 = vmatpush2.bf16.xpose.msra.mxu0 0
        %1199 = vmatprep.subr.bf16.mxu0 0
        %1200 = vmatpush2.bf16.xpose.msra.mxu0 0
        %1201 = vmatprep.subr.bf16.mxu0 0
        %1202 = vmatpush2.bf16.xpose.msra.mxu0 0
        %1203 = vmatprep.subr.bf16.mxu0 0
        %1204 = vmatpush2.bf16.xpose.msra.mxu0 0
        %1205 = vmatprep.subr.bf16.mxu0 0
        %1206 = vmatpush2.bf16.xpose.msra.mxu0 0
        %1207 = vmatprep.subr.bf16.mxu0 0
        %1208 = vmatpush2.bf16.xpose.msra.mxu0 0
        %1209 = vmatprep.subr.bf16.mxu0 0
        %1210 = vmatpush2.bf16.xpose.msra.mxu0 0
        %1211 = vmatprep.mubr.bf16.mxu0 0
        %1212 = vmatmul.mubr.bf16.gmra.mxu0 %v1174
        %v1213 = vpop.f32.mrf.mxu0
        %v1214 = vadd.f32 0.0, %v1213
        %v1215 = vpop.f32.mrf.mxu0
        %v1216 = vpop.f32.mrf.mxu0
        %v1217 = vpop.f32.mrf.mxu0
        %1218 = vdwg.mxu0
        %v1219 = vmul.f32 %v1214, 0.35355338
        %v1220 = vsel %vm836, %v1219, -inf
        %1221 = vmax.xlane.f32.xlu0 %v1220
        %v1222 = vpop.xlane.xlu0 %1221
        %v1223 = vsub.f32 %v1219, %v1222
        %v1224 = vmul.f32 %v1223, 1.442695
        %v1225 = vpow.pop %v1224
        %v1226 = vsel %vm836, %v1225, 0.0
        %1227 = vadd.xlane.f32.xlu0 %v1226
        %v1228 = vpop.xlane.xlu0 %1227
        %v1229 = vrcp.pop %v1228
        %v1230 = vmul.f32 %v1225, %v1229
        %v1231 = vpack.c.bf16 %v1230, %v1230
        %1232 = vrot.lane.b32.xlu0 %v835, 72
        %v1233 = vpop.permute.xlu0 %1232
        %v1235 = vsel %vm836, %v1231, 0
        %v1238 = vsel %vm902, %v1233, 0
        %1240 = vmatprep.subr.bf16.mxu0 0
        %1241 = vmatpush1.bf16.msra.mxu0 0
        %1242 = vmatprep.subr.bf16.mxu0 0
        %1243 = vmatpush1.bf16.msra.mxu0 0
        %1244 = vmatprep.subr.bf16.mxu0 0
        %1245 = vmatpush1.bf16.msra.mxu0 0
        %1246 = vmatprep.subr.bf16.mxu0 0
        %1247 = vmatpush1.bf16.msra.mxu0 0
        %1248 = vmatprep.subr.bf16.mxu0 0
        %1249 = vmatpush1.bf16.msra.mxu0 0
        %1250 = vmatprep.subr.bf16.mxu0 0
        %1251 = vmatpush1.bf16.msra.mxu0 0
        %1252 = vmatprep.subr.bf16.mxu0 0
        %1253 = vmatpush1.bf16.msra.mxu0 0
        %1254 = vmatprep.subr.bf16.mxu0 0
        %1255 = vmatpush1.bf16.msra.mxu0 %v1238
        %1256 = vmatprep.subr.bf16.mxu0 0
        %1257 = vmatpush2.bf16.msra.mxu0 0
        %1258 = vmatprep.subr.bf16.mxu0 0
        %1259 = vmatpush2.bf16.msra.mxu0 0
        %1260 = vmatprep.subr.bf16.mxu0 0
        %1261 = vmatpush2.bf16.msra.mxu0 0
        %1262 = vmatprep.subr.bf16.mxu0 0
        %1263 = vmatpush2.bf16.msra.mxu0 0
        %1264 = vmatprep.subr.bf16.mxu0 0
        %1265 = vmatpush2.bf16.msra.mxu0 0
        %1266 = vmatprep.subr.bf16.mxu0 0
        %1267 = vmatpush2.bf16.msra.mxu0 0
        %1268 = vmatprep.subr.bf16.mxu0 0
        %1269 = vmatpush2.bf16.msra.mxu0 0
        %1270 = vmatprep.subr.bf16.mxu0 0
        %1271 = vmatpush2.bf16.msra.mxu0 0
        %1272 = vmatprep.mubr.bf16.mxu0 0
        %1273 = vmatmul.mubr.bf16.gmra.mxu0 %v1235
        %v1274 = vpop.f32.mrf.mxu0
        %v1275 = vadd.f32 0.0, %v1274
        %v1276 = vpop.f32.mrf.mxu0
        %v1277 = vpop.f32.mrf.mxu0
        %v1278 = vpop.f32.mrf.mxu0
        %1279 = vdwg.mxu0
        %1281 = vrot.lane.b32.xlu0 %v1053, 8
        %v1282 = vpop.permute.xlu0 %1281
        %1285 = vrot.lane.b32.xlu0 %v1164, 16
        %v1286 = vpop.permute.xlu0 %1285
        %1289 = vrot.lane.b32.xlu0 %v1275, 24
        %v1290 = vpop.permute.xlu0 %1289
        %v1292 = vsel %vm836, %v941, %v1282
        %v1293 = vsel %vm588, %v1292, %v1286
        %vm1294 = vcmask 195584
        %v1295 = vsel %vm1294, %v1293, %v1290
        %v1296 = vpack.c.bf16 %v1295, %v1295
        %v1298 = vlaneseq
        %v1299 = vshrl.u32 %v1298, 7
        %v1300 = vsub.s32 0, %v1299
        %v1301 = vrot.slane %v643, %v1300
        %v1307 = vunpack.c.l.b16 %v639
        %v1308 = vunpack.c.l.b16 %v640
        %v1309 = vunpack.c.l.b16 %v641
        %v1310 = vunpack.c.l.b16 %v642
        %v1311 = vpack.c.b16 %v1308, %v1307
        %v1312 = vpack.c.b16 %v1310, %v1309
        %v1316 = vsel %vm741, %v1296, 0
        %1318 = vmatprep.subr.bf16.mxu0 0
        %1319 = vmatpush1.bf16.msra.mxu0 0
        %1320 = vmatprep.subr.bf16.mxu0 0
        %1321 = vmatpush1.bf16.msra.mxu0 0
        %1322 = vmatprep.subr.bf16.mxu0 0
        %1323 = vmatpush1.bf16.msra.mxu0 0
        %1324 = vmatprep.subr.bf16.mxu0 0
        %1325 = vmatpush1.bf16.msra.mxu0 0
        %1326 = vmatprep.subr.bf16.mxu0 0
        %1327 = vmatpush1.bf16.msra.mxu0 0
        %1328 = vmatprep.subr.bf16.mxu0 0
        %1329 = vmatpush1.bf16.msra.mxu0 0
        %1330 = vmatprep.subr.bf16.mxu0 0
        %1331 = vmatpush1.bf16.msra.mxu0 %v1312
        %1332 = vmatprep.subr.bf16.mxu0 0
        %1333 = vmatpush1.bf16.msra.mxu0 %v1311
        %1334 = vmatprep.subr.bf16.mxu0 0
        %1335 = vmatpush2.bf16.msra.mxu0 0
        %1336 = vmatprep.subr.bf16.mxu0 0
        %1337 = vmatpush2.bf16.msra.mxu0 0
        %1338 = vmatprep.subr.bf16.mxu0 0
        %1339 = vmatpush2.bf16.msra.mxu0 0
        %1340 = vmatprep.subr.bf16.mxu0 0
        %1341 = vmatpush2.bf16.msra.mxu0 0
        %1342 = vmatprep.subr.bf16.mxu0 0
        %1343 = vmatpush2.bf16.msra.mxu0 0
        %1344 = vmatprep.subr.bf16.mxu0 0
        %1345 = vmatpush2.bf16.msra.mxu0 0
        %1346 = vmatprep.subr.bf16.mxu0 0
        %1347 = vmatpush2.bf16.msra.mxu0 0
        %1348 = vmatprep.subr.bf16.mxu0 0
        %1349 = vmatpush2.bf16.msra.mxu0 0
        %1350 = vmatprep.mubr.bf16.mxu0 0
        %1351 = vmatmul.mubr.bf16.gmra.mxu0 %v1316
        %v1352 = vpop.f32.mrf.mxu0
        %v1353 = vadd.f32 %v1301, %v1352
        %v1354 = vpop.f32.mrf.mxu0
        %v1355 = vpop.f32.mrf.mxu0
        %v1356 = vpop.f32.mrf.mxu0
        %1357 = vdwg.mxu0
        %v1358 = vadd.f32 %v633, %v1353
        %v1359 = vsel %vm741, %v1358, 0.0
        %1360 = vadd.xlane.f32.xlu0 %v1359
        %v1361 = vpop.xlane.xlu0 %1360
        %v1362 = vrcp.pop 32.0
        %v1363 = vmul.f32 %v1361, %v1362
        %v1364 = vsub.f32 %v1358, %v1363
        %v1365 = vmul.f32 %v1364, %v1364
        %v1366 = vsel %vm741, %v1365, 0.0
        %1367 = vadd.xlane.f32.xlu0 %v1366
        %v1368 = vpop.xlane.xlu0 %1367
        %v1369 = vmul.f32 %v1368, %v1362
        %v1370 = vadd.f32 %v1369, 1e-05
        %v1371 = vrsqrt.pop %v1370
        %v1372 = vmul.f32 %v1364, %v1371
        %v1374 = vlaneseq
        %v1375 = vshrl.u32 %v1374, 7
        %v1376 = vsub.s32 0, %v1375
        %v1377 = vrot.slane %v644, %v1376
        %v1379 = vmul.f32 %v1372, %v1377
        %v1381 = vlaneseq
        %v1382 = vshrl.u32 %v1381, 7
        %v1383 = vsub.s32 0, %v1382
        %v1384 = vrot.slane %v645, %v1383
        %v1386 = vadd.f32 %v1379, %v1384
        %v1387 = vpack.c.bf16 %v1386, %v1386
        %v1389 = vlaneseq
        %v1390 = vshrl.u32 %v1389, 7
        %v1391 = vsub.s32 0, %v1390
        %v1392 = vrot.slane %v654, %v1391
        %v1393 = vlaneseq
        %v1394 = vshrl.u32 %v1393, 7
        %v1395 = vsub.s32 1, %v1394
        %v1396 = vrot.slane %v654, %v1395
        %v1397 = vlaneseq
        %v1398 = vshrl.u32 %v1397, 7
        %v1399 = vsub.s32 2, %v1398
        %v1400 = vrot.slane %v654, %v1399
        %v1401 = vlaneseq
        %v1402 = vshrl.u32 %v1401, 7
        %v1403 = vsub.s32 3, %v1402
        %v1404 = vrot.slane %v654, %v1403
        %v1417 = vunpack.c.l.b16 %v646
        %v1418 = vunpack.c.h.b16 %v646
        %v1419 = vunpack.c.l.b16 %v647
        %v1420 = vunpack.c.h.b16 %v647
        %v1421 = vunpack.c.l.b16 %v648
        %v1422 = vunpack.c.h.b16 %v648
        %v1423 = vunpack.c.l.b16 %v649
        %v1424 = vunpack.c.h.b16 %v649
        %v1425 = vunpack.c.l.b16 %v650
        %v1426 = vunpack.c.h.b16 %v650
        %v1427 = vunpack.c.l.b16 %v651
        %v1428 = vunpack.c.h.b16 %v651
        %v1429 = vunpack.c.l.b16 %v652
        %v1430 = vunpack.c.h.b16 %v652
        %v1431 = vunpack.c.l.b16 %v653
        %v1432 = vunpack.c.h.b16 %v653
        %v1433 = vpack.c.b16 %v1421, %v1417
        %v1434 = vpack.c.b16 %v1422, %v1418
        %v1435 = vpack.c.b16 %v1423, %v1419
        %v1436 = vpack.c.b16 %v1424, %v1420
        %v1437 = vpack.c.b16 %v1429, %v1425
        %v1438 = vpack.c.b16 %v1430, %v1426
        %v1439 = vpack.c.b16 %v1431, %v1427
        %v1440 = vpack.c.b16 %v1432, %v1428
        %v1450 = vsel %vm741, %v1387, 0
        %1452 = vmatprep.subr.bf16.mxu0 0
        %1453 = vmatpush1.bf16.msra.mxu0 0
        %1454 = vmatprep.subr.bf16.mxu0 0
        %1455 = vmatpush1.bf16.msra.mxu0 0
        %1456 = vmatprep.subr.bf16.mxu0 0
        %1457 = vmatpush1.bf16.msra.mxu0 0
        %1458 = vmatprep.subr.bf16.mxu0 0
        %1459 = vmatpush1.bf16.msra.mxu0 0
        %1460 = vmatprep.subr.bf16.mxu0 0
        %1461 = vmatpush1.bf16.msra.mxu0 0
        %1462 = vmatprep.subr.bf16.mxu0 0
        %1463 = vmatpush1.bf16.msra.mxu0 0
        %1464 = vmatprep.subr.bf16.mxu0 %v1438
        %1465 = vmatpush1.bf16.msra.mxu0 %v1437
        %1466 = vmatprep.subr.bf16.mxu0 %v1434
        %1467 = vmatpush1.bf16.msra.mxu0 %v1433
        %1468 = vmatprep.subr.bf16.mxu0 0
        %1469 = vmatpush2.bf16.msra.mxu0 0
        %1470 = vmatprep.subr.bf16.mxu0 0
        %1471 = vmatpush2.bf16.msra.mxu0 0
        %1472 = vmatprep.subr.bf16.mxu0 0
        %1473 = vmatpush2.bf16.msra.mxu0 0
        %1474 = vmatprep.subr.bf16.mxu0 0
        %1475 = vmatpush2.bf16.msra.mxu0 0
        %1476 = vmatprep.subr.bf16.mxu0 0
        %1477 = vmatpush2.bf16.msra.mxu0 0
        %1478 = vmatprep.subr.bf16.mxu0 0
        %1479 = vmatpush2.bf16.msra.mxu0 0
        %1480 = vmatprep.subr.bf16.mxu0 0
        %1481 = vmatpush2.bf16.msra.mxu0 0
        %1482 = vmatprep.subr.bf16.mxu0 0
        %1483 = vmatpush2.bf16.msra.mxu0 0
        %1484 = vmatprep.mubr.bf16.mxu0 0
        %1485 = vmatmul.mubr.bf16.gmra.mxu0 %v1450
        %v1486 = vpop.f32.mrf.mxu0
        %v1487 = vadd.f32 %v1392, %v1486
        %v1488 = vpop.f32.mrf.mxu0
        %v1489 = vadd.f32 %v1396, %v1488
        %v1490 = vpop.f32.mrf.mxu0
        %v1491 = vpop.f32.mrf.mxu0
        %1492 = vdwg.mxu0
        %1493 = vmatprep.subr.bf16.mxu0 0
        %1494 = vmatpush1.bf16.msra.mxu0 0
        %1495 = vmatprep.subr.bf16.mxu0 0
        %1496 = vmatpush1.bf16.msra.mxu0 0
        %1497 = vmatprep.subr.bf16.mxu0 0
        %1498 = vmatpush1.bf16.msra.mxu0 0
        %1499 = vmatprep.subr.bf16.mxu0 0
        %1500 = vmatpush1.bf16.msra.mxu0 0
        %1501 = vmatprep.subr.bf16.mxu0 0
        %1502 = vmatpush1.bf16.msra.mxu0 0
        %1503 = vmatprep.subr.bf16.mxu0 0
        %1504 = vmatpush1.bf16.msra.mxu0 0
        %1505 = vmatprep.subr.bf16.mxu0 %v1440
        %1506 = vmatpush1.bf16.msra.mxu0 %v1439
        %1507 = vmatprep.subr.bf16.mxu0 %v1436
        %1508 = vmatpush1.bf16.msra.mxu0 %v1435
        %1509 = vmatprep.subr.bf16.mxu0 0
        %1510 = vmatpush2.bf16.msra.mxu0 0
        %1511 = vmatprep.subr.bf16.mxu0 0
        %1512 = vmatpush2.bf16.msra.mxu0 0
        %1513 = vmatprep.subr.bf16.mxu0 0
        %1514 = vmatpush2.bf16.msra.mxu0 0
        %1515 = vmatprep.subr.bf16.mxu0 0
        %1516 = vmatpush2.bf16.msra.mxu0 0
        %1517 = vmatprep.subr.bf16.mxu0 0
        %1518 = vmatpush2.bf16.msra.mxu0 0
        %1519 = vmatprep.subr.bf16.mxu0 0
        %1520 = vmatpush2.bf16.msra.mxu0 0
        %1521 = vmatprep.subr.bf16.mxu0 0
        %1522 = vmatpush2.bf16.msra.mxu0 0
        %1523 = vmatprep.subr.bf16.mxu0 0
        %1524 = vmatpush2.bf16.msra.mxu0 0
        %1525 = vmatprep.mubr.bf16.mxu0 0
        %1526 = vmatmul.mubr.bf16.gmra.mxu0 %v1450
        %v1527 = vpop.f32.mrf.mxu0
        %v1528 = vadd.f32 %v1400, %v1527
        %v1529 = vpop.f32.mrf.mxu0
        %v1530 = vadd.f32 %v1404, %v1529
        %v1531 = vpop.f32.mrf.mxu0
        %v1532 = vpop.f32.mrf.mxu0
        %1533 = vdwg.mxu0
        %v1534 = vmax.f32 %v1487, 0.0
        %v1535 = vmax.f32 %v1489, 0.0
        %v1536 = vmax.f32 %v1528, 0.0
        %v1537 = vmax.f32 %v1530, 0.0
        %v1538 = vpack.c.bf16 %v1534, %v1534
        %v1539 = vpack.c.bf16 %v1535, %v1535
        %v1540 = vpack.c.bf16 %v1536, %v1536
        %v1541 = vpack.c.bf16 %v1537, %v1537
        %v1543 = vlaneseq
        %v1544 = vshrl.u32 %v1543, 7
        %v1545 = vsub.s32 0, %v1544
        %v1546 = vrot.slane %v719, %v1545
        %v1612 = vunpack.c.l.b16 %v655
        %v1613 = vunpack.c.l.b16 %v656
        %v1614 = vunpack.c.l.b16 %v657
        %v1615 = vunpack.c.l.b16 %v658
        %v1616 = vunpack.c.l.b16 %v659
        %v1617 = vunpack.c.l.b16 %v660
        %v1618 = vunpack.c.l.b16 %v661
        %v1619 = vunpack.c.l.b16 %v662
        %v1620 = vunpack.c.l.b16 %v663
        %v1621 = vunpack.c.l.b16 %v664
        %v1622 = vunpack.c.l.b16 %v665
        %v1623 = vunpack.c.l.b16 %v666
        %v1624 = vunpack.c.l.b16 %v667
        %v1625 = vunpack.c.l.b16 %v668
        %v1626 = vunpack.c.l.b16 %v669
        %v1627 = vunpack.c.l.b16 %v670
        %v1628 = vunpack.c.l.b16 %v671
        %v1629 = vunpack.c.l.b16 %v672
        %v1630 = vunpack.c.l.b16 %v673
        %v1631 = vunpack.c.l.b16 %v674
        %v1632 = vunpack.c.l.b16 %v675
        %v1633 = vunpack.c.l.b16 %v676
        %v1634 = vunpack.c.l.b16 %v677
        %v1635 = vunpack.c.l.b16 %v678
        %v1636 = vunpack.c.l.b16 %v679
        %v1637 = vunpack.c.l.b16 %v680
        %v1638 = vunpack.c.l.b16 %v681
        %v1639 = vunpack.c.l.b16 %v682
        %v1640 = vunpack.c.l.b16 %v683
        %v1641 = vunpack.c.l.b16 %v684
        %v1642 = vunpack.c.l.b16 %v685
        %v1643 = vunpack.c.l.b16 %v686
        %v1644 = vunpack.c.l.b16 %v687
        %v1645 = vunpack.c.l.b16 %v688
        %v1646 = vunpack.c.l.b16 %v689
        %v1647 = vunpack.c.l.b16 %v690
        %v1648 = vunpack.c.l.b16 %v691
        %v1649 = vunpack.c.l.b16 %v692
        %v1650 = vunpack.c.l.b16 %v693
        %v1651 = vunpack.c.l.b16 %v694
        %v1652 = vunpack.c.l.b16 %v695
        %v1653 = vunpack.c.l.b16 %v696
        %v1654 = vunpack.c.l.b16 %v697
        %v1655 = vunpack.c.l.b16 %v698
        %v1656 = vunpack.c.l.b16 %v699
        %v1657 = vunpack.c.l.b16 %v700
        %v1658 = vunpack.c.l.b16 %v701
        %v1659 = vunpack.c.l.b16 %v702
        %v1660 = vunpack.c.l.b16 %v703
        %v1661 = vunpack.c.l.b16 %v704
        %v1662 = vunpack.c.l.b16 %v705
        %v1663 = vunpack.c.l.b16 %v706
        %v1664 = vunpack.c.l.b16 %v707
        %v1665 = vunpack.c.l.b16 %v708
        %v1666 = vunpack.c.l.b16 %v709
        %v1667 = vunpack.c.l.b16 %v710
        %v1668 = vunpack.c.l.b16 %v711
        %v1669 = vunpack.c.l.b16 %v712
        %v1670 = vunpack.c.l.b16 %v713
        %v1671 = vunpack.c.l.b16 %v714
        %v1672 = vunpack.c.l.b16 %v715
        %v1673 = vunpack.c.l.b16 %v716
        %v1674 = vunpack.c.l.b16 %v717
        %v1675 = vunpack.c.l.b16 %v718
        %v1676 = vpack.c.b16 %v1613, %v1612
        %v1677 = vpack.c.b16 %v1615, %v1614
        %v1678 = vpack.c.b16 %v1617, %v1616
        %v1679 = vpack.c.b16 %v1619, %v1618
        %v1680 = vpack.c.b16 %v1621, %v1620
        %v1681 = vpack.c.b16 %v1623, %v1622
        %v1682 = vpack.c.b16 %v1625, %v1624
        %v1683 = vpack.c.b16 %v1627, %v1626
        %v1684 = vpack.c.b16 %v1629, %v1628
        %v1685 = vpack.c.b16 %v1631, %v1630
        %v1686 = vpack.c.b16 %v1633, %v1632
        %v1687 = vpack.c.b16 %v1635, %v1634
        %v1688 = vpack.c.b16 %v1637, %v1636
        %v1689 = vpack.c.b16 %v1639, %v1638
        %v1690 = vpack.c.b16 %v1641, %v1640
        %v1691 = vpack.c.b16 %v1643, %v1642
        %v1692 = vpack.c.b16 %v1645, %v1644
        %v1693 = vpack.c.b16 %v1647, %v1646
        %v1694 = vpack.c.b16 %v1649, %v1648
        %v1695 = vpack.c.b16 %v1651, %v1650
        %v1696 = vpack.c.b16 %v1653, %v1652
        %v1697 = vpack.c.b16 %v1655, %v1654
        %v1698 = vpack.c.b16 %v1657, %v1656
        %v1699 = vpack.c.b16 %v1659, %v1658
        %v1700 = vpack.c.b16 %v1661, %v1660
        %v1701 = vpack.c.b16 %v1663, %v1662
        %v1702 = vpack.c.b16 %v1665, %v1664
        %v1703 = vpack.c.b16 %v1667, %v1666
        %v1704 = vpack.c.b16 %v1669, %v1668
        %v1705 = vpack.c.b16 %v1671, %v1670
        %v1706 = vpack.c.b16 %v1673, %v1672
        %v1707 = vpack.c.b16 %v1675, %v1674
        %1740 = vmatprep.subr.bf16.mxu0 0
        %1741 = vmatpush1.bf16.msra.mxu0 %v1683
        %1742 = vmatprep.subr.bf16.mxu0 0
        %1743 = vmatpush1.bf16.msra.mxu0 %v1682
        %1744 = vmatprep.subr.bf16.mxu0 0
        %1745 = vmatpush1.bf16.msra.mxu0 %v1681
        %1746 = vmatprep.subr.bf16.mxu0 0
        %1747 = vmatpush1.bf16.msra.mxu0 %v1680
        %1748 = vmatprep.subr.bf16.mxu0 0
        %1749 = vmatpush1.bf16.msra.mxu0 %v1679
        %1750 = vmatprep.subr.bf16.mxu0 0
        %1751 = vmatpush1.bf16.msra.mxu0 %v1678
        %1752 = vmatprep.subr.bf16.mxu0 0
        %1753 = vmatpush1.bf16.msra.mxu0 %v1677
        %1754 = vmatprep.subr.bf16.mxu0 0
        %1755 = vmatpush1.bf16.msra.mxu0 %v1676
        %1756 = vmatprep.subr.bf16.mxu0 0
        %1757 = vmatpush2.bf16.msra.mxu0 %v1691
        %1758 = vmatprep.subr.bf16.mxu0 0
        %1759 = vmatpush2.bf16.msra.mxu0 %v1690
        %1760 = vmatprep.subr.bf16.mxu0 0
        %1761 = vmatpush2.bf16.msra.mxu0 %v1689
        %1762 = vmatprep.subr.bf16.mxu0 0
        %1763 = vmatpush2.bf16.msra.mxu0 %v1688
        %1764 = vmatprep.subr.bf16.mxu0 0
        %1765 = vmatpush2.bf16.msra.mxu0 %v1687
        %1766 = vmatprep.subr.bf16.mxu0 0
        %1767 = vmatpush2.bf16.msra.mxu0 %v1686
        %1768 = vmatprep.subr.bf16.mxu0 0
        %1769 = vmatpush2.bf16.msra.mxu0 %v1685
        %1770 = vmatprep.subr.bf16.mxu0 0
        %1771 = vmatpush2.bf16.msra.mxu0 %v1684
        %1772 = vmatprep.mubr.bf16.mxu0 %v1539
        %1773 = vmatmul.mubr.bf16.gmra.mxu0 %v1538
        %v1774 = vpop.f32.mrf.mxu0
        %v1775 = vadd.f32 %v1546, %v1774
        %v1776 = vpop.f32.mrf.mxu0
        %v1777 = vpop.f32.mrf.mxu0
        %v1778 = vpop.f32.mrf.mxu0
        %1779 = vdwg.mxu0
        %1780 = vmatprep.subr.bf16.mxu0 0
        %1781 = vmatpush1.bf16.msra.mxu0 %v1699
        %1782 = vmatprep.subr.bf16.mxu0 0
        %1783 = vmatpush1.bf16.msra.mxu0 %v1698
        %1784 = vmatprep.subr.bf16.mxu0 0
        %1785 = vmatpush1.bf16.msra.mxu0 %v1697
        %1786 = vmatprep.subr.bf16.mxu0 0
        %1787 = vmatpush1.bf16.msra.mxu0 %v1696
        %1788 = vmatprep.subr.bf16.mxu0 0
        %1789 = vmatpush1.bf16.msra.mxu0 %v1695
        %1790 = vmatprep.subr.bf16.mxu0 0
        %1791 = vmatpush1.bf16.msra.mxu0 %v1694
        %1792 = vmatprep.subr.bf16.mxu0 0
        %1793 = vmatpush1.bf16.msra.mxu0 %v1693
        %1794 = vmatprep.subr.bf16.mxu0 0
        %1795 = vmatpush1.bf16.msra.mxu0 %v1692
        %1796 = vmatprep.subr.bf16.mxu0 0
        %1797 = vmatpush2.bf16.msra.mxu0 %v1707
        %1798 = vmatprep.subr.bf16.mxu0 0
        %1799 = vmatpush2.bf16.msra.mxu0 %v1706
        %1800 = vmatprep.subr.bf16.mxu0 0
        %1801 = vmatpush2.bf16.msra.mxu0 %v1705
        %1802 = vmatprep.subr.bf16.mxu0 0
        %1803 = vmatpush2.bf16.msra.mxu0 %v1704
        %1804 = vmatprep.subr.bf16.mxu0 0
        %1805 = vmatpush2.bf16.msra.mxu0 %v1703
        %1806 = vmatprep.subr.bf16.mxu0 0
        %1807 = vmatpush2.bf16.msra.mxu0 %v1702
        %1808 = vmatprep.subr.bf16.mxu0 0
        %1809 = vmatpush2.bf16.msra.mxu0 %v1701
        %1810 = vmatprep.subr.bf16.mxu0 0
        %1811 = vmatpush2.bf16.msra.mxu0 %v1700
        %1812 = vmatprep.mubr.bf16.mxu0 %v1541
        %1813 = vmatmul.mubr.bf16.gmra.mxu0 %v1540
        %v1814 = vpop.f32.mrf.mxu0
        %v1815 = vadd.f32 %v1775, %v1814
        %v1816 = vpop.f32.mrf.mxu0
        %v1817 = vpop.f32.mrf.mxu0
        %v1818 = vpop.f32.mrf.mxu0
        %1819 = vdwg.mxu0
        %v1820 = vadd.f32 %v1386, %v1815
        %v1821 = vsel %vm741, %v1820, 0.0
        %1822 = vadd.xlane.f32.xlu0 %v1821
        %v1823 = vpop.xlane.xlu0 %1822
        %v1824 = vmul.f32 %v1823, %v1362
        %v1825 = vsub.f32 %v1820, %v1824
        %v1826 = vmul.f32 %v1825, %v1825
        %v1827 = vsel %vm741, %v1826, 0.0
        %1828 = vadd.xlane.f32.xlu0 %v1827
        %v1829 = vpop.xlane.xlu0 %1828
        %v1830 = vmul.f32 %v1829, %v1362
        %v1831 = vadd.f32 %v1830, 1e-05
        %v1832 = vrsqrt.pop %v1831
        %v1833 = vmul.f32 %v1825, %v1832
        %v1835 = vlaneseq
        %v1836 = vshrl.u32 %v1835, 7
        %v1837 = vsub.s32 0, %v1836
        %v1838 = vrot.slane %v720, %v1837
        %v1840 = vmul.f32 %v1833, %v1838
        %v1842 = vlaneseq
        %v1843 = vshrl.u32 %v1842, 7
        %v1844 = vsub.s32 0, %v1843
        %v1845 = vrot.slane %v721, %v1844
        %v1847 = vadd.f32 %v1840, %v1845
        %s1848 = scalar_lea.vmem %s4, 16
        %v1849 = vld [vmem:[%s1848] sm:$0xf]
        %v1850 = vld [vmem:[%s1848 + $0x4] sm:$0xf]
        %v1851 = vld [vmem:[%s1848 + $0x8] sm:$0xf]
        %v1852 = vld [vmem:[%s1848 + $0xc] sm:$0xf]
        %s1853 = scalar_lea.vmem %s5, 1
        %v1854 = vld [vmem:[%s1853] sm:$0x1]
        %s1855 = scalar_lea.vmem %s6, 16
        %v1856 = vld [vmem:[%s1855] sm:$0xf]
        %v1857 = vld [vmem:[%s1855 + $0x4] sm:$0xf]
        %v1858 = vld [vmem:[%s1855 + $0x8] sm:$0xf]
        %v1859 = vld [vmem:[%s1855 + $0xc] sm:$0xf]
        %s1860 = scalar_lea.vmem %s7, 1
        %v1861 = vld [vmem:[%s1860] sm:$0x1]
        %s1862 = scalar_lea.vmem %s8, 1
        %v1863 = vld [vmem:[%s1862] sm:$0x1]
        %s1864 = scalar_lea.vmem %s9, 1
        %v1865 = vld [vmem:[%s1864] sm:$0x1]
        %s1866 = scalar_lea.vmem %s10, 64
        %v1867 = vld [vmem:[%s1866] sm:$0xff]
        %v1868 = vld [vmem:[%s1866 + $0x8] sm:$0xff]
        %v1869 = vld [vmem:[%s1866 + $0x10] sm:$0xff]
        %v1870 = vld [vmem:[%s1866 + $0x18] sm:$0xff]
        %v1871 = vld [vmem:[%s1866 + $0x20] sm:$0xff]
        %v1872 = vld [vmem:[%s1866 + $0x28] sm:$0xff]
        %v1873 = vld [vmem:[%s1866 + $0x30] sm:$0xff]
        %v1874 = vld [vmem:[%s1866 + $0x38] sm:$0xff]
        %s1875 = scalar_lea.vmem %s11, 4
        %v1876 = vld [vmem:[%s1875] sm:$0xf]
        %s1877 = scalar_lea.vmem %s12, 256
        %v1878 = vld [vmem:[%s1877] sm:$0xf]
        %v1879 = vld [vmem:[%s1877 + $0x4] sm:$0xf]
        %v1880 = vld [vmem:[%s1877 + $0x8] sm:$0xf]
        %v1881 = vld [vmem:[%s1877 + $0xc] sm:$0xf]
        %v1882 = vld [vmem:[%s1877 + $0x10] sm:$0xf]
        %v1883 = vld [vmem:[%s1877 + $0x14] sm:$0xf]
        %v1884 = vld [vmem:[%s1877 + $0x18] sm:$0xf]
        %v1885 = vld [vmem:[%s1877 + $0x1c] sm:$0xf]
        %v1886 = vld [vmem:[%s1877 + $0x20] sm:$0xf]
        %v1887 = vld [vmem:[%s1877 + $0x24] sm:$0xf]
        %v1888 = vld [vmem:[%s1877 + $0x28] sm:$0xf]
        %v1889 = vld [vmem:[%s1877 + $0x2c] sm:$0xf]
        %v1890 = vld [vmem:[%s1877 + $0x30] sm:$0xf]
        %v1891 = vld [vmem:[%s1877 + $0x34] sm:$0xf]
        %v1892 = vld [vmem:[%s1877 + $0x38] sm:$0xf]
        %v1893 = vld [vmem:[%s1877 + $0x3c] sm:$0xf]
        %v1894 = vld [vmem:[%s1877 + $0x40] sm:$0xf]
        %v1895 = vld [vmem:[%s1877 + $0x44] sm:$0xf]
        %v1896 = vld [vmem:[%s1877 + $0x48] sm:$0xf]
        %v1897 = vld [vmem:[%s1877 + $0x4c] sm:$0xf]
        %v1898 = vld [vmem:[%s1877 + $0x50] sm:$0xf]
        %v1899 = vld [vmem:[%s1877 + $0x54] sm:$0xf]
        %v1900 = vld [vmem:[%s1877 + $0x58] sm:$0xf]
        %v1901 = vld [vmem:[%s1877 + $0x5c] sm:$0xf]
        %v1902 = vld [vmem:[%s1877 + $0x60] sm:$0xf]
        %v1903 = vld [vmem:[%s1877 + $0x64] sm:$0xf]
        %v1904 = vld [vmem:[%s1877 + $0x68] sm:$0xf]
        %v1905 = vld [vmem:[%s1877 + $0x6c] sm:$0xf]
        %v1906 = vld [vmem:[%s1877 + $0x70] sm:$0xf]
        %v1907 = vld [vmem:[%s1877 + $0x74] sm:$0xf]
        %v1908 = vld [vmem:[%s1877 + $0x78] sm:$0xf]
        %v1909 = vld [vmem:[%s1877 + $0x7c] sm:$0xf]
        %v1910 = vld [vmem:[%s1877 + $0x80] sm:$0xf]
        %v1911 = vld [vmem:[%s1877 + $0x84] sm:$0xf]
        %v1912 = vld [vmem:[%s1877 + $0x88] sm:$0xf]
        %v1913 = vld [vmem:[%s1877 + $0x8c] sm:$0xf]
        %v1914 = vld [vmem:[%s1877 + $0x90] sm:$0xf]
        %v1915 = vld [vmem:[%s1877 + $0x94] sm:$0xf]
        %v1916 = vld [vmem:[%s1877 + $0x98] sm:$0xf]
        %v1917 = vld [vmem:[%s1877 + $0x9c] sm:$0xf]
        %v1918 = vld [vmem:[%s1877 + $0xa0] sm:$0xf]
        %v1919 = vld [vmem:[%s1877 + $0xa4] sm:$0xf]
        %v1920 = vld [vmem:[%s1877 + $0xa8] sm:$0xf]
        %v1921 = vld [vmem:[%s1877 + $0xac] sm:$0xf]
        %v1922 = vld [vmem:[%s1877 + $0xb0] sm:$0xf]
        %v1923 = vld [vmem:[%s1877 + $0xb4] sm:$0xf]
        %v1924 = vld [vmem:[%s1877 + $0xb8] sm:$0xf]
        %v1925 = vld [vmem:[%s1877 + $0xbc] sm:$0xf]
        %v1926 = vld [vmem:[%s1877 + $0xc0] sm:$0xf]
        %v1927 = vld [vmem:[%s1877 + $0xc4] sm:$0xf]
        %v1928 = vld [vmem:[%s1877 + $0xc8] sm:$0xf]
        %v1929 = vld [vmem:[%s1877 + $0xcc] sm:$0xf]
        %v1930 = vld [vmem:[%s1877 + $0xd0] sm:$0xf]
        %v1931 = vld [vmem:[%s1877 + $0xd4] sm:$0xf]
        %v1932 = vld [vmem:[%s1877 + $0xd8] sm:$0xf]
        %v1933 = vld [vmem:[%s1877 + $0xdc] sm:$0xf]
        %v1934 = vld [vmem:[%s1877 + $0xe0] sm:$0xf]
        %v1935 = vld [vmem:[%s1877 + $0xe4] sm:$0xf]
        %v1936 = vld [vmem:[%s1877 + $0xe8] sm:$0xf]
        %v1937 = vld [vmem:[%s1877 + $0xec] sm:$0xf]
        %v1938 = vld [vmem:[%s1877 + $0xf0] sm:$0xf]
        %v1939 = vld [vmem:[%s1877 + $0xf4] sm:$0xf]
        %v1940 = vld [vmem:[%s1877 + $0xf8] sm:$0xf]
        %v1941 = vld [vmem:[%s1877 + $0xfc] sm:$0xf]
        %s1942 = scalar_lea.vmem %s13, 1
        %v1943 = vld [vmem:[%s1942] sm:$0x1]
        %s1944 = scalar_lea.vmem %s14, 1
        %v1945 = vld [vmem:[%s1944] sm:$0x1]
        %s1946 = scalar_lea.vmem %s15, 1
        %v1947 = vld [vmem:[%s1946] sm:$0x1]
        %v1948 = vpack.c.bf16 %v1847, %v1847
        %v1950 = vshrl.u32 %v1948, 16
        %v1952 = vrot.slane %v1950, 3
        %v1957 = vunpack.c.l.b16 %v1849
        %v1958 = vunpack.c.l.b16 %v1850
        %v1959 = vunpack.c.l.b16 %v1851
        %v1960 = vunpack.c.l.b16 %v1852
        %v1961 = vpack.c.b16 %v1958, %v1957
        %v1962 = vpack.c.b16 %v1960, %v1959
        %v1966 = vsel %vm741, %v1952, 0
        %1968 = vmatprep.subr.bf16.mxu0 0
        %1969 = vmatpush1.bf16.msra.mxu0 0
        %1970 = vmatprep.subr.bf16.mxu0 0
        %1971 = vmatpush1.bf16.msra.mxu0 0
        %1972 = vmatprep.subr.bf16.mxu0 0
        %1973 = vmatpush1.bf16.msra.mxu0 0
        %1974 = vmatprep.subr.bf16.mxu0 0
        %1975 = vmatpush1.bf16.msra.mxu0 0
        %1976 = vmatprep.subr.bf16.mxu0 0
        %1977 = vmatpush1.bf16.msra.mxu0 0
        %1978 = vmatprep.subr.bf16.mxu0 0
        %1979 = vmatpush1.bf16.msra.mxu0 0
        %1980 = vmatprep.subr.bf16.mxu0 0
        %1981 = vmatpush1.bf16.msra.mxu0 %v1962
        %1982 = vmatprep.subr.bf16.mxu0 0
        %1983 = vmatpush1.bf16.msra.mxu0 %v1961
        %1984 = vmatprep.subr.bf16.mxu0 0
        %1985 = vmatpush2.bf16.msra.mxu0 0
        %1986 = vmatprep.subr.bf16.mxu0 0
        %1987 = vmatpush2.bf16.msra.mxu0 0
        %1988 = vmatprep.subr.bf16.mxu0 0
        %1989 = vmatpush2.bf16.msra.mxu0 0
        %1990 = vmatprep.subr.bf16.mxu0 0
        %1991 = vmatpush2.bf16.msra.mxu0 0
        %1992 = vmatprep.subr.bf16.mxu0 0
        %1993 = vmatpush2.bf16.msra.mxu0 0
        %1994 = vmatprep.subr.bf16.mxu0 0
        %1995 = vmatpush2.bf16.msra.mxu0 0
        %1996 = vmatprep.subr.bf16.mxu0 0
        %1997 = vmatpush2.bf16.msra.mxu0 0
        %1998 = vmatprep.subr.bf16.mxu0 0
        %1999 = vmatpush2.bf16.msra.mxu0 0
        %2000 = vmatprep.mubr.bf16.mxu0 0
        %2001 = vmatmul.mubr.bf16.gmra.mxu0 %v1966
        %v2002 = vpop.f32.mrf.mxu0
        %v2003 = vadd.f32 %v1854, %v2002
        %v2004 = vpop.f32.mrf.mxu0
        %v2005 = vpop.f32.mrf.mxu0
        %v2006 = vpop.f32.mrf.mxu0
        %2007 = vdwg.mxu0
        %v2009 = vlaneseq
        %v2010 = vshrl.u32 %v2009, 7
        %v2011 = vsub.s32 0, %v2010
        %v2012 = vrot.slane %v1854, %v2011
        %2013 = vrot.lane.b32.xlu0 %v1961, 96
        %v2014 = vpop.permute.xlu0 %2013
        %2015 = vrot.lane.b32.xlu0 %v1962, 96
        %v2016 = vpop.permute.xlu0 %2015
        %2019 = vrot.lane.b32.xlu0 %v2012, 96
        %v2020 = vpop.permute.xlu0 %2019
        %v2022 = vsel %vm741, %v1948, 0
        %2024 = vmatprep.subr.bf16.mxu0 0
        %2025 = vmatpush1.bf16.msra.mxu0 0
        %2026 = vmatprep.subr.bf16.mxu0 0
        %2027 = vmatpush1.bf16.msra.mxu0 0
        %2028 = vmatprep.subr.bf16.mxu0 0
        %2029 = vmatpush1.bf16.msra.mxu0 0
        %2030 = vmatprep.subr.bf16.mxu0 0
        %2031 = vmatpush1.bf16.msra.mxu0 0
        %2032 = vmatprep.subr.bf16.mxu0 0
        %2033 = vmatpush1.bf16.msra.mxu0 0
        %2034 = vmatprep.subr.bf16.mxu0 0
        %2035 = vmatpush1.bf16.msra.mxu0 0
        %2036 = vmatprep.subr.bf16.mxu0 0
        %2037 = vmatpush1.bf16.msra.mxu0 %v2016
        %2038 = vmatprep.subr.bf16.mxu0 0
        %2039 = vmatpush1.bf16.msra.mxu0 %v2014
        %2040 = vmatprep.subr.bf16.mxu0 0
        %2041 = vmatpush2.bf16.msra.mxu0 0
        %2042 = vmatprep.subr.bf16.mxu0 0
        %2043 = vmatpush2.bf16.msra.mxu0 0
        %2044 = vmatprep.subr.bf16.mxu0 0
        %2045 = vmatpush2.bf16.msra.mxu0 0
        %2046 = vmatprep.subr.bf16.mxu0 0
        %2047 = vmatpush2.bf16.msra.mxu0 0
        %2048 = vmatprep.subr.bf16.mxu0 0
        %2049 = vmatpush2.bf16.msra.mxu0 0
        %2050 = vmatprep.subr.bf16.mxu0 0
        %2051 = vmatpush2.bf16.msra.mxu0 0
        %2052 = vmatprep.subr.bf16.mxu0 0
        %2053 = vmatpush2.bf16.msra.mxu0 0
        %2054 = vmatprep.subr.bf16.mxu0 0
        %2055 = vmatpush2.bf16.msra.mxu0 0
        %2056 = vmatprep.mubr.bf16.mxu0 0
        %2057 = vmatmul.mubr.bf16.gmra.mxu0 %v2022
        %v2058 = vpop.f32.mrf.mxu0
        %v2059 = vadd.f32 %v2020, %v2058
        %v2060 = vpop.f32.mrf.mxu0
        %v2061 = vpop.f32.mrf.mxu0
        %v2062 = vpop.f32.mrf.mxu0
        %2063 = vdwg.mxu0
        %v2064 = vpack.c.bf16 %v2003, %v2003
        %v2065 = vpack.c.bf16 %v2059, %v2059
        %v2067 = vsel %vm836, %v2064, 0
        %v2070 = vsel %vm836, %v2065, 0
        %2072 = vmatprep.subr.bf16.mxu0 0
        %2073 = vmatpush1.bf16.xpose.msra.mxu0 0
        %2074 = vmatprep.subr.bf16.mxu0 0
        %2075 = vmatpush1.bf16.xpose.msra.mxu0 0
        %2076 = vmatprep.subr.bf16.mxu0 0
        %2077 = vmatpush1.bf16.xpose.msra.mxu0 0
        %2078 = vmatprep.subr.bf16.mxu0 0
        %2079 = vmatpush1.bf16.xpose.msra.mxu0 0
        %2080 = vmatprep.subr.bf16.mxu0 0
        %2081 = vmatpush1.bf16.xpose.msra.mxu0 0
        %2082 = vmatprep.subr.bf16.mxu0 0
        %2083 = vmatpush1.bf16.xpose.msra.mxu0 0
        %2084 = vmatprep.subr.bf16.mxu0 0
        %2085 = vmatpush1.bf16.xpose.msra.mxu0 0
        %2086 = vmatprep.subr.bf16.mxu0 0
        %2087 = vmatpush1.bf16.xpose.msra.mxu0 %v2070
        %2088 = vmatprep.subr.bf16.mxu0 0
        %2089 = vmatpush2.bf16.xpose.msra.mxu0 0
        %2090 = vmatprep.subr.bf16.mxu0 0
        %2091 = vmatpush2.bf16.xpose.msra.mxu0 0
        %2092 = vmatprep.subr.bf16.mxu0 0
        %2093 = vmatpush2.bf16.xpose.msra.mxu0 0
        %2094 = vmatprep.subr.bf16.mxu0 0
        %2095 = vmatpush2.bf16.xpose.msra.mxu0 0
        %2096 = vmatprep.subr.bf16.mxu0 0
        %2097 = vmatpush2.bf16.xpose.msra.mxu0 0
        %2098 = vmatprep.subr.bf16.mxu0 0
        %2099 = vmatpush2.bf16.xpose.msra.mxu0 0
        %2100 = vmatprep.subr.bf16.mxu0 0
        %2101 = vmatpush2.bf16.xpose.msra.mxu0 0
        %2102 = vmatprep.subr.bf16.mxu0 0
        %2103 = vmatpush2.bf16.xpose.msra.mxu0 0
        %2104 = vmatprep.mubr.bf16.mxu0 0
        %2105 = vmatmul.mubr.bf16.gmra.mxu0 %v2067
        %v2106 = vpop.f32.mrf.mxu0
        %v2107 = vadd.f32 0.0, %v2106
        %v2108 = vpop.f32.mrf.mxu0
        %v2109 = vpop.f32.mrf.mxu0
        %v2110 = vpop.f32.mrf.mxu0
        %2111 = vdwg.mxu0
        %v2112 = vmul.f32 %v2107, 0.35355338
        %vm2113 = vcmask 57344
        %v2114 = vsel %vm2113, %v2112, -inf
        %2115 = vmax.xlane.f32.xlu0 %v2114
        %v2116 = vpop.xlane.xlu0 %2115
        %v2117 = vsub.f32 %v2112, %v2116
        %v2118 = vmul.f32 %v2117, 1.442695
        %v2119 = vpow.pop %v2118
        %v2120 = vsel %vm2113, %v2119, 0.0
        %2121 = vadd.xlane.f32.xlu0 %v2120
        %v2122 = vpop.xlane.xlu0 %2121
        %v2123 = vrcp.pop %v2122
        %v2124 = vmul.f32 %v2119, %v2123
        %v2125 = vpack.c.bf16 %v2124, %v2124
        %2127 = vrot.lane.b32.xlu0 %v2065, 96
        %v2128 = vpop.permute.xlu0 %2127
        %v2130 = vsel %vm836, %v2125, 0
        %v2133 = vsel %vm902, %v2128, 0
        %2135 = vmatprep.subr.bf16.mxu0 0
        %2136 = vmatpush1.bf16.msra.mxu0 0
        %2137 = vmatprep.subr.bf16.mxu0 0
        %2138 = vmatpush1.bf16.msra.mxu0 0
        %2139 = vmatprep.subr.bf16.mxu0 0
        %2140 = vmatpush1.bf16.msra.mxu0 0
        %2141 = vmatprep.subr.bf16.mxu0 0
        %2142 = vmatpush1.bf16.msra.mxu0 0
        %2143 = vmatprep.subr.bf16.mxu0 0
        %2144 = vmatpush1.bf16.msra.mxu0 0
        %2145 = vmatprep.subr.bf16.mxu0 0
        %2146 = vmatpush1.bf16.msra.mxu0 0
        %2147 = vmatprep.subr.bf16.mxu0 0
        %2148 = vmatpush1.bf16.msra.mxu0 0
        %2149 = vmatprep.subr.bf16.mxu0 0
        %2150 = vmatpush1.bf16.msra.mxu0 %v2133
        %2151 = vmatprep.subr.bf16.mxu0 0
        %2152 = vmatpush2.bf16.msra.mxu0 0
        %2153 = vmatprep.subr.bf16.mxu0 0
        %2154 = vmatpush2.bf16.msra.mxu0 0
        %2155 = vmatprep.subr.bf16.mxu0 0
        %2156 = vmatpush2.bf16.msra.mxu0 0
        %2157 = vmatprep.subr.bf16.mxu0 0
        %2158 = vmatpush2.bf16.msra.mxu0 0
        %2159 = vmatprep.subr.bf16.mxu0 0
        %2160 = vmatpush2.bf16.msra.mxu0 0
        %2161 = vmatprep.subr.bf16.mxu0 0
        %2162 = vmatpush2.bf16.msra.mxu0 0
        %2163 = vmatprep.subr.bf16.mxu0 0
        %2164 = vmatpush2.bf16.msra.mxu0 0
        %2165 = vmatprep.subr.bf16.mxu0 0
        %2166 = vmatpush2.bf16.msra.mxu0 0
        %2167 = vmatprep.mubr.bf16.mxu0 0
        %2168 = vmatmul.mubr.bf16.gmra.mxu0 %v2130
        %v2169 = vpop.f32.mrf.mxu0
        %v2170 = vadd.f32 0.0, %v2169
        %v2171 = vpop.f32.mrf.mxu0
        %v2172 = vpop.f32.mrf.mxu0
        %v2173 = vpop.f32.mrf.mxu0
        %2174 = vdwg.mxu0
        %2176 = vrot.lane.b32.xlu0 %v2064, 120
        %v2177 = vpop.permute.xlu0 %2176
        %2178 = vrot.lane.b32.xlu0 %v2065, 120
        %v2179 = vpop.permute.xlu0 %2178
        %v2181 = vsel %vm836, %v2177, 0
        %v2184 = vsel %vm836, %v2179, 0
        %2186 = vmatprep.subr.bf16.mxu0 0
        %2187 = vmatpush1.bf16.xpose.msra.mxu0 0
        %2188 = vmatprep.subr.bf16.mxu0 0
        %2189 = vmatpush1.bf16.xpose.msra.mxu0 0
        %2190 = vmatprep.subr.bf16.mxu0 0
        %2191 = vmatpush1.bf16.xpose.msra.mxu0 0
        %2192 = vmatprep.subr.bf16.mxu0 0
        %2193 = vmatpush1.bf16.xpose.msra.mxu0 0
        %2194 = vmatprep.subr.bf16.mxu0 0
        %2195 = vmatpush1.bf16.xpose.msra.mxu0 0
        %2196 = vmatprep.subr.bf16.mxu0 0
        %2197 = vmatpush1.bf16.xpose.msra.mxu0 0
        %2198 = vmatprep.subr.bf16.mxu0 0
        %2199 = vmatpush1.bf16.xpose.msra.mxu0 0
        %2200 = vmatprep.subr.bf16.mxu0 0
        %2201 = vmatpush1.bf16.xpose.msra.mxu0 %v2184
        %2202 = vmatprep.subr.bf16.mxu0 0
        %2203 = vmatpush2.bf16.xpose.msra.mxu0 0
        %2204 = vmatprep.subr.bf16.mxu0 0
        %2205 = vmatpush2.bf16.xpose.msra.mxu0 0
        %2206 = vmatprep.subr.bf16.mxu0 0
        %2207 = vmatpush2.bf16.xpose.msra.mxu0 0
        %2208 = vmatprep.subr.bf16.mxu0 0
        %2209 = vmatpush2.bf16.xpose.msra.mxu0 0
        %2210 = vmatprep.subr.bf16.mxu0 0
        %2211 = vmatpush2.bf16.xpose.msra.mxu0 0
        %2212 = vmatprep.subr.bf16.mxu0 0
        %2213 = vmatpush2.bf16.xpose.msra.mxu0 0
        %2214 = vmatprep.subr.bf16.mxu0 0
        %2215 = vmatpush2.bf16.xpose.msra.mxu0 0
        %2216 = vmatprep.subr.bf16.mxu0 0
        %2217 = vmatpush2.bf16.xpose.msra.mxu0 0
        %2218 = vmatprep.mubr.bf16.mxu0 0
        %2219 = vmatmul.mubr.bf16.gmra.mxu0 %v2181
        %v2220 = vpop.f32.mrf.mxu0
        %v2221 = vadd.f32 0.0, %v2220
        %v2222 = vpop.f32.mrf.mxu0
        %v2223 = vpop.f32.mrf.mxu0
        %v2224 = vpop.f32.mrf.mxu0
        %2225 = vdwg.mxu0
        %v2226 = vmul.f32 %v2221, 0.35355338
        %v2227 = vsel %vm2113, %v2226, -inf
        %2228 = vmax.xlane.f32.xlu0 %v2227
        %v2229 = vpop.xlane.xlu0 %2228
        %v2230 = vsub.f32 %v2226, %v2229
        %v2231 = vmul.f32 %v2230, 1.442695
        %v2232 = vpow.pop %v2231
        %v2233 = vsel %vm2113, %v2232, 0.0
        %2234 = vadd.xlane.f32.xlu0 %v2233
        %v2235 = vpop.xlane.xlu0 %2234
        %v2236 = vrcp.pop %v2235
        %v2237 = vmul.f32 %v2232, %v2236
        %v2238 = vpack.c.bf16 %v2237, %v2237
        %2239 = vrot.lane.b32.xlu0 %v2065, 88
        %v2240 = vpop.permute.xlu0 %2239
        %v2242 = vsel %vm836, %v2238, 0
        %v2245 = vsel %vm902, %v2240, 0
        %2247 = vmatprep.subr.bf16.mxu0 0
        %2248 = vmatpush1.bf16.msra.mxu0 0
        %2249 = vmatprep.subr.bf16.mxu0 0
        %2250 = vmatpush1.bf16.msra.mxu0 0
        %2251 = vmatprep.subr.bf16.mxu0 0
        %2252 = vmatpush1.bf16.msra.mxu0 0
        %2253 = vmatprep.subr.bf16.mxu0 0
        %2254 = vmatpush1.bf16.msra.mxu0 0
        %2255 = vmatprep.subr.bf16.mxu0 0
        %2256 = vmatpush1.bf16.msra.mxu0 0
        %2257 = vmatprep.subr.bf16.mxu0 0
        %2258 = vmatpush1.bf16.msra.mxu0 0
        %2259 = vmatprep.subr.bf16.mxu0 0
        %2260 = vmatpush1.bf16.msra.mxu0 0
        %2261 = vmatprep.subr.bf16.mxu0 0
        %2262 = vmatpush1.bf16.msra.mxu0 %v2245
        %2263 = vmatprep.subr.bf16.mxu0 0
        %2264 = vmatpush2.bf16.msra.mxu0 0
        %2265 = vmatprep.subr.bf16.mxu0 0
        %2266 = vmatpush2.bf16.msra.mxu0 0
        %2267 = vmatprep.subr.bf16.mxu0 0
        %2268 = vmatpush2.bf16.msra.mxu0 0
        %2269 = vmatprep.subr.bf16.mxu0 0
        %2270 = vmatpush2.bf16.msra.mxu0 0
        %2271 = vmatprep.subr.bf16.mxu0 0
        %2272 = vmatpush2.bf16.msra.mxu0 0
        %2273 = vmatprep.subr.bf16.mxu0 0
        %2274 = vmatpush2.bf16.msra.mxu0 0
        %2275 = vmatprep.subr.bf16.mxu0 0
        %2276 = vmatpush2.bf16.msra.mxu0 0
        %2277 = vmatprep.subr.bf16.mxu0 0
        %2278 = vmatpush2.bf16.msra.mxu0 0
        %2279 = vmatprep.mubr.bf16.mxu0 0
        %2280 = vmatmul.mubr.bf16.gmra.mxu0 %v2242
        %v2281 = vpop.f32.mrf.mxu0
        %v2282 = vadd.f32 0.0, %v2281
        %v2283 = vpop.f32.mrf.mxu0
        %v2284 = vpop.f32.mrf.mxu0
        %v2285 = vpop.f32.mrf.mxu0
        %2286 = vdwg.mxu0
        %2287 = vrot.lane.b32.xlu0 %v2064, 112
        %v2288 = vpop.permute.xlu0 %2287
        %2289 = vrot.lane.b32.xlu0 %v2065, 112
        %v2290 = vpop.permute.xlu0 %2289
        %v2292 = vsel %vm836, %v2288, 0
        %v2295 = vsel %vm836, %v2290, 0
        %2297 = vmatprep.subr.bf16.mxu0 0
        %2298 = vmatpush1.bf16.xpose.msra.mxu0 0
        %2299 = vmatprep.subr.bf16.mxu0 0
        %2300 = vmatpush1.bf16.xpose.msra.mxu0 0
        %2301 = vmatprep.subr.bf16.mxu0 0
        %2302 = vmatpush1.bf16.xpose.msra.mxu0 0
        %2303 = vmatprep.subr.bf16.mxu0 0
        %2304 = vmatpush1.bf16.xpose.msra.mxu0 0
        %2305 = vmatprep.subr.bf16.mxu0 0
        %2306 = vmatpush1.bf16.xpose.msra.mxu0 0
        %2307 = vmatprep.subr.bf16.mxu0 0
        %2308 = vmatpush1.bf16.xpose.msra.mxu0 0
        %2309 = vmatprep.subr.bf16.mxu0 0
        %2310 = vmatpush1.bf16.xpose.msra.mxu0 0
        %2311 = vmatprep.subr.bf16.mxu0 0
        %2312 = vmatpush1.bf16.xpose.msra.mxu0 %v2295
        %2313 = vmatprep.subr.bf16.mxu0 0
        %2314 = vmatpush2.bf16.xpose.msra.mxu0 0
        %2315 = vmatprep.subr.bf16.mxu0 0
        %2316 = vmatpush2.bf16.xpose.msra.mxu0 0
        %2317 = vmatprep.subr.bf16.mxu0 0
        %2318 = vmatpush2.bf16.xpose.msra.mxu0 0
        %2319 = vmatprep.subr.bf16.mxu0 0
        %2320 = vmatpush2.bf16.xpose.msra.mxu0 0
        %2321 = vmatprep.subr.bf16.mxu0 0
        %2322 = vmatpush2.bf16.xpose.msra.mxu0 0
        %2323 = vmatprep.subr.bf16.mxu0 0
        %2324 = vmatpush2.bf16.xpose.msra.mxu0 0
        %2325 = vmatprep.subr.bf16.mxu0 0
        %2326 = vmatpush2.bf16.xpose.msra.mxu0 0
        %2327 = vmatprep.subr.bf16.mxu0 0
        %2328 = vmatpush2.bf16.xpose.msra.mxu0 0
        %2329 = vmatprep.mubr.bf16.mxu0 0
        %2330 = vmatmul.mubr.bf16.gmra.mxu0 %v2292
        %v2331 = vpop.f32.mrf.mxu0
        %v2332 = vadd.f32 0.0, %v2331
        %v2333 = vpop.f32.mrf.mxu0
        %v2334 = vpop.f32.mrf.mxu0
        %v2335 = vpop.f32.mrf.mxu0
        %2336 = vdwg.mxu0
        %v2337 = vmul.f32 %v2332, 0.35355338
        %v2338 = vsel %vm2113, %v2337, -inf
        %2339 = vmax.xlane.f32.xlu0 %v2338
        %v2340 = vpop.xlane.xlu0 %2339
        %v2341 = vsub.f32 %v2337, %v2340
        %v2342 = vmul.f32 %v2341, 1.442695
        %v2343 = vpow.pop %v2342
        %v2344 = vsel %vm2113, %v2343, 0.0
        %2345 = vadd.xlane.f32.xlu0 %v2344
        %v2346 = vpop.xlane.xlu0 %2345
        %v2347 = vrcp.pop %v2346
        %v2348 = vmul.f32 %v2343, %v2347
        %v2349 = vpack.c.bf16 %v2348, %v2348
        %2350 = vrot.lane.b32.xlu0 %v2065, 80
        %v2351 = vpop.permute.xlu0 %2350
        %v2353 = vsel %vm836, %v2349, 0
        %v2356 = vsel %vm902, %v2351, 0
        %2358 = vmatprep.subr.bf16.mxu0 0
        %2359 = vmatpush1.bf16.msra.mxu0 0
        %2360 = vmatprep.subr.bf16.mxu0 0
        %2361 = vmatpush1.bf16.msra.mxu0 0
        %2362 = vmatprep.subr.bf16.mxu0 0
        %2363 = vmatpush1.bf16.msra.mxu0 0
        %2364 = vmatprep.subr.bf16.mxu0 0
        %2365 = vmatpush1.bf16.msra.mxu0 0
        %2366 = vmatprep.subr.bf16.mxu0 0
        %2367 = vmatpush1.bf16.msra.mxu0 0
        %2368 = vmatprep.subr.bf16.mxu0 0
        %2369 = vmatpush1.bf16.msra.mxu0 0
        %2370 = vmatprep.subr.bf16.mxu0 0
        %2371 = vmatpush1.bf16.msra.mxu0 0
        %2372 = vmatprep.subr.bf16.mxu0 0
        %2373 = vmatpush1.bf16.msra.mxu0 %v2356
        %2374 = vmatprep.subr.bf16.mxu0 0
        %2375 = vmatpush2.bf16.msra.mxu0 0
        %2376 = vmatprep.subr.bf16.mxu0 0
        %2377 = vmatpush2.bf16.msra.mxu0 0
        %2378 = vmatprep.subr.bf16.mxu0 0
        %2379 = vmatpush2.bf16.msra.mxu0 0
        %2380 = vmatprep.subr.bf16.mxu0 0
        %2381 = vmatpush2.bf16.msra.mxu0 0
        %2382 = vmatprep.subr.bf16.mxu0 0
        %2383 = vmatpush2.bf16.msra.mxu0 0
        %2384 = vmatprep.subr.bf16.mxu0 0
        %2385 = vmatpush2.bf16.msra.mxu0 0
        %2386 = vmatprep.subr.bf16.mxu0 0
        %2387 = vmatpush2.bf16.msra.mxu0 0
        %2388 = vmatprep.subr.bf16.mxu0 0
        %2389 = vmatpush2.bf16.msra.mxu0 0
        %2390 = vmatprep.mubr.bf16.mxu0 0
        %2391 = vmatmul.mubr.bf16.gmra.mxu0 %v2353
        %v2392 = vpop.f32.mrf.mxu0
        %v2393 = vadd.f32 0.0, %v2392
        %v2394 = vpop.f32.mrf.mxu0
        %v2395 = vpop.f32.mrf.mxu0
        %v2396 = vpop.f32.mrf.mxu0
        %2397 = vdwg.mxu0
        %2398 = vrot.lane.b32.xlu0 %v2064, 104
        %v2399 = vpop.permute.xlu0 %2398
        %2400 = vrot.lane.b32.xlu0 %v2065, 104
        %v2401 = vpop.permute.xlu0 %2400
        %v2403 = vsel %vm836, %v2399, 0
        %v2406 = vsel %vm836, %v2401, 0
        %2408 = vmatprep.subr.bf16.mxu0 0
        %2409 = vmatpush1.bf16.xpose.msra.mxu0 0
        %2410 = vmatprep.subr.bf16.mxu0 0
        %2411 = vmatpush1.bf16.xpose.msra.mxu0 0
        %2412 = vmatprep.subr.bf16.mxu0 0
        %2413 = vmatpush1.bf16.xpose.msra.mxu0 0
        %2414 = vmatprep.subr.bf16.mxu0 0
        %2415 = vmatpush1.bf16.xpose.msra.mxu0 0
        %2416 = vmatprep.subr.bf16.mxu0 0
        %2417 = vmatpush1.bf16.xpose.msra.mxu0 0
        %2418 = vmatprep.subr.bf16.mxu0 0
        %2419 = vmatpush1.bf16.xpose.msra.mxu0 0
        %2420 = vmatprep.subr.bf16.mxu0 0
        %2421 = vmatpush1.bf16.xpose.msra.mxu0 0
        %2422 = vmatprep.subr.bf16.mxu0 0
        %2423 = vmatpush1.bf16.xpose.msra.mxu0 %v2406
        %2424 = vmatprep.subr.bf16.mxu0 0
        %2425 = vmatpush2.bf16.xpose.msra.mxu0 0
        %2426 = vmatprep.subr.bf16.mxu0 0
        %2427 = vmatpush2.bf16.xpose.msra.mxu0 0
        %2428 = vmatprep.subr.bf16.mxu0 0
        %2429 = vmatpush2.bf16.xpose.msra.mxu0 0
        %2430 = vmatprep.subr.bf16.mxu0 0
        %2431 = vmatpush2.bf16.xpose.msra.mxu0 0
        %2432 = vmatprep.subr.bf16.mxu0 0
        %2433 = vmatpush2.bf16.xpose.msra.mxu0 0
        %2434 = vmatprep.subr.bf16.mxu0 0
        %2435 = vmatpush2.bf16.xpose.msra.mxu0 0
        %2436 = vmatprep.subr.bf16.mxu0 0
        %2437 = vmatpush2.bf16.xpose.msra.mxu0 0
        %2438 = vmatprep.subr.bf16.mxu0 0
        %2439 = vmatpush2.bf16.xpose.msra.mxu0 0
        %2440 = vmatprep.mubr.bf16.mxu0 0
        %2441 = vmatmul.mubr.bf16.gmra.mxu0 %v2403
        %v2442 = vpop.f32.mrf.mxu0
        %v2443 = vadd.f32 0.0, %v2442
        %v2444 = vpop.f32.mrf.mxu0
        %v2445 = vpop.f32.mrf.mxu0
        %v2446 = vpop.f32.mrf.mxu0
        %2447 = vdwg.mxu0
        %v2448 = vmul.f32 %v2443, 0.35355338
        %v2449 = vsel %vm2113, %v2448, -inf
        %2450 = vmax.xlane.f32.xlu0 %v2449
        %v2451 = vpop.xlane.xlu0 %2450
        %v2452 = vsub.f32 %v2448, %v2451
        %v2453 = vmul.f32 %v2452, 1.442695
        %v2454 = vpow.pop %v2453
        %v2455 = vsel %vm2113, %v2454, 0.0
        %2456 = vadd.xlane.f32.xlu0 %v2455
        %v2457 = vpop.xlane.xlu0 %2456
        %v2458 = vrcp.pop %v2457
        %v2459 = vmul.f32 %v2454, %v2458
        %v2460 = vpack.c.bf16 %v2459, %v2459
        %2461 = vrot.lane.b32.xlu0 %v2065, 72
        %v2462 = vpop.permute.xlu0 %2461
        %v2464 = vsel %vm836, %v2460, 0
        %v2467 = vsel %vm902, %v2462, 0
        %2469 = vmatprep.subr.bf16.mxu0 0
        %2470 = vmatpush1.bf16.msra.mxu0 0
        %2471 = vmatprep.subr.bf16.mxu0 0
        %2472 = vmatpush1.bf16.msra.mxu0 0
        %2473 = vmatprep.subr.bf16.mxu0 0
        %2474 = vmatpush1.bf16.msra.mxu0 0
        %2475 = vmatprep.subr.bf16.mxu0 0
        %2476 = vmatpush1.bf16.msra.mxu0 0
        %2477 = vmatprep.subr.bf16.mxu0 0
        %2478 = vmatpush1.bf16.msra.mxu0 0
        %2479 = vmatprep.subr.bf16.mxu0 0
        %2480 = vmatpush1.bf16.msra.mxu0 0
        %2481 = vmatprep.subr.bf16.mxu0 0
        %2482 = vmatpush1.bf16.msra.mxu0 0
        %2483 = vmatprep.subr.bf16.mxu0 0
        %2484 = vmatpush1.bf16.msra.mxu0 %v2467
        %2485 = vmatprep.subr.bf16.mxu0 0
        %2486 = vmatpush2.bf16.msra.mxu0 0
        %2487 = vmatprep.subr.bf16.mxu0 0
        %2488 = vmatpush2.bf16.msra.mxu0 0
        %2489 = vmatprep.subr.bf16.mxu0 0
        %2490 = vmatpush2.bf16.msra.mxu0 0
        %2491 = vmatprep.subr.bf16.mxu0 0
        %2492 = vmatpush2.bf16.msra.mxu0 0
        %2493 = vmatprep.subr.bf16.mxu0 0
        %2494 = vmatpush2.bf16.msra.mxu0 0
        %2495 = vmatprep.subr.bf16.mxu0 0
        %2496 = vmatpush2.bf16.msra.mxu0 0
        %2497 = vmatprep.subr.bf16.mxu0 0
        %2498 = vmatpush2.bf16.msra.mxu0 0
        %2499 = vmatprep.subr.bf16.mxu0 0
        %2500 = vmatpush2.bf16.msra.mxu0 0
        %2501 = vmatprep.mubr.bf16.mxu0 0
        %2502 = vmatmul.mubr.bf16.gmra.mxu0 %v2464
        %v2503 = vpop.f32.mrf.mxu0
        %v2504 = vadd.f32 0.0, %v2503
        %v2505 = vpop.f32.mrf.mxu0
        %v2506 = vpop.f32.mrf.mxu0
        %v2507 = vpop.f32.mrf.mxu0
        %2508 = vdwg.mxu0
        %2510 = vrot.lane.b32.xlu0 %v2282, 8
        %v2511 = vpop.permute.xlu0 %2510
        %2514 = vrot.lane.b32.xlu0 %v2393, 16
        %v2515 = vpop.permute.xlu0 %2514
        %2518 = vrot.lane.b32.xlu0 %v2504, 24
        %v2519 = vpop.permute.xlu0 %2518
        %v2521 = vsel %vm836, %v2170, %v2511
        %v2522 = vsel %vm588, %v2521, %v2515
        %v2523 = vsel %vm1294, %v2522, %v2519
        %v2524 = vpack.c.bf16 %v2523, %v2523
        %v2529 = vunpack.c.l.b16 %v1856
        %v2530 = vunpack.c.l.b16 %v1857
        %v2531 = vunpack.c.l.b16 %v1858
        %v2532 = vunpack.c.l.b16 %v1859
        %v2533 = vpack.c.b16 %v2530, %v2529
        %v2534 = vpack.c.b16 %v2532, %v2531
        %v2538 = vsel %vm741, %v2524, 0
        %2540 = vmatprep.subr.bf16.mxu0 0
        %2541 = vmatpush1.bf16.msra.mxu0 0
        %2542 = vmatprep.subr.bf16.mxu0 0
        %2543 = vmatpush1.bf16.msra.mxu0 0
        %2544 = vmatprep.subr.bf16.mxu0 0
        %2545 = vmatpush1.bf16.msra.mxu0 0
        %2546 = vmatprep.subr.bf16.mxu0 0
        %2547 = vmatpush1.bf16.msra.mxu0 0
        %2548 = vmatprep.subr.bf16.mxu0 0
        %2549 = vmatpush1.bf16.msra.mxu0 0
        %2550 = vmatprep.subr.bf16.mxu0 0
        %2551 = vmatpush1.bf16.msra.mxu0 0
        %2552 = vmatprep.subr.bf16.mxu0 0
        %2553 = vmatpush1.bf16.msra.mxu0 %v2534
        %2554 = vmatprep.subr.bf16.mxu0 0
        %2555 = vmatpush1.bf16.msra.mxu0 %v2533
        %2556 = vmatprep.subr.bf16.mxu0 0
        %2557 = vmatpush2.bf16.msra.mxu0 0
        %2558 = vmatprep.subr.bf16.mxu0 0
        %2559 = vmatpush2.bf16.msra.mxu0 0
        %2560 = vmatprep.subr.bf16.mxu0 0
        %2561 = vmatpush2.bf16.msra.mxu0 0
        %2562 = vmatprep.subr.bf16.mxu0 0
        %2563 = vmatpush2.bf16.msra.mxu0 0
        %2564 = vmatprep.subr.bf16.mxu0 0
        %2565 = vmatpush2.bf16.msra.mxu0 0
        %2566 = vmatprep.subr.bf16.mxu0 0
        %2567 = vmatpush2.bf16.msra.mxu0 0
        %2568 = vmatprep.subr.bf16.mxu0 0
        %2569 = vmatpush2.bf16.msra.mxu0 0
        %2570 = vmatprep.subr.bf16.mxu0 0
        %2571 = vmatpush2.bf16.msra.mxu0 0
        %2572 = vmatprep.mubr.bf16.mxu0 0
        %2573 = vmatmul.mubr.bf16.gmra.mxu0 %v2538
        %v2574 = vpop.f32.mrf.mxu0
        %v2575 = vadd.f32 %v1861, %v2574
        %v2576 = vpop.f32.mrf.mxu0
        %v2577 = vpop.f32.mrf.mxu0
        %v2578 = vpop.f32.mrf.mxu0
        %2579 = vdwg.mxu0
        %v2581 = vrot.slane %v2575, 1
        %v2583 = vadd.f32 %v1847, %v2581
        %vm2584 = vcmask 261127
        %v2585 = vsel %vm2584, %v2583, 0.0
        %2586 = vadd.xlane.f32.xlu0 %v2585
        %v2587 = vpop.xlane.xlu0 %2586
        %v2588 = vmul.f32 %v2587, %v1362
        %v2589 = vsub.f32 %v2583, %v2588
        %v2590 = vmul.f32 %v2589, %v2589
        %v2591 = vsel %vm2584, %v2590, 0.0
        %2592 = vadd.xlane.f32.xlu0 %v2591
        %v2593 = vpop.xlane.xlu0 %2592
        %v2594 = vmul.f32 %v2593, %v1362
        %v2595 = vadd.f32 %v2594, 1e-05
        %v2596 = vrsqrt.pop %v2595
        %v2597 = vmul.f32 %v2589, %v2596
        %v2599 = vlaneseq
        %v2600 = vshrl.u32 %v2599, 7
        %v2601 = vsub.s32 0, %v2600
        %v2602 = vrot.slane %v1863, %v2601
        %v2604 = vmul.f32 %v2597, %v2602
        %v2606 = vlaneseq
        %v2607 = vshrl.u32 %v2606, 7
        %v2608 = vsub.s32 0, %v2607
        %v2609 = vrot.slane %v1865, %v2608
        %v2611 = vadd.f32 %v2604, %v2609
        %v2612 = vpack.c.bf16 %v2611, %v2611
        %v2614 = vshrl.u32 %v2612, 16
        %v2616 = vrot.slane %v2614, 3
        %v2625 = vunpack.c.l.b16 %v1867
        %v2626 = vunpack.c.h.b16 %v1867
        %v2627 = vunpack.c.l.b16 %v1868
        %v2628 = vunpack.c.h.b16 %v1868
        %v2629 = vunpack.c.l.b16 %v1869
        %v2630 = vunpack.c.h.b16 %v1869
        %v2631 = vunpack.c.l.b16 %v1870
        %v2632 = vunpack.c.h.b16 %v1870
        %v2633 = vunpack.c.l.b16 %v1871
        %v2634 = vunpack.c.h.b16 %v1871
        %v2635 = vunpack.c.l.b16 %v1872
        %v2636 = vunpack.c.h.b16 %v1872
        %v2637 = vunpack.c.l.b16 %v1873
        %v2638 = vunpack.c.h.b16 %v1873
        %v2639 = vunpack.c.l.b16 %v1874
        %v2640 = vunpack.c.h.b16 %v1874
        %v2641 = vpack.c.b16 %v2629, %v2625
        %v2642 = vpack.c.b16 %v2630, %v2626
        %v2643 = vpack.c.b16 %v2631, %v2627
        %v2644 = vpack.c.b16 %v2632, %v2628
        %v2645 = vpack.c.b16 %v2637, %v2633
        %v2646 = vpack.c.b16 %v2638, %v2634
        %v2647 = vpack.c.b16 %v2639, %v2635
        %v2648 = vpack.c.b16 %v2640, %v2636
        %v2658 = vlaneseq
        %v2659 = vshrl.u32 %v2658, 7
        %v2660 = vsub.s32 0, %v2659
        %v2661 = vrot.slane %v1876, %v2660
        %v2662 = vlaneseq
        %v2663 = vshrl.u32 %v2662, 7
        %v2664 = vsub.s32 1, %v2663
        %v2665 = vrot.slane %v1876, %v2664
        %v2666 = vlaneseq
        %v2667 = vshrl.u32 %v2666, 7
        %v2668 = vsub.s32 2, %v2667
        %v2669 = vrot.slane %v1876, %v2668
        %v2670 = vlaneseq
        %v2671 = vshrl.u32 %v2670, 7
        %v2672 = vsub.s32 3, %v2671
        %v2673 = vrot.slane %v1876, %v2672
        %v2679 = vsel %vm741, %v2616, 0
        %2681 = vmatprep.subr.bf16.mxu0 0
        %2682 = vmatpush1.bf16.msra.mxu0 0
        %2683 = vmatprep.subr.bf16.mxu0 0
        %2684 = vmatpush1.bf16.msra.mxu0 0
        %2685 = vmatprep.subr.bf16.mxu0 0
        %2686 = vmatpush1.bf16.msra.mxu0 0
        %2687 = vmatprep.subr.bf16.mxu0 0
        %2688 = vmatpush1.bf16.msra.mxu0 0
        %2689 = vmatprep.subr.bf16.mxu0 0
        %2690 = vmatpush1.bf16.msra.mxu0 0
        %2691 = vmatprep.subr.bf16.mxu0 0
        %2692 = vmatpush1.bf16.msra.mxu0 0
        %2693 = vmatprep.subr.bf16.mxu0 %v2646
        %2694 = vmatpush1.bf16.msra.mxu0 %v2645
        %2695 = vmatprep.subr.bf16.mxu0 %v2642
        %2696 = vmatpush1.bf16.msra.mxu0 %v2641
        %2697 = vmatprep.subr.bf16.mxu0 0
        %2698 = vmatpush2.bf16.msra.mxu0 0
        %2699 = vmatprep.subr.bf16.mxu0 0
        %2700 = vmatpush2.bf16.msra.mxu0 0
        %2701 = vmatprep.subr.bf16.mxu0 0
        %2702 = vmatpush2.bf16.msra.mxu0 0
        %2703 = vmatprep.subr.bf16.mxu0 0
        %2704 = vmatpush2.bf16.msra.mxu0 0
        %2705 = vmatprep.subr.bf16.mxu0 0
        %2706 = vmatpush2.bf16.msra.mxu0 0
        %2707 = vmatprep.subr.bf16.mxu0 0
        %2708 = vmatpush2.bf16.msra.mxu0 0
        %2709 = vmatprep.subr.bf16.mxu0 0
        %2710 = vmatpush2.bf16.msra.mxu0 0
        %2711 = vmatprep.subr.bf16.mxu0 0
        %2712 = vmatpush2.bf16.msra.mxu0 0
        %2713 = vmatprep.mubr.bf16.mxu0 0
        %2714 = vmatmul.mubr.bf16.gmra.mxu0 %v2679
        %v2715 = vpop.f32.mrf.mxu0
        %v2716 = vadd.f32 %v2661, %v2715
        %v2717 = vpop.f32.mrf.mxu0
        %v2718 = vadd.f32 %v2665, %v2717
        %v2719 = vpop.f32.mrf.mxu0
        %v2720 = vpop.f32.mrf.mxu0
        %2721 = vdwg.mxu0
        %2722 = vmatprep.subr.bf16.mxu0 0
        %2723 = vmatpush1.bf16.msra.mxu0 0
        %2724 = vmatprep.subr.bf16.mxu0 0
        %2725 = vmatpush1.bf16.msra.mxu0 0
        %2726 = vmatprep.subr.bf16.mxu0 0
        %2727 = vmatpush1.bf16.msra.mxu0 0
        %2728 = vmatprep.subr.bf16.mxu0 0
        %2729 = vmatpush1.bf16.msra.mxu0 0
        %2730 = vmatprep.subr.bf16.mxu0 0
        %2731 = vmatpush1.bf16.msra.mxu0 0
        %2732 = vmatprep.subr.bf16.mxu0 0
        %2733 = vmatpush1.bf16.msra.mxu0 0
        %2734 = vmatprep.subr.bf16.mxu0 %v2648
        %2735 = vmatpush1.bf16.msra.mxu0 %v2647
        %2736 = vmatprep.subr.bf16.mxu0 %v2644
        %2737 = vmatpush1.bf16.msra.mxu0 %v2643
        %2738 = vmatprep.subr.bf16.mxu0 0
        %2739 = vmatpush2.bf16.msra.mxu0 0
        %2740 = vmatprep.subr.bf16.mxu0 0
        %2741 = vmatpush2.bf16.msra.mxu0 0
        %2742 = vmatprep.subr.bf16.mxu0 0
        %2743 = vmatpush2.bf16.msra.mxu0 0
        %2744 = vmatprep.subr.bf16.mxu0 0
        %2745 = vmatpush2.bf16.msra.mxu0 0
        %2746 = vmatprep.subr.bf16.mxu0 0
        %2747 = vmatpush2.bf16.msra.mxu0 0
        %2748 = vmatprep.subr.bf16.mxu0 0
        %2749 = vmatpush2.bf16.msra.mxu0 0
        %2750 = vmatprep.subr.bf16.mxu0 0
        %2751 = vmatpush2.bf16.msra.mxu0 0
        %2752 = vmatprep.subr.bf16.mxu0 0
        %2753 = vmatpush2.bf16.msra.mxu0 0
        %2754 = vmatprep.mubr.bf16.mxu0 0
        %2755 = vmatmul.mubr.bf16.gmra.mxu0 %v2679
        %v2756 = vpop.f32.mrf.mxu0
        %v2757 = vadd.f32 %v2669, %v2756
        %v2758 = vpop.f32.mrf.mxu0
        %v2759 = vadd.f32 %v2673, %v2758
        %v2760 = vpop.f32.mrf.mxu0
        %v2761 = vpop.f32.mrf.mxu0
        %2762 = vdwg.mxu0
        %v2763 = vmax.f32 %v2716, 0.0
        %v2764 = vmax.f32 %v2718, 0.0
        %v2765 = vmax.f32 %v2757, 0.0
        %v2766 = vmax.f32 %v2759, 0.0
        %v2767 = vpack.c.bf16 %v2763, %v2763
        %v2768 = vpack.c.bf16 %v2764, %v2764
        %v2769 = vpack.c.bf16 %v2765, %v2765
        %v2770 = vpack.c.bf16 %v2766, %v2766
        %v2835 = vunpack.c.l.b16 %v1878
        %v2836 = vunpack.c.l.b16 %v1879
        %v2837 = vunpack.c.l.b16 %v1880
        %v2838 = vunpack.c.l.b16 %v1881
        %v2839 = vunpack.c.l.b16 %v1882
        %v2840 = vunpack.c.l.b16 %v1883
        %v2841 = vunpack.c.l.b16 %v1884
        %v2842 = vunpack.c.l.b16 %v1885
        %v2843 = vunpack.c.l.b16 %v1886
        %v2844 = vunpack.c.l.b16 %v1887
        %v2845 = vunpack.c.l.b16 %v1888
        %v2846 = vunpack.c.l.b16 %v1889
        %v2847 = vunpack.c.l.b16 %v1890
        %v2848 = vunpack.c.l.b16 %v1891
        %v2849 = vunpack.c.l.b16 %v1892
        %v2850 = vunpack.c.l.b16 %v1893
        %v2851 = vunpack.c.l.b16 %v1894
        %v2852 = vunpack.c.l.b16 %v1895
        %v2853 = vunpack.c.l.b16 %v1896
        %v2854 = vunpack.c.l.b16 %v1897
        %v2855 = vunpack.c.l.b16 %v1898
        %v2856 = vunpack.c.l.b16 %v1899
        %v2857 = vunpack.c.l.b16 %v1900
        %v2858 = vunpack.c.l.b16 %v1901
        %v2859 = vunpack.c.l.b16 %v1902
        %v2860 = vunpack.c.l.b16 %v1903
        %v2861 = vunpack.c.l.b16 %v1904
        %v2862 = vunpack.c.l.b16 %v1905
        %v2863 = vunpack.c.l.b16 %v1906
        %v2864 = vunpack.c.l.b16 %v1907
        %v2865 = vunpack.c.l.b16 %v1908
        %v2866 = vunpack.c.l.b16 %v1909
        %v2867 = vunpack.c.l.b16 %v1910
        %v2868 = vunpack.c.l.b16 %v1911
        %v2869 = vunpack.c.l.b16 %v1912
        %v2870 = vunpack.c.l.b16 %v1913
        %v2871 = vunpack.c.l.b16 %v1914
        %v2872 = vunpack.c.l.b16 %v1915
        %v2873 = vunpack.c.l.b16 %v1916
        %v2874 = vunpack.c.l.b16 %v1917
        %v2875 = vunpack.c.l.b16 %v1918
        %v2876 = vunpack.c.l.b16 %v1919
        %v2877 = vunpack.c.l.b16 %v1920
        %v2878 = vunpack.c.l.b16 %v1921
        %v2879 = vunpack.c.l.b16 %v1922
        %v2880 = vunpack.c.l.b16 %v1923
        %v2881 = vunpack.c.l.b16 %v1924
        %v2882 = vunpack.c.l.b16 %v1925
        %v2883 = vunpack.c.l.b16 %v1926
        %v2884 = vunpack.c.l.b16 %v1927
        %v2885 = vunpack.c.l.b16 %v1928
        %v2886 = vunpack.c.l.b16 %v1929
        %v2887 = vunpack.c.l.b16 %v1930
        %v2888 = vunpack.c.l.b16 %v1931
        %v2889 = vunpack.c.l.b16 %v1932
        %v2890 = vunpack.c.l.b16 %v1933
        %v2891 = vunpack.c.l.b16 %v1934
        %v2892 = vunpack.c.l.b16 %v1935
        %v2893 = vunpack.c.l.b16 %v1936
        %v2894 = vunpack.c.l.b16 %v1937
        %v2895 = vunpack.c.l.b16 %v1938
        %v2896 = vunpack.c.l.b16 %v1939
        %v2897 = vunpack.c.l.b16 %v1940
        %v2898 = vunpack.c.l.b16 %v1941
        %v2899 = vpack.c.b16 %v2836, %v2835
        %v2900 = vpack.c.b16 %v2838, %v2837
        %v2901 = vpack.c.b16 %v2840, %v2839
        %v2902 = vpack.c.b16 %v2842, %v2841
        %v2903 = vpack.c.b16 %v2844, %v2843
        %v2904 = vpack.c.b16 %v2846, %v2845
        %v2905 = vpack.c.b16 %v2848, %v2847
        %v2906 = vpack.c.b16 %v2850, %v2849
        %v2907 = vpack.c.b16 %v2852, %v2851
        %v2908 = vpack.c.b16 %v2854, %v2853
        %v2909 = vpack.c.b16 %v2856, %v2855
        %v2910 = vpack.c.b16 %v2858, %v2857
        %v2911 = vpack.c.b16 %v2860, %v2859
        %v2912 = vpack.c.b16 %v2862, %v2861
        %v2913 = vpack.c.b16 %v2864, %v2863
        %v2914 = vpack.c.b16 %v2866, %v2865
        %v2915 = vpack.c.b16 %v2868, %v2867
        %v2916 = vpack.c.b16 %v2870, %v2869
        %v2917 = vpack.c.b16 %v2872, %v2871
        %v2918 = vpack.c.b16 %v2874, %v2873
        %v2919 = vpack.c.b16 %v2876, %v2875
        %v2920 = vpack.c.b16 %v2878, %v2877
        %v2921 = vpack.c.b16 %v2880, %v2879
        %v2922 = vpack.c.b16 %v2882, %v2881
        %v2923 = vpack.c.b16 %v2884, %v2883
        %v2924 = vpack.c.b16 %v2886, %v2885
        %v2925 = vpack.c.b16 %v2888, %v2887
        %v2926 = vpack.c.b16 %v2890, %v2889
        %v2927 = vpack.c.b16 %v2892, %v2891
        %v2928 = vpack.c.b16 %v2894, %v2893
        %v2929 = vpack.c.b16 %v2896, %v2895
        %v2930 = vpack.c.b16 %v2898, %v2897
        %2963 = vmatprep.subr.bf16.mxu0 0
        %2964 = vmatpush1.bf16.msra.mxu0 %v2906
        %2965 = vmatprep.subr.bf16.mxu0 0
        %2966 = vmatpush1.bf16.msra.mxu0 %v2905
        %2967 = vmatprep.subr.bf16.mxu0 0
        %2968 = vmatpush1.bf16.msra.mxu0 %v2904
        %2969 = vmatprep.subr.bf16.mxu0 0
        %2970 = vmatpush1.bf16.msra.mxu0 %v2903
        %2971 = vmatprep.subr.bf16.mxu0 0
        %2972 = vmatpush1.bf16.msra.mxu0 %v2902
        %2973 = vmatprep.subr.bf16.mxu0 0
        %2974 = vmatpush1.bf16.msra.mxu0 %v2901
        %2975 = vmatprep.subr.bf16.mxu0 0
        %2976 = vmatpush1.bf16.msra.mxu0 %v2900
        %2977 = vmatprep.subr.bf16.mxu0 0
        %2978 = vmatpush1.bf16.msra.mxu0 %v2899
        %2979 = vmatprep.subr.bf16.mxu0 0
        %2980 = vmatpush2.bf16.msra.mxu0 %v2914
        %2981 = vmatprep.subr.bf16.mxu0 0
        %2982 = vmatpush2.bf16.msra.mxu0 %v2913
        %2983 = vmatprep.subr.bf16.mxu0 0
        %2984 = vmatpush2.bf16.msra.mxu0 %v2912
        %2985 = vmatprep.subr.bf16.mxu0 0
        %2986 = vmatpush2.bf16.msra.mxu0 %v2911
        %2987 = vmatprep.subr.bf16.mxu0 0
        %2988 = vmatpush2.bf16.msra.mxu0 %v2910
        %2989 = vmatprep.subr.bf16.mxu0 0
        %2990 = vmatpush2.bf16.msra.mxu0 %v2909
        %2991 = vmatprep.subr.bf16.mxu0 0
        %2992 = vmatpush2.bf16.msra.mxu0 %v2908
        %2993 = vmatprep.subr.bf16.mxu0 0
        %2994 = vmatpush2.bf16.msra.mxu0 %v2907
        %2995 = vmatprep.mubr.bf16.mxu0 %v2768
        %2996 = vmatmul.mubr.bf16.gmra.mxu0 %v2767
        %v2997 = vpop.f32.mrf.mxu0
        %v2998 = vadd.f32 %v1943, %v2997
        %v2999 = vpop.f32.mrf.mxu0
        %v3000 = vpop.f32.mrf.mxu0
        %v3001 = vpop.f32.mrf.mxu0
        %3002 = vdwg.mxu0
        %3003 = vmatprep.subr.bf16.mxu0 0
        %3004 = vmatpush1.bf16.msra.mxu0 %v2922
        %3005 = vmatprep.subr.bf16.mxu0 0
        %3006 = vmatpush1.bf16.msra.mxu0 %v2921
        %3007 = vmatprep.subr.bf16.mxu0 0
        %3008 = vmatpush1.bf16.msra.mxu0 %v2920
        %3009 = vmatprep.subr.bf16.mxu0 0
        %3010 = vmatpush1.bf16.msra.mxu0 %v2919
        %3011 = vmatprep.subr.bf16.mxu0 0
        %3012 = vmatpush1.bf16.msra.mxu0 %v2918
        %3013 = vmatprep.subr.bf16.mxu0 0
        %3014 = vmatpush1.bf16.msra.mxu0 %v2917
        %3015 = vmatprep.subr.bf16.mxu0 0
        %3016 = vmatpush1.bf16.msra.mxu0 %v2916
        %3017 = vmatprep.subr.bf16.mxu0 0
        %3018 = vmatpush1.bf16.msra.mxu0 %v2915
        %3019 = vmatprep.subr.bf16.mxu0 0
        %3020 = vmatpush2.bf16.msra.mxu0 %v2930
        %3021 = vmatprep.subr.bf16.mxu0 0
        %3022 = vmatpush2.bf16.msra.mxu0 %v2929
        %3023 = vmatprep.subr.bf16.mxu0 0
        %3024 = vmatpush2.bf16.msra.mxu0 %v2928
        %3025 = vmatprep.subr.bf16.mxu0 0
        %3026 = vmatpush2.bf16.msra.mxu0 %v2927
        %3027 = vmatprep.subr.bf16.mxu0 0
        %3028 = vmatpush2.bf16.msra.mxu0 %v2926
        %3029 = vmatprep.subr.bf16.mxu0 0
        %3030 = vmatpush2.bf16.msra.mxu0 %v2925
        %3031 = vmatprep.subr.bf16.mxu0 0
        %3032 = vmatpush2.bf16.msra.mxu0 %v2924
        %3033 = vmatprep.subr.bf16.mxu0 0
        %3034 = vmatpush2.bf16.msra.mxu0 %v2923
        %3035 = vmatprep.mubr.bf16.mxu0 %v2770
        %3036 = vmatmul.mubr.bf16.gmra.mxu0 %v2769
        %v3037 = vpop.f32.mrf.mxu0
        %v3038 = vadd.f32 %v2998, %v3037
        %v3039 = vpop.f32.mrf.mxu0
        %v3040 = vpop.f32.mrf.mxu0
        %v3041 = vpop.f32.mrf.mxu0
        %3042 = vdwg.mxu0
        %v3044 = vrot.slane %v3038, 1
        %v3046 = vadd.f32 %v2611, %v3044
        %v3047 = vsel %vm2584, %v3046, 0.0
        %3048 = vadd.xlane.f32.xlu0 %v3047
        %v3049 = vpop.xlane.xlu0 %3048
        %v3050 = vmul.f32 %v3049, %v1362
        %v3051 = vsub.f32 %v3046, %v3050
        %v3052 = vmul.f32 %v3051, %v3051
        %v3053 = vsel %vm2584, %v3052, 0.0
        %3054 = vadd.xlane.f32.xlu0 %v3053
        %v3055 = vpop.xlane.xlu0 %3054
        %v3056 = vmul.f32 %v3055, %v1362
        %v3057 = vadd.f32 %v3056, 1e-05
        %v3058 = vrsqrt.pop %v3057
        %v3059 = vmul.f32 %v3051, %v3058
        %v3061 = vlaneseq
        %v3062 = vshrl.u32 %v3061, 7
        %v3063 = vsub.s32 0, %v3062
        %v3064 = vrot.slane %v1945, %v3063
        %v3066 = vmul.f32 %v3059, %v3064
        %v3068 = vlaneseq
        %v3069 = vshrl.u32 %v3068, 7
        %v3070 = vsub.s32 0, %v3069
        %v3071 = vrot.slane %v1947, %v3070
        %v3073 = vadd.f32 %v3066, %v3071
        %v3074 = vpack.c.bf16 %v3073, %v3073
        %v3075 = vld [vmem:[%s16] sm:$0xf]
        %v3076 = vld [vmem:[%s16 + $0x4] sm:$0xf]
        %v3077 = vld [vmem:[%s16 + $0x8] sm:$0xf]
        %v3078 = vld [vmem:[%s16 + $0xc] sm:$0xf]
        %v3079 = vld [vmem:[%s17] sm:$0x1]
        %v3081 = vshrl.u32 %v3074, 16
        %v3083 = vrot.slane %v3081, 3
        %v3088 = vunpack.c.l.b16 %v3075
        %v3089 = vunpack.c.l.b16 %v3076
        %v3090 = vunpack.c.l.b16 %v3077
        %v3091 = vunpack.c.l.b16 %v3078
        %v3092 = vpack.c.b16 %v3089, %v3088
        %v3093 = vpack.c.b16 %v3091, %v3090
        %v3097 = vsel %vm741, %v3083, 0
        %3099 = vmatprep.subr.bf16.mxu0 0
        %3100 = vmatpush1.bf16.msra.mxu0 0
        %3101 = vmatprep.subr.bf16.mxu0 0
        %3102 = vmatpush1.bf16.msra.mxu0 0
        %3103 = vmatprep.subr.bf16.mxu0 0
        %3104 = vmatpush1.bf16.msra.mxu0 0
        %3105 = vmatprep.subr.bf16.mxu0 0
        %3106 = vmatpush1.bf16.msra.mxu0 0
        %3107 = vmatprep.subr.bf16.mxu0 0
        %3108 = vmatpush1.bf16.msra.mxu0 0
        %3109 = vmatprep.subr.bf16.mxu0 0
        %3110 = vmatpush1.bf16.msra.mxu0 0
        %3111 = vmatprep.subr.bf16.mxu0 0
        %3112 = vmatpush1.bf16.msra.mxu0 %v3093
        %3113 = vmatprep.subr.bf16.mxu0 0
        %3114 = vmatpush1.bf16.msra.mxu0 %v3092
        %3115 = vmatprep.subr.bf16.mxu0 0
        %3116 = vmatpush2.bf16.msra.mxu0 0
        %3117 = vmatprep.subr.bf16.mxu0 0
        %3118 = vmatpush2.bf16.msra.mxu0 0
        %3119 = vmatprep.subr.bf16.mxu0 0
        %3120 = vmatpush2.bf16.msra.mxu0 0
        %3121 = vmatprep.subr.bf16.mxu0 0
        %3122 = vmatpush2.bf16.msra.mxu0 0
        %3123 = vmatprep.subr.bf16.mxu0 0
        %3124 = vmatpush2.bf16.msra.mxu0 0
        %3125 = vmatprep.subr.bf16.mxu0 0
        %3126 = vmatpush2.bf16.msra.mxu0 0
        %3127 = vmatprep.subr.bf16.mxu0 0
        %3128 = vmatpush2.bf16.msra.mxu0 0
        %3129 = vmatprep.subr.bf16.mxu0 0
        %3130 = vmatpush2.bf16.msra.mxu0 0
        %3131 = vmatprep.mubr.bf16.mxu0 0
        %3132 = vmatmul.mubr.bf16.gmra.mxu0 %v3097
        %v3133 = vpop.f32.mrf.mxu0
        %v3134 = vadd.f32 %v3079, %v3133
        %v3135 = vpop.f32.mrf.mxu0
        %v3136 = vpop.f32.mrf.mxu0
        %v3137 = vpop.f32.mrf.mxu0
        %3138 = vdwg.mxu0
        %3139 = vst.msk [vmem:[%s565] sm:$0x1] %vm2113, %v3134
        %s3140 = sand.u32 %s423, 1
        %s3141 = scalar_lea.sflag [#allocation3], %s3140
        %s3142 = sand.u32 %s423, 1
        %s3143 = scalar_lea.vmem [#allocation2], %s3142
        // Predicated region
        $region93: #{transformer_forward.1} parent=91 // pred_check
          %p3144 = pneg %p433
        $region94: #{transformer_forward.1} parent=91 // pred_check_branch
          %3146 = sbr.rel (%p3144) target = $region96
        $region95: #{transformer_forward.1} parent=91 // pred_region
          %s3148 = ssub.s32 16, 16
          %3149 = vsyncadd %s3141, %s3148
          %s3150 = smul.addr %s32, 16
          %s3151 = scalar_lea.hbm %s18, %s3150
          %s3153 = sshll.u32 %s3143, 4
          %s3154 = int_to_ptr.vmem [resolvable:$true] %s3153
          %3156 = dma.vmem_to_hbm [thread:$0]  %s3154, 16, %s3151, %s3141
        $region96: #{transformer_forward.1} parent=91 // pred_fallthru
          _
      $region92: #{transformer_forward.1} parent=5 // pred_fallthru
        _
      %p3157 = scmp.le.s32.totalorder 2, %s27
      // Predicated region
      $region97: #{transformer_forward.1} parent=5 // pred_check
        %p3158 = pneg %p3157
      $region98: #{transformer_forward.1} parent=5 // pred_check_branch
        %3160 = sbr.rel (%p3158) target = $region100
      $region99: #{transformer_forward.1} parent=5 // pred_region
        %s3161 = ssub.s32 %s27, 2
        // Predicated region
        $region101: #{transformer_forward.1} parent=99 // pred_check
          %p3162 = pneg %p439
        $region102: #{transformer_forward.1} parent=99 // pred_check_branch
          %3164 = sbr.rel (%p3162) target = $region104
        $region103: #{transformer_forward.1} parent=99 // pred_region
          %s3165 = sand.u32 %s424, 1
          %s3166 = scalar_lea.sflag [#allocation3], %s3165
          %s3167 = sand.u32 %s424, 1
          %s3168 = scalar_lea.vmem [#allocation2], %s3167
          %3169 = dma.done %s3166, 16
        $region104: #{transformer_forward.1} parent=99 // pred_fallthru
          _
      $region100: #{transformer_forward.1} parent=5 // pred_fallthru
        _
    $region6: #{transformer_forward.1} parent=1 // loop_footer
      %s31 = sadd.s32 1, %s27
    $region7: #{transformer_forward.1} parent=1 // loop_footer_branch
      %26 = sbr.rel target = $region3
    $region8: #{transformer_forward.1} parent=1 // loop_exit
      _
    %3170 = vsyncpa [#allocation3], 1
    %s3171 = scalar_lea.sflag [#allocation3], 1
    %3172 = vsyncpa %s3171, 1

</llo_original>
